<compile_context>
chip_gen: v7x
topology: tpu7x:2x2x1
jax: 0.10.0
libtpu: 0.0.40
codegen_flags: <defaults>
</compile_context>

<pallas_src>
import jax
import jax.numpy as jnp
from jax.experimental import pallas as pl
from jax.experimental.pallas import tpu as pltpu

# Model hyper-parameters (fixed by the PyTorch module except input_size).
INPUT_SIZE = 32
HIDDEN = 128
EMBED = 128
NUM_LAYERS = 2

# Cast matmul operands (weights + LHS) to bf16 with f32 accumulation.  Big MXU /
# VMEM-traffic win on v6e/v7x; left off by default so the strict 1e-3 check vs the
# f32 reference below holds on every generation.
USE_BF16_WEIGHTS = False


def _gates(g):
    """Split a (B, 4H) pre-activation into PyTorch-ordered activated gates."""
    i = jax.nn.sigmoid(g[:, 0 * HIDDEN:1 * HIDDEN])
    f = jax.nn.sigmoid(g[:, 1 * HIDDEN:2 * HIDDEN])
    gg = jnp.tanh(g[:, 2 * HIDDEN:3 * HIDDEN])
    o = jax.nn.sigmoid(g[:, 3 * HIDDEN:4 * HIDDEN])
    return i, f, gg, o


def speaker_embedding_kernel(x_ref,       # (T*B, F)   time-major, flattened
                             wih0_ref,    # (F, 4H)
                             whh0_ref,    # (H, 4H)
                             b0_ref,      # (1, 4H)    b_ih0 + b_hh0
                             w1cat_ref,   # (2H, 4H)   [W_ih1^T ; W_hh1^T]
                             b1_ref,      # (1, 4H)    b_ih1 + b_hh1
                             wout_ref,    # (H, E)
                             bout_ref,    # (1, E)
                             h0_ref,      # (NUM_LAYERS, B, H)
                             c0_ref,      # (NUM_LAYERS, B, H)
                             out_ref):    # (B, E)
    B = out_ref.shape[0]
    T = x_ref.shape[0] // B
    mm_dtype = jnp.bfloat16 if USE_BF16_WEIGHTS else jnp.float32

    # Weights loaded once; recurrent weights reused across all (unrolled) steps.
    whh0 = whh0_ref[...].astype(mm_dtype)
    w1 = w1cat_ref[...].astype(mm_dtype)

    # Hoisted bias broadcast (layer-1 bias is re-added every step).
    b1b = jnp.broadcast_to(b1_ref[...], (B, 4 * HIDDEN))

    # Hoisted layer-0 input projection for ALL timesteps: one (T*B, F) @ (F, 4H)
    # MXU matmul + bias, removed from the serial per-step dependency chain.
    g0_all = (jnp.dot(x_ref[...].astype(mm_dtype), wih0_ref[...].astype(mm_dtype),
                      preferred_element_type=jnp.float32)
              + b0_ref[...])

    h_l0, c_l0 = h0_ref[0], c0_ref[0]
    h_l1, c_l1 = h0_ref[1], c0_ref[1]

    # Fully unrolled time loop (T is a static, small Python int): static row
    # slices of g0_all and maximum scheduling visibility across steps.
    for t in range(T):
        # ---- layer 0: only the recurrent matmul remains on the serial path ----
        g0 = (g0_all[t * B:(t + 1) * B, :]
              + jnp.dot(h_l0.astype(mm_dtype), whh0,
                        preferred_element_type=jnp.float32))
        i0, f0, gg0, o0 = _gates(g0)
        c_l0 = f0 * c_l0 + i0 * gg0
        h_l0 = o0 * jnp.tanh(c_l0)

        # ---- layer 1: fused single matmul over [h_l0, h_l1] ----
        hcat = jnp.concatenate([h_l0, h_l1], axis=1)        # (B, 2H)
        g1 = (jnp.dot(hcat.astype(mm_dtype), w1,
                      preferred_element_type=jnp.float32)
              + b1b)
        i1, f1, gg1, o1 = _gates(g1)
        c_l1 = f1 * c_l1 + i1 * gg1
        h_l1 = o1 * jnp.tanh(c_l1)

    # hn[-1] -> Linear(hidden_size, embedding_size)
    out_ref[...] = (jnp.dot(h_l1.astype(mm_dtype), wout_ref[...].astype(mm_dtype),
                            preferred_element_type=jnp.float32)
                    + bout_ref[...])


def speaker_embedding_forward(x_btf, params, h0, c0):
    """x_btf: (B, T, input_size) float32. Returns (B, EMBED) float32."""
    B, T, F = x_btf.shape
    # Time-major, flattened to 2-D so the hoisted input projection is one matmul.
    x2d = jnp.transpose(x_btf, (1, 0, 2)).reshape(T * B, F)

    vmem = pl.BlockSpec(memory_space=pltpu.MemorySpace.VMEM)
    args = (x2d,
            params["wih0_t"], params["whh0_t"], params["b0"],
            params["w1cat_t"], params["b1"],
            params["wout_t"], params["bout"],
            h0, c0)

    # TODO(synk): for very long T, stream x / the hoisted gate buffer from HBM in
    # chunks (memory_space=pl.ANY + make_async_copy) instead of full VMEM residency.
    return pl.pallas_call(
        speaker_embedding_kernel,
        out_shape=jax.ShapeDtypeStruct((B, EMBED), jnp.float32),
        in_specs=[vmem] * len(args),
        out_specs=vmem,
    )(*args)


def init_params(key):
    """Deterministic init mimicking PyTorch's U(-1/sqrt(H), 1/sqrt(H))."""
    bound = 1.0 / jnp.sqrt(jnp.float32(HIDDEN))
    ks = jax.random.split(key, 10)

    def u(k, shape):
        return jax.random.uniform(k, shape, jnp.float32, -bound, bound)

    # Layer 0
    w_ih0 = u(ks[0], (4 * HIDDEN, INPUT_SIZE))
    w_hh0 = u(ks[1], (4 * HIDDEN, HIDDEN))
    b_ih0 = u(ks[2], (4 * HIDDEN,))
    b_hh0 = u(ks[3], (4 * HIDDEN,))
    # Layer 1
    w_ih1 = u(ks[4], (4 * HIDDEN, HIDDEN))
    w_hh1 = u(ks[5], (4 * HIDDEN, HIDDEN))
    b_ih1 = u(ks[6], (4 * HIDDEN,))
    b_hh1 = u(ks[7], (4 * HIDDEN,))
    # Output Linear(H, E)
    w_out = u(ks[8], (EMBED, HIDDEN))
    b_out = u(ks[9], (EMBED,))

    wih1_t = w_ih1.T
    whh1_t = w_hh1.T
    return {
        # Kernel (fused / transposed) parameters.
        "wih0_t": w_ih0.T,                                   # (F, 4H)
        "whh0_t": w_hh0.T,                                   # (H, 4H)
        "b0": (b_ih0 + b_hh0)[None, :],                      # (1, 4H)
        "w1cat_t": jnp.concatenate([wih1_t, whh1_t], 0),     # (2H, 4H)
        "b1": (b_ih1 + b_hh1)[None, :],                      # (1, 4H)
        "wout_t": w_out.T,                                   # (H, E)
        "bout": b_out[None, :],                              # (1, E)
        # Un-fused copies for the pure-JAX reference.
        "wih1_t": wih1_t,
        "whh1_t": whh1_t,
    }


def _ref_cell(x, h, c, w_ih_t, w_hh_t, b):
    g = (jnp.dot(x, w_ih_t, preferred_element_type=jnp.float32)
         + jnp.dot(h, w_hh_t, preferred_element_type=jnp.float32)
         + b)
    i, f, gg, o = _gates(g)
    c_new = f * c + i * gg
    h_new = o * jnp.tanh(c_new)
    return h_new, c_new


def reference_forward(x_btf, params, h0, c0):
    """Pure-JAX reference of the same forward pass (for a sanity check)."""
    B, T, _ = x_btf.shape
    h_l0, c_l0, h_l1, c_l1 = h0[0], c0[0], h0[1], c0[1]
    for t in range(T):
        x_t = x_btf[:, t, :]
        h_l0, c_l0 = _ref_cell(x_t, h_l0, c_l0,
                               params["wih0_t"], params["whh0_t"], params["b0"])
        h_l1, c_l1 = _ref_cell(h_l0, h_l1, c_l1,
                               params["wih1_t"], params["whh1_t"], params["b1"])
    return (jnp.dot(h_l1, params["wout_t"], preferred_element_type=jnp.float32)
            + params["bout"])


if __name__ == "__main__":
    key = jax.random.PRNGKey(0)
    k_param, k_x, k_h0, k_c0 = jax.random.split(key, 4)

    B, T = 2, 8
    params = init_params(k_param)
    x = jax.random.normal(k_x, (B, T, INPUT_SIZE), jnp.float32)
    # torch.randn initial states, made deterministic with the JAX PRNG.
    h0 = jax.random.normal(k_h0, (NUM_LAYERS, B, HIDDEN), jnp.float32)
    c0 = jax.random.normal(k_c0, (NUM_LAYERS, B, HIDDEN), jnp.float32)

    out = speaker_embedding_forward(x, params, h0, c0)
    out = jax.block_until_ready(out)

    ref = reference_forward(x, params, h0, c0)
    assert out.shape == (B, EMBED)
    tol = 1e-3 if not USE_BF16_WEIGHTS else 2e-2
    assert jnp.allclose(out, ref, rtol=tol, atol=tol), "mismatch vs JAX reference"

    print("KERNEL_OK")
</pallas_src>

<mosaic_0001>
module attributes {stable_mosaic.version = 11 : i64} {
  func.func @speaker_embedding_kernel(%arg0: memref<16x32xf32, #tpu.memory_space<vmem>>, %arg1: memref<32x512xf32, #tpu.memory_space<vmem>>, %arg2: memref<128x512xf32, #tpu.memory_space<vmem>>, %arg3: memref<1x512xf32, #tpu.memory_space<vmem>>, %arg4: memref<256x512xf32, #tpu.memory_space<vmem>>, %arg5: memref<1x512xf32, #tpu.memory_space<vmem>>, %arg6: memref<128x128xf32, #tpu.memory_space<vmem>>, %arg7: memref<1x128xf32, #tpu.memory_space<vmem>>, %arg8: memref<2x2x128xf32, #tpu.memory_space<vmem>>, %arg9: memref<2x2x128xf32, #tpu.memory_space<vmem>>, %arg10: memref<2x128xf32, #tpu.memory_space<vmem>>) attributes {dimension_semantics = [], scalar_prefetch = 0 : i64, scratch_operands = 0 : i64, tpu.core_type = #tpu.core_type<tc>} {
    %c0 = arith.constant 0 : index
    %c0_0 = arith.constant 0 : index
    %0 = vector.load %arg2[%c0, %c0_0] : memref<128x512xf32, #tpu.memory_space<vmem>>, vector<128x512xf32>
    %c0_1 = arith.constant 0 : index
    %c0_2 = arith.constant 0 : index
    %1 = vector.load %arg4[%c0_1, %c0_2] : memref<256x512xf32, #tpu.memory_space<vmem>>, vector<256x512xf32>
    %c0_3 = arith.constant 0 : index
    %c0_4 = arith.constant 0 : index
    %2 = vector.load %arg5[%c0_3, %c0_4] : memref<1x512xf32, #tpu.memory_space<vmem>>, vector<1x512xf32>
    %3 = vector.shape_cast %2 : vector<1x512xf32> to vector<1x512xf32>
    %4 = vector.broadcast %3 : vector<1x512xf32> to vector<2x512xf32>
    %c0_5 = arith.constant 0 : index
    %c0_6 = arith.constant 0 : index
    %5 = vector.load %arg0[%c0_5, %c0_6] : memref<16x32xf32, #tpu.memory_space<vmem>>, vector<16x32xf32>
    %c0_7 = arith.constant 0 : index
    %c0_8 = arith.constant 0 : index
    %6 = vector.load %arg1[%c0_7, %c0_8] : memref<32x512xf32, #tpu.memory_space<vmem>>, vector<32x512xf32>
    %cst = arith.constant dense<0.000000e+00> : vector<16x512xf32>
    %7 = tpu.matmul %5, %6, %cst {dimension_numbers = #tpu.dot_dimension_numbers<[1], [0], [0], [1], [0, 0, 1, 1], [], []>} : vector<16x32xf32>, vector<32x512xf32>, vector<16x512xf32> -> vector<16x512xf32>
    %c0_9 = arith.constant 0 : index
    %c0_10 = arith.constant 0 : index
    %8 = vector.load %arg3[%c0_9, %c0_10] : memref<1x512xf32, #tpu.memory_space<vmem>>, vector<1x512xf32>
    %9 = vector.broadcast %8 : vector<1x512xf32> to vector<16x512xf32>
    %10 = arith.addf %7, %9 : vector<16x512xf32>
    %c0_11 = arith.constant 0 : index
    %c0_12 = arith.constant 0 : index
    %c0_13 = arith.constant 0 : index
    %11 = vector.load %arg8[%c0_11, %c0_12, %c0_13] : memref<2x2x128xf32, #tpu.memory_space<vmem>>, vector<1x2x128xf32>
    %12 = vector.shape_cast %11 : vector<1x2x128xf32> to vector<2x128xf32>
    %c0_14 = arith.constant 0 : index
    %c0_15 = arith.constant 0 : index
    %c0_16 = arith.constant 0 : index
    %13 = vector.load %arg9[%c0_14, %c0_15, %c0_16] : memref<2x2x128xf32, #tpu.memory_space<vmem>>, vector<1x2x128xf32>
    %14 = vector.shape_cast %13 : vector<1x2x128xf32> to vector<2x128xf32>
    %c1 = arith.constant 1 : index
    %c0_17 = arith.constant 0 : index
    %c0_18 = arith.constant 0 : index
    %15 = vector.load %arg8[%c1, %c0_17, %c0_18] : memref<2x2x128xf32, #tpu.memory_space<vmem>>, vector<1x2x128xf32>
    %16 = vector.shape_cast %15 : vector<1x2x128xf32> to vector<2x128xf32>
    %c1_19 = arith.constant 1 : index
    %c0_20 = arith.constant 0 : index
    %c0_21 = arith.constant 0 : index
    %17 = vector.load %arg9[%c1_19, %c0_20, %c0_21] : memref<2x2x128xf32, #tpu.memory_space<vmem>>, vector<1x2x128xf32>
    %18 = vector.shape_cast %17 : vector<1x2x128xf32> to vector<2x128xf32>
    %19 = vector.extract_strided_slice %10 {offsets = [0, 0], sizes = [2, 512], strides = [1, 1]} : vector<16x512xf32> to vector<2x512xf32>
    %cst_22 = arith.constant dense<0.000000e+00> : vector<2x512xf32>
    %20 = tpu.matmul %12, %0, %cst_22 {dimension_numbers = #tpu.dot_dimension_numbers<[1], [0], [0], [1], [0, 0, 1, 1], [], []>} : vector<2x128xf32>, vector<128x512xf32>, vector<2x512xf32> -> vector<2x512xf32>
    %21 = arith.addf %19, %20 : vector<2x512xf32>
    %22 = vector.extract_strided_slice %21 {offsets = [0, 0], sizes = [2, 128], strides = [1, 1]} : vector<2x512xf32> to vector<2x128xf32>
    %23 = arith.negf %22 : vector<2x128xf32>
    %24 = math.exp %23 : vector<2x128xf32>
    %cst_23 = arith.constant 1.000000e+00 : f32
    %25 = vector.broadcast %cst_23 : f32 to vector<2x128xf32>
    %26 = arith.addf %25, %24 : vector<2x128xf32>
    %27 = arith.divf %25, %26 : vector<2x128xf32>
    %28 = vector.extract_strided_slice %21 {offsets = [0, 128], sizes = [2, 128], strides = [1, 1]} : vector<2x512xf32> to vector<2x128xf32>
    %29 = arith.negf %28 : vector<2x128xf32>
    %30 = math.exp %29 : vector<2x128xf32>
    %cst_24 = arith.constant 1.000000e+00 : f32
    %31 = vector.broadcast %cst_24 : f32 to vector<2x128xf32>
    %32 = arith.addf %31, %30 : vector<2x128xf32>
    %33 = arith.divf %31, %32 : vector<2x128xf32>
    %34 = vector.extract_strided_slice %21 {offsets = [0, 256], sizes = [2, 128], strides = [1, 1]} : vector<2x512xf32> to vector<2x128xf32>
    %35 = math.tanh %34 : vector<2x128xf32>
    %36 = vector.extract_strided_slice %21 {offsets = [0, 384], sizes = [2, 128], strides = [1, 1]} : vector<2x512xf32> to vector<2x128xf32>
    %37 = arith.negf %36 : vector<2x128xf32>
    %38 = math.exp %37 : vector<2x128xf32>
    %cst_25 = arith.constant 1.000000e+00 : f32
    %39 = vector.broadcast %cst_25 : f32 to vector<2x128xf32>
    %40 = arith.addf %39, %38 : vector<2x128xf32>
    %41 = arith.divf %39, %40 : vector<2x128xf32>
    %42 = arith.mulf %33, %14 : vector<2x128xf32>
    %43 = arith.mulf %27, %35 : vector<2x128xf32>
    %44 = arith.addf %42, %43 : vector<2x128xf32>
    %45 = math.tanh %44 : vector<2x128xf32>
    %46 = arith.mulf %41, %45 : vector<2x128xf32>
    %47 = tpu.concatenate %46, %16 in 1 : vector<2x128xf32>, vector<2x128xf32> -> vector<2x256xf32>
    %cst_26 = arith.constant dense<0.000000e+00> : vector<2x512xf32>
    %48 = tpu.matmul %47, %1, %cst_26 {dimension_numbers = #tpu.dot_dimension_numbers<[1], [0], [0], [1], [0, 0, 1, 1], [], []>} : vector<2x256xf32>, vector<256x512xf32>, vector<2x512xf32> -> vector<2x512xf32>
    %49 = arith.addf %48, %4 : vector<2x512xf32>
    %50 = vector.extract_strided_slice %49 {offsets = [0, 0], sizes = [2, 128], strides = [1, 1]} : vector<2x512xf32> to vector<2x128xf32>
    %51 = arith.negf %50 : vector<2x128xf32>
    %52 = math.exp %51 : vector<2x128xf32>
    %cst_27 = arith.constant 1.000000e+00 : f32
    %53 = vector.broadcast %cst_27 : f32 to vector<2x128xf32>
    %54 = arith.addf %53, %52 : vector<2x128xf32>
    %55 = arith.divf %53, %54 : vector<2x128xf32>
    %56 = vector.extract_strided_slice %49 {offsets = [0, 128], sizes = [2, 128], strides = [1, 1]} : vector<2x512xf32> to vector<2x128xf32>
    %57 = arith.negf %56 : vector<2x128xf32>
    %58 = math.exp %57 : vector<2x128xf32>
    %cst_28 = arith.constant 1.000000e+00 : f32
    %59 = vector.broadcast %cst_28 : f32 to vector<2x128xf32>
    %60 = arith.addf %59, %58 : vector<2x128xf32>
    %61 = arith.divf %59, %60 : vector<2x128xf32>
    %62 = vector.extract_strided_slice %49 {offsets = [0, 256], sizes = [2, 128], strides = [1, 1]} : vector<2x512xf32> to vector<2x128xf32>
    %63 = math.tanh %62 : vector<2x128xf32>
    %64 = vector.extract_strided_slice %49 {offsets = [0, 384], sizes = [2, 128], strides = [1, 1]} : vector<2x512xf32> to vector<2x128xf32>
    %65 = arith.negf %64 : vector<2x128xf32>
    %66 = math.exp %65 : vector<2x128xf32>
    %cst_29 = arith.constant 1.000000e+00 : f32
    %67 = vector.broadcast %cst_29 : f32 to vector<2x128xf32>
    %68 = arith.addf %67, %66 : vector<2x128xf32>
    %69 = arith.divf %67, %68 : vector<2x128xf32>
    %70 = arith.mulf %61, %18 : vector<2x128xf32>
    %71 = arith.mulf %55, %63 : vector<2x128xf32>
    %72 = arith.addf %70, %71 : vector<2x128xf32>
    %73 = math.tanh %72 : vector<2x128xf32>
    %74 = arith.mulf %69, %73 : vector<2x128xf32>
    %75 = vector.extract_strided_slice %10 {offsets = [2, 0], sizes = [2, 512], strides = [1, 1]} : vector<16x512xf32> to vector<2x512xf32>
    %cst_30 = arith.constant dense<0.000000e+00> : vector<2x512xf32>
    %76 = tpu.matmul %46, %0, %cst_30 {dimension_numbers = #tpu.dot_dimension_numbers<[1], [0], [0], [1], [0, 0, 1, 1], [], []>} : vector<2x128xf32>, vector<128x512xf32>, vector<2x512xf32> -> vector<2x512xf32>
    %77 = arith.addf %75, %76 : vector<2x512xf32>
    %78 = vector.extract_strided_slice %77 {offsets = [0, 0], sizes = [2, 128], strides = [1, 1]} : vector<2x512xf32> to vector<2x128xf32>
    %79 = arith.negf %78 : vector<2x128xf32>
    %80 = math.exp %79 : vector<2x128xf32>
    %cst_31 = arith.constant 1.000000e+00 : f32
    %81 = vector.broadcast %cst_31 : f32 to vector<2x128xf32>
    %82 = arith.addf %81, %80 : vector<2x128xf32>
    %83 = arith.divf %81, %82 : vector<2x128xf32>
    %84 = vector.extract_strided_slice %77 {offsets = [0, 128], sizes = [2, 128], strides = [1, 1]} : vector<2x512xf32> to vector<2x128xf32>
    %85 = arith.negf %84 : vector<2x128xf32>
    %86 = math.exp %85 : vector<2x128xf32>
    %cst_32 = arith.constant 1.000000e+00 : f32
    %87 = vector.broadcast %cst_32 : f32 to vector<2x128xf32>
    %88 = arith.addf %87, %86 : vector<2x128xf32>
    %89 = arith.divf %87, %88 : vector<2x128xf32>
    %90 = vector.extract_strided_slice %77 {offsets = [0, 256], sizes = [2, 128], strides = [1, 1]} : vector<2x512xf32> to vector<2x128xf32>
    %91 = math.tanh %90 : vector<2x128xf32>
    %92 = vector.extract_strided_slice %77 {offsets = [0, 384], sizes = [2, 128], strides = [1, 1]} : vector<2x512xf32> to vector<2x128xf32>
    %93 = arith.negf %92 : vector<2x128xf32>
    %94 = math.exp %93 : vector<2x128xf32>
    %cst_33 = arith.constant 1.000000e+00 : f32
    %95 = vector.broadcast %cst_33 : f32 to vector<2x128xf32>
    %96 = arith.addf %95, %94 : vector<2x128xf32>
    %97 = arith.divf %95, %96 : vector<2x128xf32>
    %98 = arith.mulf %89, %44 : vector<2x128xf32>
    %99 = arith.mulf %83, %91 : vector<2x128xf32>
    %100 = arith.addf %98, %99 : vector<2x128xf32>
    %101 = math.tanh %100 : vector<2x128xf32>
    %102 = arith.mulf %97, %101 : vector<2x128xf32>
    %103 = tpu.concatenate %102, %74 in 1 : vector<2x128xf32>, vector<2x128xf32> -> vector<2x256xf32>
    %cst_34 = arith.constant dense<0.000000e+00> : vector<2x512xf32>
    %104 = tpu.matmul %103, %1, %cst_34 {dimension_numbers = #tpu.dot_dimension_numbers<[1], [0], [0], [1], [0, 0, 1, 1], [], []>} : vector<2x256xf32>, vector<256x512xf32>, vector<2x512xf32> -> vector<2x512xf32>
    %105 = arith.addf %104, %4 : vector<2x512xf32>
    %106 = vector.extract_strided_slice %105 {offsets = [0, 0], sizes = [2, 128], strides = [1, 1]} : vector<2x512xf32> to vector<2x128xf32>
    %107 = arith.negf %106 : vector<2x128xf32>
    %108 = math.exp %107 : vector<2x128xf32>
    %cst_35 = arith.constant 1.000000e+00 : f32
    %109 = vector.broadcast %cst_35 : f32 to vector<2x128xf32>
    %110 = arith.addf %109, %108 : vector<2x128xf32>
    %111 = arith.divf %109, %110 : vector<2x128xf32>
    %112 = vector.extract_strided_slice %105 {offsets = [0, 128], sizes = [2, 128], strides = [1, 1]} : vector<2x512xf32> to vector<2x128xf32>
    %113 = arith.negf %112 : vector<2x128xf32>
    %114 = math.exp %113 : vector<2x128xf32>
    %cst_36 = arith.constant 1.000000e+00 : f32
    %115 = vector.broadcast %cst_36 : f32 to vector<2x128xf32>
    %116 = arith.addf %115, %114 : vector<2x128xf32>
    %117 = arith.divf %115, %116 : vector<2x128xf32>
    %118 = vector.extract_strided_slice %105 {offsets = [0, 256], sizes = [2, 128], strides = [1, 1]} : vector<2x512xf32> to vector<2x128xf32>
    %119 = math.tanh %118 : vector<2x128xf32>
    %120 = vector.extract_strided_slice %105 {offsets = [0, 384], sizes = [2, 128], strides = [1, 1]} : vector<2x512xf32> to vector<2x128xf32>
    %121 = arith.negf %120 : vector<2x128xf32>
    %122 = math.exp %121 : vector<2x128xf32>
    %cst_37 = arith.constant 1.000000e+00 : f32
    %123 = vector.broadcast %cst_37 : f32 to vector<2x128xf32>
    %124 = arith.addf %123, %122 : vector<2x128xf32>
    %125 = arith.divf %123, %124 : vector<2x128xf32>
    %126 = arith.mulf %117, %72 : vector<2x128xf32>
    %127 = arith.mulf %111, %119 : vector<2x128xf32>
    %128 = arith.addf %126, %127 : vector<2x128xf32>
    %129 = math.tanh %128 : vector<2x128xf32>
    %130 = arith.mulf %125, %129 : vector<2x128xf32>
    %131 = vector.extract_strided_slice %10 {offsets = [4, 0], sizes = [2, 512], strides = [1, 1]} : vector<16x512xf32> to vector<2x512xf32>
    %cst_38 = arith.constant dense<0.000000e+00> : vector<2x512xf32>
    %132 = tpu.matmul %102, %0, %cst_38 {dimension_numbers = #tpu.dot_dimension_numbers<[1], [0], [0], [1], [0, 0, 1, 1], [], []>} : vector<2x128xf32>, vector<128x512xf32>, vector<2x512xf32> -> vector<2x512xf32>
    %133 = arith.addf %131, %132 : vector<2x512xf32>
    %134 = vector.extract_strided_slice %133 {offsets = [0, 0], sizes = [2, 128], strides = [1, 1]} : vector<2x512xf32> to vector<2x128xf32>
    %135 = arith.negf %134 : vector<2x128xf32>
    %136 = math.exp %135 : vector<2x128xf32>
    %cst_39 = arith.constant 1.000000e+00 : f32
    %137 = vector.broadcast %cst_39 : f32 to vector<2x128xf32>
    %138 = arith.addf %137, %136 : vector<2x128xf32>
    %139 = arith.divf %137, %138 : vector<2x128xf32>
    %140 = vector.extract_strided_slice %133 {offsets = [0, 128], sizes = [2, 128], strides = [1, 1]} : vector<2x512xf32> to vector<2x128xf32>
    %141 = arith.negf %140 : vector<2x128xf32>
    %142 = math.exp %141 : vector<2x128xf32>
    %cst_40 = arith.constant 1.000000e+00 : f32
    %143 = vector.broadcast %cst_40 : f32 to vector<2x128xf32>
    %144 = arith.addf %143, %142 : vector<2x128xf32>
    %145 = arith.divf %143, %144 : vector<2x128xf32>
    %146 = vector.extract_strided_slice %133 {offsets = [0, 256], sizes = [2, 128], strides = [1, 1]} : vector<2x512xf32> to vector<2x128xf32>
    %147 = math.tanh %146 : vector<2x128xf32>
    %148 = vector.extract_strided_slice %133 {offsets = [0, 384], sizes = [2, 128], strides = [1, 1]} : vector<2x512xf32> to vector<2x128xf32>
    %149 = arith.negf %148 : vector<2x128xf32>
    %150 = math.exp %149 : vector<2x128xf32>
    %cst_41 = arith.constant 1.000000e+00 : f32
    %151 = vector.broadcast %cst_41 : f32 to vector<2x128xf32>
    %152 = arith.addf %151, %150 : vector<2x128xf32>
    %153 = arith.divf %151, %152 : vector<2x128xf32>
    %154 = arith.mulf %145, %100 : vector<2x128xf32>
    %155 = arith.mulf %139, %147 : vector<2x128xf32>
    %156 = arith.addf %154, %155 : vector<2x128xf32>
    %157 = math.tanh %156 : vector<2x128xf32>
    %158 = arith.mulf %153, %157 : vector<2x128xf32>
    %159 = tpu.concatenate %158, %130 in 1 : vector<2x128xf32>, vector<2x128xf32> -> vector<2x256xf32>
    %cst_42 = arith.constant dense<0.000000e+00> : vector<2x512xf32>
    %160 = tpu.matmul %159, %1, %cst_42 {dimension_numbers = #tpu.dot_dimension_numbers<[1], [0], [0], [1], [0, 0, 1, 1], [], []>} : vector<2x256xf32>, vector<256x512xf32>, vector<2x512xf32> -> vector<2x512xf32>
    %161 = arith.addf %160, %4 : vector<2x512xf32>
    %162 = vector.extract_strided_slice %161 {offsets = [0, 0], sizes = [2, 128], strides = [1, 1]} : vector<2x512xf32> to vector<2x128xf32>
    %163 = arith.negf %162 : vector<2x128xf32>
    %164 = math.exp %163 : vector<2x128xf32>
    %cst_43 = arith.constant 1.000000e+00 : f32
    %165 = vector.broadcast %cst_43 : f32 to vector<2x128xf32>
    %166 = arith.addf %165, %164 : vector<2x128xf32>
    %167 = arith.divf %165, %166 : vector<2x128xf32>
    %168 = vector.extract_strided_slice %161 {offsets = [0, 128], sizes = [2, 128], strides = [1, 1]} : vector<2x512xf32> to vector<2x128xf32>
    %169 = arith.negf %168 : vector<2x128xf32>
    %170 = math.exp %169 : vector<2x128xf32>
    %cst_44 = arith.constant 1.000000e+00 : f32
    %171 = vector.broadcast %cst_44 : f32 to vector<2x128xf32>
    %172 = arith.addf %171, %170 : vector<2x128xf32>
    %173 = arith.divf %171, %172 : vector<2x128xf32>
    %174 = vector.extract_strided_slice %161 {offsets = [0, 256], sizes = [2, 128], strides = [1, 1]} : vector<2x512xf32> to vector<2x128xf32>
    %175 = math.tanh %174 : vector<2x128xf32>
    %176 = vector.extract_strided_slice %161 {offsets = [0, 384], sizes = [2, 128], strides = [1, 1]} : vector<2x512xf32> to vector<2x128xf32>
    %177 = arith.negf %176 : vector<2x128xf32>
    %178 = math.exp %177 : vector<2x128xf32>
    %cst_45 = arith.constant 1.000000e+00 : f32
    %179 = vector.broadcast %cst_45 : f32 to vector<2x128xf32>
    %180 = arith.addf %179, %178 : vector<2x128xf32>
    %181 = arith.divf %179, %180 : vector<2x128xf32>
    %182 = arith.mulf %173, %128 : vector<2x128xf32>
    %183 = arith.mulf %167, %175 : vector<2x128xf32>
    %184 = arith.addf %182, %183 : vector<2x128xf32>
    %185 = math.tanh %184 : vector<2x128xf32>
    %186 = arith.mulf %181, %185 : vector<2x128xf32>
    %187 = vector.extract_strided_slice %10 {offsets = [6, 0], sizes = [2, 512], strides = [1, 1]} : vector<16x512xf32> to vector<2x512xf32>
    %cst_46 = arith.constant dense<0.000000e+00> : vector<2x512xf32>
    %188 = tpu.matmul %158, %0, %cst_46 {dimension_numbers = #tpu.dot_dimension_numbers<[1], [0], [0], [1], [0, 0, 1, 1], [], []>} : vector<2x128xf32>, vector<128x512xf32>, vector<2x512xf32> -> vector<2x512xf32>
    %189 = arith.addf %187, %188 : vector<2x512xf32>
    %190 = vector.extract_strided_slice %189 {offsets = [0, 0], sizes = [2, 128], strides = [1, 1]} : vector<2x512xf32> to vector<2x128xf32>
    %191 = arith.negf %190 : vector<2x128xf32>
    %192 = math.exp %191 : vector<2x128xf32>
    %cst_47 = arith.constant 1.000000e+00 : f32
    %193 = vector.broadcast %cst_47 : f32 to vector<2x128xf32>
    %194 = arith.addf %193, %192 : vector<2x128xf32>
    %195 = arith.divf %193, %194 : vector<2x128xf32>
    %196 = vector.extract_strided_slice %189 {offsets = [0, 128], sizes = [2, 128], strides = [1, 1]} : vector<2x512xf32> to vector<2x128xf32>
    %197 = arith.negf %196 : vector<2x128xf32>
    %198 = math.exp %197 : vector<2x128xf32>
    %cst_48 = arith.constant 1.000000e+00 : f32
    %199 = vector.broadcast %cst_48 : f32 to vector<2x128xf32>
    %200 = arith.addf %199, %198 : vector<2x128xf32>
    %201 = arith.divf %199, %200 : vector<2x128xf32>
    %202 = vector.extract_strided_slice %189 {offsets = [0, 256], sizes = [2, 128], strides = [1, 1]} : vector<2x512xf32> to vector<2x128xf32>
    %203 = math.tanh %202 : vector<2x128xf32>
    %204 = vector.extract_strided_slice %189 {offsets = [0, 384], sizes = [2, 128], strides = [1, 1]} : vector<2x512xf32> to vector<2x128xf32>
    %205 = arith.negf %204 : vector<2x128xf32>
    %206 = math.exp %205 : vector<2x128xf32>
    %cst_49 = arith.constant 1.000000e+00 : f32
    %207 = vector.broadcast %cst_49 : f32 to vector<2x128xf32>
    %208 = arith.addf %207, %206 : vector<2x128xf32>
    %209 = arith.divf %207, %208 : vector<2x128xf32>
    %210 = arith.mulf %201, %156 : vector<2x128xf32>
    %211 = arith.mulf %195, %203 : vector<2x128xf32>
    %212 = arith.addf %210, %211 : vector<2x128xf32>
    %213 = math.tanh %212 : vector<2x128xf32>
    %214 = arith.mulf %209, %213 : vector<2x128xf32>
    %215 = tpu.concatenate %214, %186 in 1 : vector<2x128xf32>, vector<2x128xf32> -> vector<2x256xf32>
    %cst_50 = arith.constant dense<0.000000e+00> : vector<2x512xf32>
    %216 = tpu.matmul %215, %1, %cst_50 {dimension_numbers = #tpu.dot_dimension_numbers<[1], [0], [0], [1], [0, 0, 1, 1], [], []>} : vector<2x256xf32>, vector<256x512xf32>, vector<2x512xf32> -> vector<2x512xf32>
    %217 = arith.addf %216, %4 : vector<2x512xf32>
    %218 = vector.extract_strided_slice %217 {offsets = [0, 0], sizes = [2, 128], strides = [1, 1]} : vector<2x512xf32> to vector<2x128xf32>
    %219 = arith.negf %218 : vector<2x128xf32>
    %220 = math.exp %219 : vector<2x128xf32>
    %cst_51 = arith.constant 1.000000e+00 : f32
    %221 = vector.broadcast %cst_51 : f32 to vector<2x128xf32>
    %222 = arith.addf %221, %220 : vector<2x128xf32>
    %223 = arith.divf %221, %222 : vector<2x128xf32>
    %224 = vector.extract_strided_slice %217 {offsets = [0, 128], sizes = [2, 128], strides = [1, 1]} : vector<2x512xf32> to vector<2x128xf32>
    %225 = arith.negf %224 : vector<2x128xf32>
    %226 = math.exp %225 : vector<2x128xf32>
    %cst_52 = arith.constant 1.000000e+00 : f32
    %227 = vector.broadcast %cst_52 : f32 to vector<2x128xf32>
    %228 = arith.addf %227, %226 : vector<2x128xf32>
    %229 = arith.divf %227, %228 : vector<2x128xf32>
    %230 = vector.extract_strided_slice %217 {offsets = [0, 256], sizes = [2, 128], strides = [1, 1]} : vector<2x512xf32> to vector<2x128xf32>
    %231 = math.tanh %230 : vector<2x128xf32>
    %232 = vector.extract_strided_slice %217 {offsets = [0, 384], sizes = [2, 128], strides = [1, 1]} : vector<2x512xf32> to vector<2x128xf32>
    %233 = arith.negf %232 : vector<2x128xf32>
    %234 = math.exp %233 : vector<2x128xf32>
    %cst_53 = arith.constant 1.000000e+00 : f32
    %235 = vector.broadcast %cst_53 : f32 to vector<2x128xf32>
    %236 = arith.addf %235, %234 : vector<2x128xf32>
    %237 = arith.divf %235, %236 : vector<2x128xf32>
    %238 = arith.mulf %229, %184 : vector<2x128xf32>
    %239 = arith.mulf %223, %231 : vector<2x128xf32>
    %240 = arith.addf %238, %239 : vector<2x128xf32>
    %241 = math.tanh %240 : vector<2x128xf32>
    %242 = arith.mulf %237, %241 : vector<2x128xf32>
    %243 = vector.extract_strided_slice %10 {offsets = [8, 0], sizes = [2, 512], strides = [1, 1]} : vector<16x512xf32> to vector<2x512xf32>
    %cst_54 = arith.constant dense<0.000000e+00> : vector<2x512xf32>
    %244 = tpu.matmul %214, %0, %cst_54 {dimension_numbers = #tpu.dot_dimension_numbers<[1], [0], [0], [1], [0, 0, 1, 1], [], []>} : vector<2x128xf32>, vector<128x512xf32>, vector<2x512xf32> -> vector<2x512xf32>
    %245 = arith.addf %243, %244 : vector<2x512xf32>
    %246 = vector.extract_strided_slice %245 {offsets = [0, 0], sizes = [2, 128], strides = [1, 1]} : vector<2x512xf32> to vector<2x128xf32>
    %247 = arith.negf %246 : vector<2x128xf32>
    %248 = math.exp %247 : vector<2x128xf32>
    %cst_55 = arith.constant 1.000000e+00 : f32
    %249 = vector.broadcast %cst_55 : f32 to vector<2x128xf32>
    %250 = arith.addf %249, %248 : vector<2x128xf32>
    %251 = arith.divf %249, %250 : vector<2x128xf32>
    %252 = vector.extract_strided_slice %245 {offsets = [0, 128], sizes = [2, 128], strides = [1, 1]} : vector<2x512xf32> to vector<2x128xf32>
    %253 = arith.negf %252 : vector<2x128xf32>
    %254 = math.exp %253 : vector<2x128xf32>
    %cst_56 = arith.constant 1.000000e+00 : f32
    %255 = vector.broadcast %cst_56 : f32 to vector<2x128xf32>
    %256 = arith.addf %255, %254 : vector<2x128xf32>
    %257 = arith.divf %255, %256 : vector<2x128xf32>
    %258 = vector.extract_strided_slice %245 {offsets = [0, 256], sizes = [2, 128], strides = [1, 1]} : vector<2x512xf32> to vector<2x128xf32>
    %259 = math.tanh %258 : vector<2x128xf32>
    %260 = vector.extract_strided_slice %245 {offsets = [0, 384], sizes = [2, 128], strides = [1, 1]} : vector<2x512xf32> to vector<2x128xf32>
    %261 = arith.negf %260 : vector<2x128xf32>
    %262 = math.exp %261 : vector<2x128xf32>
    %cst_57 = arith.constant 1.000000e+00 : f32
    %263 = vector.broadcast %cst_57 : f32 to vector<2x128xf32>
    %264 = arith.addf %263, %262 : vector<2x128xf32>
    %265 = arith.divf %263, %264 : vector<2x128xf32>
    %266 = arith.mulf %257, %212 : vector<2x128xf32>
    %267 = arith.mulf %251, %259 : vector<2x128xf32>
    %268 = arith.addf %266, %267 : vector<2x128xf32>
    %269 = math.tanh %268 : vector<2x128xf32>
    %270 = arith.mulf %265, %269 : vector<2x128xf32>
    %271 = tpu.concatenate %270, %242 in 1 : vector<2x128xf32>, vector<2x128xf32> -> vector<2x256xf32>
    %cst_58 = arith.constant dense<0.000000e+00> : vector<2x512xf32>
    %272 = tpu.matmul %271, %1, %cst_58 {dimension_numbers = #tpu.dot_dimension_numbers<[1], [0], [0], [1], [0, 0, 1, 1], [], []>} : vector<2x256xf32>, vector<256x512xf32>, vector<2x512xf32> -> vector<2x512xf32>
    %273 = arith.addf %272, %4 : vector<2x512xf32>
    %274 = vector.extract_strided_slice %273 {offsets = [0, 0], sizes = [2, 128], strides = [1, 1]} : vector<2x512xf32> to vector<2x128xf32>
    %275 = arith.negf %274 : vector<2x128xf32>
    %276 = math.exp %275 : vector<2x128xf32>
    %cst_59 = arith.constant 1.000000e+00 : f32
    %277 = vector.broadcast %cst_59 : f32 to vector<2x128xf32>
    %278 = arith.addf %277, %276 : vector<2x128xf32>
    %279 = arith.divf %277, %278 : vector<2x128xf32>
    %280 = vector.extract_strided_slice %273 {offsets = [0, 128], sizes = [2, 128], strides = [1, 1]} : vector<2x512xf32> to vector<2x128xf32>
    %281 = arith.negf %280 : vector<2x128xf32>
    %282 = math.exp %281 : vector<2x128xf32>
    %cst_60 = arith.constant 1.000000e+00 : f32
    %283 = vector.broadcast %cst_60 : f32 to vector<2x128xf32>
    %284 = arith.addf %283, %282 : vector<2x128xf32>
    %285 = arith.divf %283, %284 : vector<2x128xf32>
    %286 = vector.extract_strided_slice %273 {offsets = [0, 256], sizes = [2, 128], strides = [1, 1]} : vector<2x512xf32> to vector<2x128xf32>
    %287 = math.tanh %286 : vector<2x128xf32>
    %288 = vector.extract_strided_slice %273 {offsets = [0, 384], sizes = [2, 128], strides = [1, 1]} : vector<2x512xf32> to vector<2x128xf32>
    %289 = arith.negf %288 : vector<2x128xf32>
    %290 = math.exp %289 : vector<2x128xf32>
    %cst_61 = arith.constant 1.000000e+00 : f32
    %291 = vector.broadcast %cst_61 : f32 to vector<2x128xf32>
    %292 = arith.addf %291, %290 : vector<2x128xf32>
    %293 = arith.divf %291, %292 : vector<2x128xf32>
    %294 = arith.mulf %285, %240 : vector<2x128xf32>
    %295 = arith.mulf %279, %287 : vector<2x128xf32>
    %296 = arith.addf %294, %295 : vector<2x128xf32>
    %297 = math.tanh %296 : vector<2x128xf32>
    %298 = arith.mulf %293, %297 : vector<2x128xf32>
    %299 = vector.extract_strided_slice %10 {offsets = [10, 0], sizes = [2, 512], strides = [1, 1]} : vector<16x512xf32> to vector<2x512xf32>
    %cst_62 = arith.constant dense<0.000000e+00> : vector<2x512xf32>
    %300 = tpu.matmul %270, %0, %cst_62 {dimension_numbers = #tpu.dot_dimension_numbers<[1], [0], [0], [1], [0, 0, 1, 1], [], []>} : vector<2x128xf32>, vector<128x512xf32>, vector<2x512xf32> -> vector<2x512xf32>
    %301 = arith.addf %299, %300 : vector<2x512xf32>
    %302 = vector.extract_strided_slice %301 {offsets = [0, 0], sizes = [2, 128], strides = [1, 1]} : vector<2x512xf32> to vector<2x128xf32>
    %303 = arith.negf %302 : vector<2x128xf32>
    %304 = math.exp %303 : vector<2x128xf32>
    %cst_63 = arith.constant 1.000000e+00 : f32
    %305 = vector.broadcast %cst_63 : f32 to vector<2x128xf32>
    %306 = arith.addf %305, %304 : vector<2x128xf32>
    %307 = arith.divf %305, %306 : vector<2x128xf32>
    %308 = vector.extract_strided_slice %301 {offsets = [0, 128], sizes = [2, 128], strides = [1, 1]} : vector<2x512xf32> to vector<2x128xf32>
    %309 = arith.negf %308 : vector<2x128xf32>
    %310 = math.exp %309 : vector<2x128xf32>
    %cst_64 = arith.constant 1.000000e+00 : f32
    %311 = vector.broadcast %cst_64 : f32 to vector<2x128xf32>
    %312 = arith.addf %311, %310 : vector<2x128xf32>
    %313 = arith.divf %311, %312 : vector<2x128xf32>
    %314 = vector.extract_strided_slice %301 {offsets = [0, 256], sizes = [2, 128], strides = [1, 1]} : vector<2x512xf32> to vector<2x128xf32>
    %315 = math.tanh %314 : vector<2x128xf32>
    %316 = vector.extract_strided_slice %301 {offsets = [0, 384], sizes = [2, 128], strides = [1, 1]} : vector<2x512xf32> to vector<2x128xf32>
    %317 = arith.negf %316 : vector<2x128xf32>
    %318 = math.exp %317 : vector<2x128xf32>
    %cst_65 = arith.constant 1.000000e+00 : f32
    %319 = vector.broadcast %cst_65 : f32 to vector<2x128xf32>
    %320 = arith.addf %319, %318 : vector<2x128xf32>
    %321 = arith.divf %319, %320 : vector<2x128xf32>
    %322 = arith.mulf %313, %268 : vector<2x128xf32>
    %323 = arith.mulf %307, %315 : vector<2x128xf32>
    %324 = arith.addf %322, %323 : vector<2x128xf32>
    %325 = math.tanh %324 : vector<2x128xf32>
    %326 = arith.mulf %321, %325 : vector<2x128xf32>
    %327 = tpu.concatenate %326, %298 in 1 : vector<2x128xf32>, vector<2x128xf32> -> vector<2x256xf32>
    %cst_66 = arith.constant dense<0.000000e+00> : vector<2x512xf32>
    %328 = tpu.matmul %327, %1, %cst_66 {dimension_numbers = #tpu.dot_dimension_numbers<[1], [0], [0], [1], [0, 0, 1, 1], [], []>} : vector<2x256xf32>, vector<256x512xf32>, vector<2x512xf32> -> vector<2x512xf32>
    %329 = arith.addf %328, %4 : vector<2x512xf32>
    %330 = vector.extract_strided_slice %329 {offsets = [0, 0], sizes = [2, 128], strides = [1, 1]} : vector<2x512xf32> to vector<2x128xf32>
    %331 = arith.negf %330 : vector<2x128xf32>
    %332 = math.exp %331 : vector<2x128xf32>
    %cst_67 = arith.constant 1.000000e+00 : f32
    %333 = vector.broadcast %cst_67 : f32 to vector<2x128xf32>
    %334 = arith.addf %333, %332 : vector<2x128xf32>
    %335 = arith.divf %333, %334 : vector<2x128xf32>
    %336 = vector.extract_strided_slice %329 {offsets = [0, 128], sizes = [2, 128], strides = [1, 1]} : vector<2x512xf32> to vector<2x128xf32>
    %337 = arith.negf %336 : vector<2x128xf32>
    %338 = math.exp %337 : vector<2x128xf32>
    %cst_68 = arith.constant 1.000000e+00 : f32
    %339 = vector.broadcast %cst_68 : f32 to vector<2x128xf32>
    %340 = arith.addf %339, %338 : vector<2x128xf32>
    %341 = arith.divf %339, %340 : vector<2x128xf32>
    %342 = vector.extract_strided_slice %329 {offsets = [0, 256], sizes = [2, 128], strides = [1, 1]} : vector<2x512xf32> to vector<2x128xf32>
    %343 = math.tanh %342 : vector<2x128xf32>
    %344 = vector.extract_strided_slice %329 {offsets = [0, 384], sizes = [2, 128], strides = [1, 1]} : vector<2x512xf32> to vector<2x128xf32>
    %345 = arith.negf %344 : vector<2x128xf32>
    %346 = math.exp %345 : vector<2x128xf32>
    %cst_69 = arith.constant 1.000000e+00 : f32
    %347 = vector.broadcast %cst_69 : f32 to vector<2x128xf32>
    %348 = arith.addf %347, %346 : vector<2x128xf32>
    %349 = arith.divf %347, %348 : vector<2x128xf32>
    %350 = arith.mulf %341, %296 : vector<2x128xf32>
    %351 = arith.mulf %335, %343 : vector<2x128xf32>
    %352 = arith.addf %350, %351 : vector<2x128xf32>
    %353 = math.tanh %352 : vector<2x128xf32>
    %354 = arith.mulf %349, %353 : vector<2x128xf32>
    %355 = vector.extract_strided_slice %10 {offsets = [12, 0], sizes = [2, 512], strides = [1, 1]} : vector<16x512xf32> to vector<2x512xf32>
    %cst_70 = arith.constant dense<0.000000e+00> : vector<2x512xf32>
    %356 = tpu.matmul %326, %0, %cst_70 {dimension_numbers = #tpu.dot_dimension_numbers<[1], [0], [0], [1], [0, 0, 1, 1], [], []>} : vector<2x128xf32>, vector<128x512xf32>, vector<2x512xf32> -> vector<2x512xf32>
    %357 = arith.addf %355, %356 : vector<2x512xf32>
    %358 = vector.extract_strided_slice %357 {offsets = [0, 0], sizes = [2, 128], strides = [1, 1]} : vector<2x512xf32> to vector<2x128xf32>
    %359 = arith.negf %358 : vector<2x128xf32>
    %360 = math.exp %359 : vector<2x128xf32>
    %cst_71 = arith.constant 1.000000e+00 : f32
    %361 = vector.broadcast %cst_71 : f32 to vector<2x128xf32>
    %362 = arith.addf %361, %360 : vector<2x128xf32>
    %363 = arith.divf %361, %362 : vector<2x128xf32>
    %364 = vector.extract_strided_slice %357 {offsets = [0, 128], sizes = [2, 128], strides = [1, 1]} : vector<2x512xf32> to vector<2x128xf32>
    %365 = arith.negf %364 : vector<2x128xf32>
    %366 = math.exp %365 : vector<2x128xf32>
    %cst_72 = arith.constant 1.000000e+00 : f32
    %367 = vector.broadcast %cst_72 : f32 to vector<2x128xf32>
    %368 = arith.addf %367, %366 : vector<2x128xf32>
    %369 = arith.divf %367, %368 : vector<2x128xf32>
    %370 = vector.extract_strided_slice %357 {offsets = [0, 256], sizes = [2, 128], strides = [1, 1]} : vector<2x512xf32> to vector<2x128xf32>
    %371 = math.tanh %370 : vector<2x128xf32>
    %372 = vector.extract_strided_slice %357 {offsets = [0, 384], sizes = [2, 128], strides = [1, 1]} : vector<2x512xf32> to vector<2x128xf32>
    %373 = arith.negf %372 : vector<2x128xf32>
    %374 = math.exp %373 : vector<2x128xf32>
    %cst_73 = arith.constant 1.000000e+00 : f32
    %375 = vector.broadcast %cst_73 : f32 to vector<2x128xf32>
    %376 = arith.addf %375, %374 : vector<2x128xf32>
    %377 = arith.divf %375, %376 : vector<2x128xf32>
    %378 = arith.mulf %369, %324 : vector<2x128xf32>
    %379 = arith.mulf %363, %371 : vector<2x128xf32>
    %380 = arith.addf %378, %379 : vector<2x128xf32>
    %381 = math.tanh %380 : vector<2x128xf32>
    %382 = arith.mulf %377, %381 : vector<2x128xf32>
    %383 = tpu.concatenate %382, %354 in 1 : vector<2x128xf32>, vector<2x128xf32> -> vector<2x256xf32>
    %cst_74 = arith.constant dense<0.000000e+00> : vector<2x512xf32>
    %384 = tpu.matmul %383, %1, %cst_74 {dimension_numbers = #tpu.dot_dimension_numbers<[1], [0], [0], [1], [0, 0, 1, 1], [], []>} : vector<2x256xf32>, vector<256x512xf32>, vector<2x512xf32> -> vector<2x512xf32>
    %385 = arith.addf %384, %4 : vector<2x512xf32>
    %386 = vector.extract_strided_slice %385 {offsets = [0, 0], sizes = [2, 128], strides = [1, 1]} : vector<2x512xf32> to vector<2x128xf32>
    %387 = arith.negf %386 : vector<2x128xf32>
    %388 = math.exp %387 : vector<2x128xf32>
    %cst_75 = arith.constant 1.000000e+00 : f32
    %389 = vector.broadcast %cst_75 : f32 to vector<2x128xf32>
    %390 = arith.addf %389, %388 : vector<2x128xf32>
    %391 = arith.divf %389, %390 : vector<2x128xf32>
    %392 = vector.extract_strided_slice %385 {offsets = [0, 128], sizes = [2, 128], strides = [1, 1]} : vector<2x512xf32> to vector<2x128xf32>
    %393 = arith.negf %392 : vector<2x128xf32>
    %394 = math.exp %393 : vector<2x128xf32>
    %cst_76 = arith.constant 1.000000e+00 : f32
    %395 = vector.broadcast %cst_76 : f32 to vector<2x128xf32>
    %396 = arith.addf %395, %394 : vector<2x128xf32>
    %397 = arith.divf %395, %396 : vector<2x128xf32>
    %398 = vector.extract_strided_slice %385 {offsets = [0, 256], sizes = [2, 128], strides = [1, 1]} : vector<2x512xf32> to vector<2x128xf32>
    %399 = math.tanh %398 : vector<2x128xf32>
    %400 = vector.extract_strided_slice %385 {offsets = [0, 384], sizes = [2, 128], strides = [1, 1]} : vector<2x512xf32> to vector<2x128xf32>
    %401 = arith.negf %400 : vector<2x128xf32>
    %402 = math.exp %401 : vector<2x128xf32>
    %cst_77 = arith.constant 1.000000e+00 : f32
    %403 = vector.broadcast %cst_77 : f32 to vector<2x128xf32>
    %404 = arith.addf %403, %402 : vector<2x128xf32>
    %405 = arith.divf %403, %404 : vector<2x128xf32>
    %406 = arith.mulf %397, %352 : vector<2x128xf32>
    %407 = arith.mulf %391, %399 : vector<2x128xf32>
    %408 = arith.addf %406, %407 : vector<2x128xf32>
    %409 = math.tanh %408 : vector<2x128xf32>
    %410 = arith.mulf %405, %409 : vector<2x128xf32>
    %411 = vector.extract_strided_slice %10 {offsets = [14, 0], sizes = [2, 512], strides = [1, 1]} : vector<16x512xf32> to vector<2x512xf32>
    %cst_78 = arith.constant dense<0.000000e+00> : vector<2x512xf32>
    %412 = tpu.matmul %382, %0, %cst_78 {dimension_numbers = #tpu.dot_dimension_numbers<[1], [0], [0], [1], [0, 0, 1, 1], [], []>} : vector<2x128xf32>, vector<128x512xf32>, vector<2x512xf32> -> vector<2x512xf32>
    %413 = arith.addf %411, %412 : vector<2x512xf32>
    %414 = vector.extract_strided_slice %413 {offsets = [0, 0], sizes = [2, 128], strides = [1, 1]} : vector<2x512xf32> to vector<2x128xf32>
    %415 = arith.negf %414 : vector<2x128xf32>
    %416 = math.exp %415 : vector<2x128xf32>
    %cst_79 = arith.constant 1.000000e+00 : f32
    %417 = vector.broadcast %cst_79 : f32 to vector<2x128xf32>
    %418 = arith.addf %417, %416 : vector<2x128xf32>
    %419 = arith.divf %417, %418 : vector<2x128xf32>
    %420 = vector.extract_strided_slice %413 {offsets = [0, 128], sizes = [2, 128], strides = [1, 1]} : vector<2x512xf32> to vector<2x128xf32>
    %421 = arith.negf %420 : vector<2x128xf32>
    %422 = math.exp %421 : vector<2x128xf32>
    %cst_80 = arith.constant 1.000000e+00 : f32
    %423 = vector.broadcast %cst_80 : f32 to vector<2x128xf32>
    %424 = arith.addf %423, %422 : vector<2x128xf32>
    %425 = arith.divf %423, %424 : vector<2x128xf32>
    %426 = vector.extract_strided_slice %413 {offsets = [0, 256], sizes = [2, 128], strides = [1, 1]} : vector<2x512xf32> to vector<2x128xf32>
    %427 = math.tanh %426 : vector<2x128xf32>
    %428 = vector.extract_strided_slice %413 {offsets = [0, 384], sizes = [2, 128], strides = [1, 1]} : vector<2x512xf32> to vector<2x128xf32>
    %429 = arith.negf %428 : vector<2x128xf32>
    %430 = math.exp %429 : vector<2x128xf32>
    %cst_81 = arith.constant 1.000000e+00 : f32
    %431 = vector.broadcast %cst_81 : f32 to vector<2x128xf32>
    %432 = arith.addf %431, %430 : vector<2x128xf32>
    %433 = arith.divf %431, %432 : vector<2x128xf32>
    %434 = arith.mulf %425, %380 : vector<2x128xf32>
    %435 = arith.mulf %419, %427 : vector<2x128xf32>
    %436 = arith.addf %434, %435 : vector<2x128xf32>
    %437 = math.tanh %436 : vector<2x128xf32>
    %438 = arith.mulf %433, %437 : vector<2x128xf32>
    %439 = tpu.concatenate %438, %410 in 1 : vector<2x128xf32>, vector<2x128xf32> -> vector<2x256xf32>
    %cst_82 = arith.constant dense<0.000000e+00> : vector<2x512xf32>
    %440 = tpu.matmul %439, %1, %cst_82 {dimension_numbers = #tpu.dot_dimension_numbers<[1], [0], [0], [1], [0, 0, 1, 1], [], []>} : vector<2x256xf32>, vector<256x512xf32>, vector<2x512xf32> -> vector<2x512xf32>
    %441 = arith.addf %440, %4 : vector<2x512xf32>
    %442 = vector.extract_strided_slice %441 {offsets = [0, 0], sizes = [2, 128], strides = [1, 1]} : vector<2x512xf32> to vector<2x128xf32>
    %443 = arith.negf %442 : vector<2x128xf32>
    %444 = math.exp %443 : vector<2x128xf32>
    %cst_83 = arith.constant 1.000000e+00 : f32
    %445 = vector.broadcast %cst_83 : f32 to vector<2x128xf32>
    %446 = arith.addf %445, %444 : vector<2x128xf32>
    %447 = arith.divf %445, %446 : vector<2x128xf32>
    %448 = vector.extract_strided_slice %441 {offsets = [0, 128], sizes = [2, 128], strides = [1, 1]} : vector<2x512xf32> to vector<2x128xf32>
    %449 = arith.negf %448 : vector<2x128xf32>
    %450 = math.exp %449 : vector<2x128xf32>
    %cst_84 = arith.constant 1.000000e+00 : f32
    %451 = vector.broadcast %cst_84 : f32 to vector<2x128xf32>
    %452 = arith.addf %451, %450 : vector<2x128xf32>
    %453 = arith.divf %451, %452 : vector<2x128xf32>
    %454 = vector.extract_strided_slice %441 {offsets = [0, 256], sizes = [2, 128], strides = [1, 1]} : vector<2x512xf32> to vector<2x128xf32>
    %455 = math.tanh %454 : vector<2x128xf32>
    %456 = vector.extract_strided_slice %441 {offsets = [0, 384], sizes = [2, 128], strides = [1, 1]} : vector<2x512xf32> to vector<2x128xf32>
    %457 = arith.negf %456 : vector<2x128xf32>
    %458 = math.exp %457 : vector<2x128xf32>
    %cst_85 = arith.constant 1.000000e+00 : f32
    %459 = vector.broadcast %cst_85 : f32 to vector<2x128xf32>
    %460 = arith.addf %459, %458 : vector<2x128xf32>
    %461 = arith.divf %459, %460 : vector<2x128xf32>
    %462 = arith.mulf %453, %408 : vector<2x128xf32>
    %463 = arith.mulf %447, %455 : vector<2x128xf32>
    %464 = arith.addf %462, %463 : vector<2x128xf32>
    %465 = math.tanh %464 : vector<2x128xf32>
    %466 = arith.mulf %461, %465 : vector<2x128xf32>
    %c0_86 = arith.constant 0 : index
    %c0_87 = arith.constant 0 : index
    %467 = vector.load %arg6[%c0_86, %c0_87] : memref<128x128xf32, #tpu.memory_space<vmem>>, vector<128x128xf32>
    %cst_88 = arith.constant dense<0.000000e+00> : vector<2x128xf32>
    %468 = tpu.matmul %466, %467, %cst_88 {dimension_numbers = #tpu.dot_dimension_numbers<[1], [0], [0], [1], [0, 0, 1, 1], [], []>} : vector<2x128xf32>, vector<128x128xf32>, vector<2x128xf32> -> vector<2x128xf32>
    %c0_89 = arith.constant 0 : index
    %c0_90 = arith.constant 0 : index
    %469 = vector.load %arg7[%c0_89, %c0_90] : memref<1x128xf32, #tpu.memory_space<vmem>>, vector<1x128xf32>
    %470 = vector.broadcast %469 : vector<1x128xf32> to vector<2x128xf32>
    %471 = arith.addf %468, %470 : vector<2x128xf32>
    %c0_91 = arith.constant 0 : index
    %c0_92 = arith.constant 0 : index
    %472 = vector.load %arg10[%c0_91, %c0_92] : memref<2x128xf32, #tpu.memory_space<vmem>>, vector<2x128xf32>
    tpu.vector_store %arg10[%c0_91, %c0_92], %471 {strides = array<i32>} : memref<2x128xf32, #tpu.memory_space<vmem>>, vector<2x128xf32>,
    return
  }
}

</mosaic_0001>

<llo_original>
// kernel: tpu_custom_call.1
$region0: #{tpu_custom_call.1}
  #allocation0 [shape = 'u32[]', space=smem, size = 0x4, offset = 0x4, fixed_abs, tag = 'smem constant byte address 0x4 - core index']
  #allocation1 [shape = 'u32[144,128]{1,0:T(1,128)}', space=vmem, size = 0x12000, scoped, tag = 'internal scratch']
  %s0 = inlined_call_operand.hbm [shape: f32[16,32], index: 0, kind: input, shape index: {}]
  %s1 = inlined_call_operand.hbm [shape: f32[32,512], index: 1, kind: input, shape index: {}]
  %s2 = inlined_call_operand.hbm [shape: f32[128,512], index: 2, kind: input, shape index: {}]
  %s3 = inlined_call_operand.vmem [shape: f32[1,512], index: 3, kind: input, shape index: {}]
  %s4 = inlined_call_operand.hbm [shape: f32[256,512], index: 4, kind: input, shape index: {}]
  %s5 = inlined_call_operand.vmem [shape: f32[1,512], index: 5, kind: input, shape index: {}]
  %s6 = inlined_call_operand.hbm [shape: f32[128,128], index: 6, kind: input, shape index: {}]
  %s7 = inlined_call_operand.vmem [shape: f32[1,128], index: 7, kind: input, shape index: {}]
  %s8 = inlined_call_operand.vmem [shape: f32[2,2,128], index: 8, kind: input, shape index: {}]
  %s9 = inlined_call_operand.vmem [shape: f32[2,2,128], index: 9, kind: input, shape index: {}]
  %s10 = inlined_call_operand.hbm [shape: f32[2,128], index: 10, kind: output, shape index: {}]
  %s11 = sld [smem:[#allocation0]]
  $region70: #{tpu_custom_call.1} parent=0
    _
  %s13 = ssub.s32 1, %s11
  %s14 = scalar_select 0, %s13, %s11
  $region1: #{tpu_custom_call.1} parent=0
    #allocation2 [shape = 'u8[8192]{0}', space=vmem, size = 0x2000, scoped, tag = 'input window, operand 0, single buffered']
    #allocation3 [shape = 's32[1]{0}', space=sflag, size = 0x4, scoped, tag = 'scoped memory for tpu_custom_call.1']
    #allocation4 [shape = 's32[1]{0}', space=sflag, size = 0x4, scoped, tag = 'scoped memory for tpu_custom_call.1']
    #allocation5 [shape = 'u8[65536]{0}', space=vmem, size = 0x10000, scoped, tag = 'input window, operand 1, single buffered']
    #allocation6 [shape = 's32[1]{0}', space=sflag, size = 0x4, scoped, tag = 'scoped memory for tpu_custom_call.1']
    #allocation7 [shape = 'u8[262144]{0}', space=vmem, size = 0x40000, scoped, tag = 'input window, operand 2, single buffered']
    #allocation8 [shape = 'u8[524288]{0}', space=vmem, size = 0x80000, scoped, tag = 'input window, operand 4, single buffered']
    #allocation9 [shape = 's32[1]{0}', space=sflag, size = 0x4, scoped, tag = 'scoped memory for tpu_custom_call.1']
    #allocation10 [shape = 'u8[65536]{0}', space=vmem, size = 0x10000, scoped, tag = 'input window, operand 6, single buffered']
    #allocation11 [shape = 'u8[1024]{0}', space=vmem, size = 0x400, scoped, tag = 'output window, operand 0, single buffered']
    %15 = vsyncpa [#allocation3], 0
    %16 = vsyncpa [#allocation6], 0
    %17 = vsyncpa [#allocation9], 0
    %18 = vsyncpa [#allocation4], 0
    // Predicated region
    $region2: #{tpu_custom_call.1} parent=1 // pred_check
      _
    $region3: #{tpu_custom_call.1} parent=1 // pred_check_branch
      %20 = sbr.rel (0) target = $region5
    $region4: #{tpu_custom_call.1} parent=1 // pred_region
      %s22 = ssub.s32 256, 256
      %23 = vsyncadd [#allocation3], %s22
      %s24 = sshll.u32 [#allocation2], 4
      %s25 = int_to_ptr.vmem [resolvable:$true] %s24
      %30 = dma.hbm_to_vmem [thread:$0]  %s0, 256, %s25, [#allocation3], 128, 128, 8
    $region5: #{tpu_custom_call.1} parent=1 // pred_fallthru
      _
    // Predicated region
    $region6: #{tpu_custom_call.1} parent=1 // pred_check
      _
    $region7: #{tpu_custom_call.1} parent=1 // pred_check_branch
      %32 = sbr.rel (0) target = $region9
    $region8: #{tpu_custom_call.1} parent=1 // pred_region
      %s34 = ssub.s32 2048, 2048
      %35 = vsyncadd [#allocation6], %s34
      %s36 = sshll.u32 [#allocation5], 4
      %s37 = int_to_ptr.vmem [resolvable:$true] %s36
      %42 = dma.hbm_to_vmem [thread:$0]  %s1, 2048, %s37, [#allocation6], 512, 512, 32
    $region9: #{tpu_custom_call.1} parent=1 // pred_fallthru
      _
    // Predicated region
    $region10: #{tpu_custom_call.1} parent=1 // pred_check
      _
    $region11: #{tpu_custom_call.1} parent=1 // pred_check_branch
      %44 = sbr.rel (0) target = $region13
    $region12: #{tpu_custom_call.1} parent=1 // pred_region
      %s46 = ssub.s32 8192, 8192
      %47 = vsyncadd [#allocation6], %s46
      %s48 = sshll.u32 [#allocation7], 4
      %s49 = int_to_ptr.vmem [resolvable:$true] %s48
      %54 = dma.hbm_to_vmem [thread:$0]  %s2, 8192, %s49, [#allocation6], 512, 512, 32
    $region13: #{tpu_custom_call.1} parent=1 // pred_fallthru
      _
    // Predicated region
    $region14: #{tpu_custom_call.1} parent=1 // pred_check
      _
    $region15: #{tpu_custom_call.1} parent=1 // pred_check_branch
      %56 = sbr.rel (0) target = $region17
    $region16: #{tpu_custom_call.1} parent=1 // pred_region
      _
    $region17: #{tpu_custom_call.1} parent=1 // pred_fallthru
      _
    // Predicated region
    $region18: #{tpu_custom_call.1} parent=1 // pred_check
      _
    $region19: #{tpu_custom_call.1} parent=1 // pred_check_branch
      %58 = sbr.rel (0) target = $region21
    $region20: #{tpu_custom_call.1} parent=1 // pred_region
      %s60 = ssub.s32 16384, 16384
      %61 = vsyncadd [#allocation9], %s60
      %s62 = sshll.u32 [#allocation8], 4
      %s63 = int_to_ptr.vmem [resolvable:$true] %s62
      %68 = dma.hbm_to_vmem [thread:$0]  %s4, 16384, %s63, [#allocation9], 512, 512, 32
    $region21: #{tpu_custom_call.1} parent=1 // pred_fallthru
      _
    // Predicated region
    $region22: #{tpu_custom_call.1} parent=1 // pred_check
      _
    $region23: #{tpu_custom_call.1} parent=1 // pred_check_branch
      %70 = sbr.rel (0) target = $region25
    $region24: #{tpu_custom_call.1} parent=1 // pred_region
      _
    $region25: #{tpu_custom_call.1} parent=1 // pred_fallthru
      _
    // Predicated region
    $region26: #{tpu_custom_call.1} parent=1 // pred_check
      _
    $region27: #{tpu_custom_call.1} parent=1 // pred_check_branch
      %72 = sbr.rel (0) target = $region29
    $region28: #{tpu_custom_call.1} parent=1 // pred_region
      %s74 = ssub.s32 2048, 2048
      %75 = vsyncadd [#allocation9], %s74
      %s76 = sshll.u32 [#allocation10], 4
      %s77 = int_to_ptr.vmem [resolvable:$true] %s76
      %82 = dma.hbm_to_vmem [thread:$0]  %s6, 2048, %s77, [#allocation9], 128, 128, 8
    $region29: #{tpu_custom_call.1} parent=1 // pred_fallthru
      _
    // Predicated region
    $region30: #{tpu_custom_call.1} parent=1 // pred_check
      _
    $region31: #{tpu_custom_call.1} parent=1 // pred_check_branch
      %84 = sbr.rel (0) target = $region33
    $region32: #{tpu_custom_call.1} parent=1 // pred_region
      _
    $region33: #{tpu_custom_call.1} parent=1 // pred_fallthru
      _
    // Predicated region
    $region34: #{tpu_custom_call.1} parent=1 // pred_check
      _
    $region35: #{tpu_custom_call.1} parent=1 // pred_check_branch
      %86 = sbr.rel (0) target = $region37
    $region36: #{tpu_custom_call.1} parent=1 // pred_region
      _
    $region37: #{tpu_custom_call.1} parent=1 // pred_fallthru
      _
    // Predicated region
    $region38: #{tpu_custom_call.1} parent=1 // pred_check
      _
    $region39: #{tpu_custom_call.1} parent=1 // pred_check_branch
      %88 = sbr.rel (0) target = $region41
    $region40: #{tpu_custom_call.1} parent=1 // pred_region
      _
    $region41: #{tpu_custom_call.1} parent=1 // pred_fallthru
      _
    // Predicated region
    $region42: #{tpu_custom_call.1} parent=1 // pred_check
      _
    $region43: #{tpu_custom_call.1} parent=1 // pred_check_branch
      %90 = sbr.rel (0) target = $region45
    $region44: #{tpu_custom_call.1} parent=1 // pred_region
      %91 = dma.done [#allocation3], 256
    $region45: #{tpu_custom_call.1} parent=1 // pred_fallthru
      _
    // Predicated region
    $region46: #{tpu_custom_call.1} parent=1 // pred_check
      _
    $region47: #{tpu_custom_call.1} parent=1 // pred_check_branch
      %93 = sbr.rel (0) target = $region49
    $region48: #{tpu_custom_call.1} parent=1 // pred_region
      %94 = dma.done [#allocation6], 2048
    $region49: #{tpu_custom_call.1} parent=1 // pred_fallthru
      _
    // Predicated region
    $region50: #{tpu_custom_call.1} parent=1 // pred_check
      _
    $region51: #{tpu_custom_call.1} parent=1 // pred_check_branch
      %96 = sbr.rel (0) target = $region53
    $region52: #{tpu_custom_call.1} parent=1 // pred_region
      %97 = dma.done [#allocation6], 8192
    $region53: #{tpu_custom_call.1} parent=1 // pred_fallthru
      _
    // Predicated region
    $region54: #{tpu_custom_call.1} parent=1 // pred_check
      _
    $region55: #{tpu_custom_call.1} parent=1 // pred_check_branch
      %99 = sbr.rel (0) target = $region57
    $region56: #{tpu_custom_call.1} parent=1 // pred_region
      %100 = dma.done [#allocation9], 16384
    $region57: #{tpu_custom_call.1} parent=1 // pred_fallthru
      _
    // Predicated region
    $region58: #{tpu_custom_call.1} parent=1 // pred_check
      _
    $region59: #{tpu_custom_call.1} parent=1 // pred_check_branch
      %102 = sbr.rel (0) target = $region61
    $region60: #{tpu_custom_call.1} parent=1 // pred_region
      %103 = dma.done [#allocation9], 2048
    $region61: #{tpu_custom_call.1} parent=1 // pred_fallthru
      _
    %v104 = vld [vmem:[#allocation7] sm:$0xff]
    %v105 = vld [vmem:[#allocation7 + $0x8] sm:$0xff]
    %v106 = vld [vmem:[#allocation7 + $0x10] sm:$0xff]
    %v107 = vld [vmem:[#allocation7 + $0x18] sm:$0xff]
    %v108 = vld [vmem:[#allocation7 + $0x20] sm:$0xff]
    %v109 = vld [vmem:[#allocation7 + $0x28] sm:$0xff]
    %v110 = vld [vmem:[#allocation7 + $0x30] sm:$0xff]
    %v111 = vld [vmem:[#allocation7 + $0x38] sm:$0xff]
    %v112 = vld [vmem:[#allocation7 + $0x40] sm:$0xff]
    %v113 = vld [vmem:[#allocation7 + $0x48] sm:$0xff]
    %v114 = vld [vmem:[#allocation7 + $0x50] sm:$0xff]
    %v115 = vld [vmem:[#allocation7 + $0x58] sm:$0xff]
    %v116 = vld [vmem:[#allocation7 + $0x60] sm:$0xff]
    %v117 = vld [vmem:[#allocation7 + $0x68] sm:$0xff]
    %v118 = vld [vmem:[#allocation7 + $0x70] sm:$0xff]
    %v119 = vld [vmem:[#allocation7 + $0x78] sm:$0xff]
    %v120 = vld [vmem:[#allocation7 + $0x80] sm:$0xff]
    %v121 = vld [vmem:[#allocation7 + $0x88] sm:$0xff]
    %v122 = vld [vmem:[#allocation7 + $0x90] sm:$0xff]
    %v123 = vld [vmem:[#allocation7 + $0x98] sm:$0xff]
    %v124 = vld [vmem:[#allocation7 + $0xa0] sm:$0xff]
    %v125 = vld [vmem:[#allocation7 + $0xa8] sm:$0xff]
    %v126 = vld [vmem:[#allocation7 + $0xb0] sm:$0xff]
    %v127 = vld [vmem:[#allocation7 + $0xb8] sm:$0xff]
    %v128 = vld [vmem:[#allocation7 + $0xc0] sm:$0xff]
    %v129 = vld [vmem:[#allocation7 + $0xc8] sm:$0xff]
    %v130 = vld [vmem:[#allocation7 + $0xd0] sm:$0xff]
    %v131 = vld [vmem:[#allocation7 + $0xd8] sm:$0xff]
    %v132 = vld [vmem:[#allocation7 + $0xe0] sm:$0xff]
    %v133 = vld [vmem:[#allocation7 + $0xe8] sm:$0xff]
    %v134 = vld [vmem:[#allocation7 + $0xf0] sm:$0xff]
    %v135 = vld [vmem:[#allocation7 + $0xf8] sm:$0xff]
    %v136 = vld [vmem:[#allocation7 + $0x100] sm:$0xff]
    %v137 = vld [vmem:[#allocation7 + $0x108] sm:$0xff]
    %v138 = vld [vmem:[#allocation7 + $0x110] sm:$0xff]
    %v139 = vld [vmem:[#allocation7 + $0x118] sm:$0xff]
    %v140 = vld [vmem:[#allocation7 + $0x120] sm:$0xff]
    %v141 = vld [vmem:[#allocation7 + $0x128] sm:$0xff]
    %v142 = vld [vmem:[#allocation7 + $0x130] sm:$0xff]
    %v143 = vld [vmem:[#allocation7 + $0x138] sm:$0xff]
    %v144 = vld [vmem:[#allocation7 + $0x140] sm:$0xff]
    %v145 = vld [vmem:[#allocation7 + $0x148] sm:$0xff]
    %v146 = vld [vmem:[#allocation7 + $0x150] sm:$0xff]
    %v147 = vld [vmem:[#allocation7 + $0x158] sm:$0xff]
    %v148 = vld [vmem:[#allocation7 + $0x160] sm:$0xff]
    %v149 = vld [vmem:[#allocation7 + $0x168] sm:$0xff]
    %v150 = vld [vmem:[#allocation7 + $0x170] sm:$0xff]
    %v151 = vld [vmem:[#allocation7 + $0x178] sm:$0xff]
    %v152 = vld [vmem:[#allocation7 + $0x180] sm:$0xff]
    %v153 = vld [vmem:[#allocation7 + $0x188] sm:$0xff]
    %v154 = vld [vmem:[#allocation7 + $0x190] sm:$0xff]
    %v155 = vld [vmem:[#allocation7 + $0x198] sm:$0xff]
    %v156 = vld [vmem:[#allocation7 + $0x1a0] sm:$0xff]
    %v157 = vld [vmem:[#allocation7 + $0x1a8] sm:$0xff]
    %v158 = vld [vmem:[#allocation7 + $0x1b0] sm:$0xff]
    %v159 = vld [vmem:[#allocation7 + $0x1b8] sm:$0xff]
    %v160 = vld [vmem:[#allocation7 + $0x1c0] sm:$0xff]
    %v161 = vld [vmem:[#allocation7 + $0x1c8] sm:$0xff]
    %v162 = vld [vmem:[#allocation7 + $0x1d0] sm:$0xff]
    %v163 = vld [vmem:[#allocation7 + $0x1d8] sm:$0xff]
    %v164 = vld [vmem:[#allocation7 + $0x1e0] sm:$0xff]
    %v165 = vld [vmem:[#allocation7 + $0x1e8] sm:$0xff]
    %v166 = vld [vmem:[#allocation7 + $0x1f0] sm:$0xff]
    %v167 = vld [vmem:[#allocation7 + $0x1f8] sm:$0xff]
    %v168 = vld [vmem:[#allocation8] sm:$0xff]
    %v169 = vld [vmem:[#allocation8 + $0x8] sm:$0xff]
    %v170 = vld [vmem:[#allocation8 + $0x10] sm:$0xff]
    %v171 = vld [vmem:[#allocation8 + $0x18] sm:$0xff]
    %v172 = vld [vmem:[#allocation8 + $0x20] sm:$0xff]
    %v173 = vld [vmem:[#allocation8 + $0x28] sm:$0xff]
    %v174 = vld [vmem:[#allocation8 + $0x30] sm:$0xff]
    %v175 = vld [vmem:[#allocation8 + $0x38] sm:$0xff]
    %v176 = vld [vmem:[#allocation8 + $0x40] sm:$0xff]
    %v177 = vld [vmem:[#allocation8 + $0x48] sm:$0xff]
    %v178 = vld [vmem:[#allocation8 + $0x50] sm:$0xff]
    %v179 = vld [vmem:[#allocation8 + $0x58] sm:$0xff]
    %v180 = vld [vmem:[#allocation8 + $0x60] sm:$0xff]
    %v181 = vld [vmem:[#allocation8 + $0x68] sm:$0xff]
    %v182 = vld [vmem:[#allocation8 + $0x70] sm:$0xff]
    %v183 = vld [vmem:[#allocation8 + $0x78] sm:$0xff]
    %v184 = vld [vmem:[#allocation8 + $0x80] sm:$0xff]
    %v185 = vld [vmem:[#allocation8 + $0x88] sm:$0xff]
    %v186 = vld [vmem:[#allocation8 + $0x90] sm:$0xff]
    %v187 = vld [vmem:[#allocation8 + $0x98] sm:$0xff]
    %v188 = vld [vmem:[#allocation8 + $0xa0] sm:$0xff]
    %v189 = vld [vmem:[#allocation8 + $0xa8] sm:$0xff]
    %v190 = vld [vmem:[#allocation8 + $0xb0] sm:$0xff]
    %v191 = vld [vmem:[#allocation8 + $0xb8] sm:$0xff]
    %v192 = vld [vmem:[#allocation8 + $0xc0] sm:$0xff]
    %v193 = vld [vmem:[#allocation8 + $0xc8] sm:$0xff]
    %v194 = vld [vmem:[#allocation8 + $0xd0] sm:$0xff]
    %v195 = vld [vmem:[#allocation8 + $0xd8] sm:$0xff]
    %v196 = vld [vmem:[#allocation8 + $0xe0] sm:$0xff]
    %v197 = vld [vmem:[#allocation8 + $0xe8] sm:$0xff]
    %v198 = vld [vmem:[#allocation8 + $0xf0] sm:$0xff]
    %v199 = vld [vmem:[#allocation8 + $0xf8] sm:$0xff]
    %v200 = vld [vmem:[#allocation8 + $0x100] sm:$0xff]
    %v201 = vld [vmem:[#allocation8 + $0x108] sm:$0xff]
    %v202 = vld [vmem:[#allocation8 + $0x110] sm:$0xff]
    %v203 = vld [vmem:[#allocation8 + $0x118] sm:$0xff]
    %v204 = vld [vmem:[#allocation8 + $0x120] sm:$0xff]
    %v205 = vld [vmem:[#allocation8 + $0x128] sm:$0xff]
    %v206 = vld [vmem:[#allocation8 + $0x130] sm:$0xff]
    %v207 = vld [vmem:[#allocation8 + $0x138] sm:$0xff]
    %v208 = vld [vmem:[#allocation8 + $0x140] sm:$0xff]
    %v209 = vld [vmem:[#allocation8 + $0x148] sm:$0xff]
    %v210 = vld [vmem:[#allocation8 + $0x150] sm:$0xff]
    %v211 = vld [vmem:[#allocation8 + $0x158] sm:$0xff]
    %v212 = vld [vmem:[#allocation8 + $0x160] sm:$0xff]
    %v213 = vld [vmem:[#allocation8 + $0x168] sm:$0xff]
    %v214 = vld [vmem:[#allocation8 + $0x170] sm:$0xff]
    %v215 = vld [vmem:[#allocation8 + $0x178] sm:$0xff]
    %v216 = vld [vmem:[#allocation8 + $0x180] sm:$0xff]
    %v217 = vld [vmem:[#allocation8 + $0x188] sm:$0xff]
    %v218 = vld [vmem:[#allocation8 + $0x190] sm:$0xff]
    %v219 = vld [vmem:[#allocation8 + $0x198] sm:$0xff]
    %v220 = vld [vmem:[#allocation8 + $0x1a0] sm:$0xff]
    %v221 = vld [vmem:[#allocation8 + $0x1a8] sm:$0xff]
    %v222 = vld [vmem:[#allocation8 + $0x1b0] sm:$0xff]
    %v223 = vld [vmem:[#allocation8 + $0x1b8] sm:$0xff]
    %v224 = vld [vmem:[#allocation8 + $0x1c0] sm:$0xff]
    %v225 = vld [vmem:[#allocation8 + $0x1c8] sm:$0xff]
    %v226 = vld [vmem:[#allocation8 + $0x1d0] sm:$0xff]
    %v227 = vld [vmem:[#allocation8 + $0x1d8] sm:$0xff]
    %v228 = vld [vmem:[#allocation8 + $0x1e0] sm:$0xff]
    %v229 = vld [vmem:[#allocation8 + $0x1e8] sm:$0xff]
    %v230 = vld [vmem:[#allocation8 + $0x1f0] sm:$0xff]
    %v231 = vld [vmem:[#allocation8 + $0x1f8] sm:$0xff]
    %v232 = vld [vmem:[#allocation8 + $0x200] sm:$0xff]
    %v233 = vld [vmem:[#allocation8 + $0x208] sm:$0xff]
    %v234 = vld [vmem:[#allocation8 + $0x210] sm:$0xff]
    %v235 = vld [vmem:[#allocation8 + $0x218] sm:$0xff]
    %v236 = vld [vmem:[#allocation8 + $0x220] sm:$0xff]
    %v237 = vld [vmem:[#allocation8 + $0x228] sm:$0xff]
    %v238 = vld [vmem:[#allocation8 + $0x230] sm:$0xff]
    %v239 = vld [vmem:[#allocation8 + $0x238] sm:$0xff]
    %v240 = vld [vmem:[#allocation8 + $0x240] sm:$0xff]
    %v241 = vld [vmem:[#allocation8 + $0x248] sm:$0xff]
    %v242 = vld [vmem:[#allocation8 + $0x250] sm:$0xff]
    %v243 = vld [vmem:[#allocation8 + $0x258] sm:$0xff]
    %v244 = vld [vmem:[#allocation8 + $0x260] sm:$0xff]
    %v245 = vld [vmem:[#allocation8 + $0x268] sm:$0xff]
    %v246 = vld [vmem:[#allocation8 + $0x270] sm:$0xff]
    %v247 = vld [vmem:[#allocation8 + $0x278] sm:$0xff]
    %v248 = vld [vmem:[#allocation8 + $0x280] sm:$0xff]
    %v249 = vld [vmem:[#allocation8 + $0x288] sm:$0xff]
    %v250 = vld [vmem:[#allocation8 + $0x290] sm:$0xff]
    %v251 = vld [vmem:[#allocation8 + $0x298] sm:$0xff]
    %v252 = vld [vmem:[#allocation8 + $0x2a0] sm:$0xff]
    %v253 = vld [vmem:[#allocation8 + $0x2a8] sm:$0xff]
    %v254 = vld [vmem:[#allocation8 + $0x2b0] sm:$0xff]
    %v255 = vld [vmem:[#allocation8 + $0x2b8] sm:$0xff]
    %v256 = vld [vmem:[#allocation8 + $0x2c0] sm:$0xff]
    %v257 = vld [vmem:[#allocation8 + $0x2c8] sm:$0xff]
    %v258 = vld [vmem:[#allocation8 + $0x2d0] sm:$0xff]
    %v259 = vld [vmem:[#allocation8 + $0x2d8] sm:$0xff]
    %v260 = vld [vmem:[#allocation8 + $0x2e0] sm:$0xff]
    %v261 = vld [vmem:[#allocation8 + $0x2e8] sm:$0xff]
    %v262 = vld [vmem:[#allocation8 + $0x2f0] sm:$0xff]
    %v263 = vld [vmem:[#allocation8 + $0x2f8] sm:$0xff]
    %v264 = vld [vmem:[#allocation8 + $0x300] sm:$0xff]
    %v265 = vld [vmem:[#allocation8 + $0x308] sm:$0xff]
    %v266 = vld [vmem:[#allocation8 + $0x310] sm:$0xff]
    %v267 = vld [vmem:[#allocation8 + $0x318] sm:$0xff]
    %v268 = vld [vmem:[#allocation8 + $0x320] sm:$0xff]
    %v269 = vld [vmem:[#allocation8 + $0x328] sm:$0xff]
    %v270 = vld [vmem:[#allocation8 + $0x330] sm:$0xff]
    %v271 = vld [vmem:[#allocation8 + $0x338] sm:$0xff]
    %v272 = vld [vmem:[#allocation8 + $0x340] sm:$0xff]
    %v273 = vld [vmem:[#allocation8 + $0x348] sm:$0xff]
    %v274 = vld [vmem:[#allocation8 + $0x350] sm:$0xff]
    %v275 = vld [vmem:[#allocation8 + $0x358] sm:$0xff]
    %v276 = vld [vmem:[#allocation8 + $0x360] sm:$0xff]
    %v277 = vld [vmem:[#allocation8 + $0x368] sm:$0xff]
    %v278 = vld [vmem:[#allocation8 + $0x370] sm:$0xff]
    %v279 = vld [vmem:[#allocation8 + $0x378] sm:$0xff]
    %v280 = vld [vmem:[#allocation8 + $0x380] sm:$0xff]
    %v281 = vld [vmem:[#allocation8 + $0x388] sm:$0xff]
    %v282 = vld [vmem:[#allocation8 + $0x390] sm:$0xff]
    %v283 = vld [vmem:[#allocation8 + $0x398] sm:$0xff]
    %v284 = vld [vmem:[#allocation8 + $0x3a0] sm:$0xff]
    %v285 = vld [vmem:[#allocation8 + $0x3a8] sm:$0xff]
    %v286 = vld [vmem:[#allocation8 + $0x3b0] sm:$0xff]
    %v287 = vld [vmem:[#allocation8 + $0x3b8] sm:$0xff]
    %v288 = vld [vmem:[#allocation8 + $0x3c0] sm:$0xff]
    %v289 = vld [vmem:[#allocation8 + $0x3c8] sm:$0xff]
    %v290 = vld [vmem:[#allocation8 + $0x3d0] sm:$0xff]
    %v291 = vld [vmem:[#allocation8 + $0x3d8] sm:$0xff]
    %v292 = vld [vmem:[#allocation8 + $0x3e0] sm:$0xff]
    %v293 = vld [vmem:[#allocation8 + $0x3e8] sm:$0xff]
    %v294 = vld [vmem:[#allocation8 + $0x3f0] sm:$0xff]
    %v295 = vld [vmem:[#allocation8 + $0x3f8] sm:$0xff]
    %v296 = vld [vmem:[%s5] sm:$0xf]
    %v298 = vlaneseq
    %v299 = vshrl.u32 %v298, 7
    %v300 = vsub.s32 0, %v299
    %v301 = vrot.slane %v296, %v300
    %v302 = vlaneseq
    %v303 = vshrl.u32 %v302, 7
    %v304 = vsub.s32 1, %v303
    %v305 = vrot.slane %v296, %v304
    %v306 = vlaneseq
    %v307 = vshrl.u32 %v306, 7
    %v308 = vsub.s32 2, %v307
    %v309 = vrot.slane %v296, %v308
    %v310 = vlaneseq
    %v311 = vshrl.u32 %v310, 7
    %v312 = vsub.s32 3, %v311
    %v313 = vrot.slane %v296, %v312
    %v318 = vld [vmem:[#allocation2] sm:$0xff]
    %v319 = vld [vmem:[#allocation2 + $0x8] sm:$0xff]
    %v320 = vld [vmem:[#allocation5] sm:$0xff]
    %v321 = vld [vmem:[#allocation5 + $0x8] sm:$0xff]
    %v322 = vld [vmem:[#allocation5 + $0x10] sm:$0xff]
    %v323 = vld [vmem:[#allocation5 + $0x18] sm:$0xff]
    %v324 = vld [vmem:[#allocation5 + $0x20] sm:$0xff]
    %v325 = vld [vmem:[#allocation5 + $0x28] sm:$0xff]
    %v326 = vld [vmem:[#allocation5 + $0x30] sm:$0xff]
    %v327 = vld [vmem:[#allocation5 + $0x38] sm:$0xff]
    %v328 = vld [vmem:[#allocation5 + $0x40] sm:$0xff]
    %v329 = vld [vmem:[#allocation5 + $0x48] sm:$0xff]
    %v330 = vld [vmem:[#allocation5 + $0x50] sm:$0xff]
    %v331 = vld [vmem:[#allocation5 + $0x58] sm:$0xff]
    %v332 = vld [vmem:[#allocation5 + $0x60] sm:$0xff]
    %v333 = vld [vmem:[#allocation5 + $0x68] sm:$0xff]
    %v334 = vld [vmem:[#allocation5 + $0x70] sm:$0xff]
    %v335 = vld [vmem:[#allocation5 + $0x78] sm:$0xff]
    %v336 = vld [vmem:[%s3] sm:$0xf]
    %v338 = vlaneseq
    %v339 = vshrl.u32 %v338, 7
    %v340 = vsub.s32 0, %v339
    %v341 = vrot.slane %v336, %v340
    %v342 = vlaneseq
    %v343 = vshrl.u32 %v342, 7
    %v344 = vsub.s32 1, %v343
    %v345 = vrot.slane %v336, %v344
    %v346 = vlaneseq
    %v347 = vshrl.u32 %v346, 7
    %v348 = vsub.s32 2, %v347
    %v349 = vrot.slane %v336, %v348
    %v350 = vlaneseq
    %v351 = vshrl.u32 %v350, 7
    %v352 = vsub.s32 3, %v351
    %v353 = vrot.slane %v336, %v352
    %vm358 = vcmask 261120
    %v360 = vsel %vm358, %v318, 0
    %v363 = vsel %vm358, %v319, 0
    %365 = vmatprep.subr.mxu0 %v321
    %366 = vmatpush1.msra.mxu0 %v320
    %367 = vmatprep.subr.mxu0 %v325
    %368 = vmatpush1.msra.mxu0 %v324
    %369 = vmatprep.subr.mxu0 %v329
    %370 = vmatpush1.msra.mxu0 %v328
    %371 = vmatprep.subr.mxu0 %v333
    %372 = vmatpush1.msra.mxu0 %v332
    %373 = vmatprep.subr.mxu0 0.0
    %374 = vmatpush1.msra.mxu0 0.0
    %375 = vmatprep.subr.mxu0 0.0
    %376 = vmatpush1.msra.mxu0 0.0
    %377 = vmatprep.subr.mxu0 0.0
    %378 = vmatpush1.msra.mxu0 0.0
    %379 = vmatprep.subr.mxu0 0.0
    %380 = vmatpush1.msra.mxu0 0.0
    %381 = vmatprep.subr.mxu0 0.0
    %382 = vmatpush1.msra.mxu0 0.0
    %383 = vmatprep.subr.mxu0 0.0
    %384 = vmatpush1.msra.mxu0 0.0
    %385 = vmatprep.subr.mxu0 0.0
    %386 = vmatpush1.msra.mxu0 0.0
    %387 = vmatprep.subr.mxu0 0.0
    %388 = vmatpush1.msra.mxu0 0.0
    %389 = vmatprep.subr.mxu0 0.0
    %390 = vmatpush1.msra.mxu0 0.0
    %391 = vmatprep.subr.mxu0 0.0
    %392 = vmatpush1.msra.mxu0 0.0
    %393 = vmatprep.subr.mxu0 0.0
    %394 = vmatpush1.msra.mxu0 0.0
    %395 = vmatprep.subr.mxu0 0.0
    %396 = vmatpush1.msra.mxu0 0.0
    %397 = vmatprep.subr.mxu0 0.0
    %398 = vmatpush1.msra.mxu0 0.0
    %399 = vmatprep.subr.mxu0 0.0
    %400 = vmatpush1.msra.mxu0 0.0
    %401 = vmatprep.subr.mxu0 0.0
    %402 = vmatpush1.msra.mxu0 0.0
    %403 = vmatprep.subr.mxu0 0.0
    %404 = vmatpush1.msra.mxu0 0.0
    %405 = vmatprep.subr.mxu0 0.0
    %406 = vmatpush1.msra.mxu0 0.0
    %407 = vmatprep.subr.mxu0 0.0
    %408 = vmatpush1.msra.mxu0 0.0
    %409 = vmatprep.subr.mxu0 0.0
    %410 = vmatpush1.msra.mxu0 0.0
    %411 = vmatprep.subr.mxu0 0.0
    %412 = vmatpush1.msra.mxu0 0.0
    %413 = vmatprep.subr.mxu0 0.0
    %414 = vmatpush1.msra.mxu0 0.0
    %415 = vmatprep.subr.mxu0 0.0
    %416 = vmatpush1.msra.mxu0 0.0
    %417 = vmatprep.subr.mxu0 0.0
    %418 = vmatpush1.msra.mxu0 0.0
    %419 = vmatprep.subr.mxu0 0.0
    %420 = vmatpush1.msra.mxu0 0.0
    %421 = vmatprep.subr.mxu0 0.0
    %422 = vmatpush1.msra.mxu0 0.0
    %423 = vmatprep.subr.mxu0 0.0
    %424 = vmatpush1.msra.mxu0 0.0
    %425 = vmatprep.subr.mxu0 0.0
    %426 = vmatpush1.msra.mxu0 0.0
    %427 = vmatprep.subr.mxu0 0.0
    %428 = vmatpush1.msra.mxu0 0.0
    %429 = vmatprep.mubr.f32.mxu0 0.0
    %430 = vmatmul.mubr.f32.gmra.mrb[0].mxu0 %v360
    %v431 = vpop.f32.mrb[0].mxu0
    %v432 = vadd.f32 %v341, %v431
    %v433 = vpop.f32.mrb[0].mxu0
    %v434 = vadd.f32 %v345, %v433
    %435 = vmatprep.mubr.f32.mxu0 0.0
    %436 = vmatmul.mubr.f32.gmra.mrb[0].mxu0 %v363
    %v437 = vpop.f32.mrb[0].mxu0
    %v438 = vadd.f32 %v341, %v437
    %v439 = vpop.f32.mrb[0].mxu0
    %v440 = vadd.f32 %v345, %v439
    %441 = vdwg.mxu0
    %442 = vmatprep.subr.mxu0 %v323
    %443 = vmatpush1.msra.mxu0 %v322
    %444 = vmatprep.subr.mxu0 %v327
    %445 = vmatpush1.msra.mxu0 %v326
    %446 = vmatprep.subr.mxu0 %v331
    %447 = vmatpush1.msra.mxu0 %v330
    %448 = vmatprep.subr.mxu0 %v335
    %449 = vmatpush1.msra.mxu0 %v334
    %450 = vmatprep.subr.mxu0 0.0
    %451 = vmatpush1.msra.mxu0 0.0
    %452 = vmatprep.subr.mxu0 0.0
    %453 = vmatpush1.msra.mxu0 0.0
    %454 = vmatprep.subr.mxu0 0.0
    %455 = vmatpush1.msra.mxu0 0.0
    %456 = vmatprep.subr.mxu0 0.0
    %457 = vmatpush1.msra.mxu0 0.0
    %458 = vmatprep.subr.mxu0 0.0
    %459 = vmatpush1.msra.mxu0 0.0
    %460 = vmatprep.subr.mxu0 0.0
    %461 = vmatpush1.msra.mxu0 0.0
    %462 = vmatprep.subr.mxu0 0.0
    %463 = vmatpush1.msra.mxu0 0.0
    %464 = vmatprep.subr.mxu0 0.0
    %465 = vmatpush1.msra.mxu0 0.0
    %466 = vmatprep.subr.mxu0 0.0
    %467 = vmatpush1.msra.mxu0 0.0
    %468 = vmatprep.subr.mxu0 0.0
    %469 = vmatpush1.msra.mxu0 0.0
    %470 = vmatprep.subr.mxu0 0.0
    %471 = vmatpush1.msra.mxu0 0.0
    %472 = vmatprep.subr.mxu0 0.0
    %473 = vmatpush1.msra.mxu0 0.0
    %474 = vmatprep.subr.mxu0 0.0
    %475 = vmatpush1.msra.mxu0 0.0
    %476 = vmatprep.subr.mxu0 0.0
    %477 = vmatpush1.msra.mxu0 0.0
    %478 = vmatprep.subr.mxu0 0.0
    %479 = vmatpush1.msra.mxu0 0.0
    %480 = vmatprep.subr.mxu0 0.0
    %481 = vmatpush1.msra.mxu0 0.0
    %482 = vmatprep.subr.mxu0 0.0
    %483 = vmatpush1.msra.mxu0 0.0
    %484 = vmatprep.subr.mxu0 0.0
    %485 = vmatpush1.msra.mxu0 0.0
    %486 = vmatprep.subr.mxu0 0.0
    %487 = vmatpush1.msra.mxu0 0.0
    %488 = vmatprep.subr.mxu0 0.0
    %489 = vmatpush1.msra.mxu0 0.0
    %490 = vmatprep.subr.mxu0 0.0
    %491 = vmatpush1.msra.mxu0 0.0
    %492 = vmatprep.subr.mxu0 0.0
    %493 = vmatpush1.msra.mxu0 0.0
    %494 = vmatprep.subr.mxu0 0.0
    %495 = vmatpush1.msra.mxu0 0.0
    %496 = vmatprep.subr.mxu0 0.0
    %497 = vmatpush1.msra.mxu0 0.0
    %498 = vmatprep.subr.mxu0 0.0
    %499 = vmatpush1.msra.mxu0 0.0
    %500 = vmatprep.subr.mxu0 0.0
    %501 = vmatpush1.msra.mxu0 0.0
    %502 = vmatprep.subr.mxu0 0.0
    %503 = vmatpush1.msra.mxu0 0.0
    %504 = vmatprep.subr.mxu0 0.0
    %505 = vmatpush1.msra.mxu0 0.0
    %506 = vmatprep.mubr.f32.mxu0 0.0
    %507 = vmatmul.mubr.f32.gmra.mrb[0].mxu0 %v360
    %v508 = vpop.f32.mrb[0].mxu0
    %v509 = vadd.f32 %v349, %v508
    %v510 = vpop.f32.mrb[0].mxu0
    %v511 = vadd.f32 %v353, %v510
    %512 = vmatprep.mubr.f32.mxu0 0.0
    %513 = vmatmul.mubr.f32.gmra.mrb[0].mxu0 %v363
    %v514 = vpop.f32.mrb[0].mxu0
    %v515 = vadd.f32 %v349, %v514
    %v516 = vpop.f32.mrb[0].mxu0
    %v517 = vadd.f32 %v353, %v516
    %518 = vdwg.mxu0
    %v519 = vld [vmem:[%s8] sm:$0x3]
    %v520 = vld [vmem:[%s9] sm:$0x3]
    %s521 = scalar_lea.vmem %s8, 2
    %v522 = vld [vmem:[%s521] sm:$0x3]
    %s523 = scalar_lea.vmem %s9, 2
    %v524 = vld [vmem:[%s523] sm:$0x3]
    %525 = vmatprep.subr.mxu0 %v105
    %526 = vmatpush1.msra.mxu0 %v104
    %527 = vmatprep.subr.mxu0 %v109
    %528 = vmatpush1.msra.mxu0 %v108
    %529 = vmatprep.subr.mxu0 %v113
    %530 = vmatpush1.msra.mxu0 %v112
    %531 = vmatprep.subr.mxu0 %v117
    %532 = vmatpush1.msra.mxu0 %v116
    %533 = vmatprep.subr.mxu0 %v121
    %534 = vmatpush1.msra.mxu0 %v120
    %535 = vmatprep.subr.mxu0 %v125
    %536 = vmatpush1.msra.mxu0 %v124
    %537 = vmatprep.subr.mxu0 %v129
    %538 = vmatpush1.msra.mxu0 %v128
    %539 = vmatprep.subr.mxu0 %v133
    %540 = vmatpush1.msra.mxu0 %v132
    %541 = vmatprep.subr.mxu0 %v137
    %542 = vmatpush1.msra.mxu0 %v136
    %543 = vmatprep.subr.mxu0 %v141
    %544 = vmatpush1.msra.mxu0 %v140
    %545 = vmatprep.subr.mxu0 %v145
    %546 = vmatpush1.msra.mxu0 %v144
    %547 = vmatprep.subr.mxu0 %v149
    %548 = vmatpush1.msra.mxu0 %v148
    %549 = vmatprep.subr.mxu0 %v153
    %550 = vmatpush1.msra.mxu0 %v152
    %551 = vmatprep.subr.mxu0 %v157
    %552 = vmatpush1.msra.mxu0 %v156
    %553 = vmatprep.subr.mxu0 %v161
    %554 = vmatpush1.msra.mxu0 %v160
    %555 = vmatprep.subr.mxu0 %v165
    %556 = vmatpush1.msra.mxu0 %v164
    %557 = vmatprep.subr.mxu0 0.0
    %558 = vmatpush1.msra.mxu0 0.0
    %559 = vmatprep.subr.mxu0 0.0
    %560 = vmatpush1.msra.mxu0 0.0
    %561 = vmatprep.subr.mxu0 0.0
    %562 = vmatpush1.msra.mxu0 0.0
    %563 = vmatprep.subr.mxu0 0.0
    %564 = vmatpush1.msra.mxu0 0.0
    %565 = vmatprep.subr.mxu0 0.0
    %566 = vmatpush1.msra.mxu0 0.0
    %567 = vmatprep.subr.mxu0 0.0
    %568 = vmatpush1.msra.mxu0 0.0
    %569 = vmatprep.subr.mxu0 0.0
    %570 = vmatpush1.msra.mxu0 0.0
    %571 = vmatprep.subr.mxu0 0.0
    %572 = vmatpush1.msra.mxu0 0.0
    %573 = vmatprep.subr.mxu0 0.0
    %574 = vmatpush1.msra.mxu0 0.0
    %575 = vmatprep.subr.mxu0 0.0
    %576 = vmatpush1.msra.mxu0 0.0
    %577 = vmatprep.subr.mxu0 0.0
    %578 = vmatpush1.msra.mxu0 0.0
    %579 = vmatprep.subr.mxu0 0.0
    %580 = vmatpush1.msra.mxu0 0.0
    %581 = vmatprep.subr.mxu0 0.0
    %582 = vmatpush1.msra.mxu0 0.0
    %583 = vmatprep.subr.mxu0 0.0
    %584 = vmatpush1.msra.mxu0 0.0
    %585 = vmatprep.subr.mxu0 0.0
    %586 = vmatpush1.msra.mxu0 0.0
    %587 = vmatprep.subr.mxu0 0.0
    %588 = vmatpush1.msra.mxu0 0.0
    %589 = vmatprep.mubr.f32.mxu0 0.0
    %590 = vmatmul.mubr.f32.gmra.mrb[0].mxu0 %v519
    %v591 = vpop.f32.mrb[0].mxu0
    %v592 = vadd.f32 0.0, %v591
    %v593 = vpop.f32.mrb[0].mxu0
    %v594 = vadd.f32 0.0, %v593
    %595 = vdwg.mxu0
    %596 = vmatprep.subr.mxu0 %v107
    %597 = vmatpush1.msra.mxu0 %v106
    %598 = vmatprep.subr.mxu0 %v111
    %599 = vmatpush1.msra.mxu0 %v110
    %600 = vmatprep.subr.mxu0 %v115
    %601 = vmatpush1.msra.mxu0 %v114
    %602 = vmatprep.subr.mxu0 %v119
    %603 = vmatpush1.msra.mxu0 %v118
    %604 = vmatprep.subr.mxu0 %v123
    %605 = vmatpush1.msra.mxu0 %v122
    %606 = vmatprep.subr.mxu0 %v127
    %607 = vmatpush1.msra.mxu0 %v126
    %608 = vmatprep.subr.mxu0 %v131
    %609 = vmatpush1.msra.mxu0 %v130
    %610 = vmatprep.subr.mxu0 %v135
    %611 = vmatpush1.msra.mxu0 %v134
    %612 = vmatprep.subr.mxu0 %v139
    %613 = vmatpush1.msra.mxu0 %v138
    %614 = vmatprep.subr.mxu0 %v143
    %615 = vmatpush1.msra.mxu0 %v142
    %616 = vmatprep.subr.mxu0 %v147
    %617 = vmatpush1.msra.mxu0 %v146
    %618 = vmatprep.subr.mxu0 %v151
    %619 = vmatpush1.msra.mxu0 %v150
    %620 = vmatprep.subr.mxu0 %v155
    %621 = vmatpush1.msra.mxu0 %v154
    %622 = vmatprep.subr.mxu0 %v159
    %623 = vmatpush1.msra.mxu0 %v158
    %624 = vmatprep.subr.mxu0 %v163
    %625 = vmatpush1.msra.mxu0 %v162
    %626 = vmatprep.subr.mxu0 %v167
    %627 = vmatpush1.msra.mxu0 %v166
    %628 = vmatprep.subr.mxu0 0.0
    %629 = vmatpush1.msra.mxu0 0.0
    %630 = vmatprep.subr.mxu0 0.0
    %631 = vmatpush1.msra.mxu0 0.0
    %632 = vmatprep.subr.mxu0 0.0
    %633 = vmatpush1.msra.mxu0 0.0
    %634 = vmatprep.subr.mxu0 0.0
    %635 = vmatpush1.msra.mxu0 0.0
    %636 = vmatprep.subr.mxu0 0.0
    %637 = vmatpush1.msra.mxu0 0.0
    %638 = vmatprep.subr.mxu0 0.0
    %639 = vmatpush1.msra.mxu0 0.0
    %640 = vmatprep.subr.mxu0 0.0
    %641 = vmatpush1.msra.mxu0 0.0
    %642 = vmatprep.subr.mxu0 0.0
    %643 = vmatpush1.msra.mxu0 0.0
    %644 = vmatprep.subr.mxu0 0.0
    %645 = vmatpush1.msra.mxu0 0.0
    %646 = vmatprep.subr.mxu0 0.0
    %647 = vmatpush1.msra.mxu0 0.0
    %648 = vmatprep.subr.mxu0 0.0
    %649 = vmatpush1.msra.mxu0 0.0
    %650 = vmatprep.subr.mxu0 0.0
    %651 = vmatpush1.msra.mxu0 0.0
    %652 = vmatprep.subr.mxu0 0.0
    %653 = vmatpush1.msra.mxu0 0.0
    %654 = vmatprep.subr.mxu0 0.0
    %655 = vmatpush1.msra.mxu0 0.0
    %656 = vmatprep.subr.mxu0 0.0
    %657 = vmatpush1.msra.mxu0 0.0
    %658 = vmatprep.subr.mxu0 0.0
    %659 = vmatpush1.msra.mxu0 0.0
    %660 = vmatprep.mubr.f32.mxu0 0.0
    %661 = vmatmul.mubr.f32.gmra.mrb[0].mxu0 %v519
    %v662 = vpop.f32.mrb[0].mxu0
    %v663 = vadd.f32 0.0, %v662
    %v664 = vpop.f32.mrb[0].mxu0
    %v665 = vadd.f32 0.0, %v664
    %666 = vdwg.mxu0
    %v667 = vadd.f32 %v432, %v592
    %v668 = vadd.f32 %v434, %v594
    %v669 = vadd.f32 %v509, %v663
    %v670 = vadd.f32 %v511, %v665
    %v671 = vxor.u32 %v667, 2147483648
    %v672 = vmul.f32 %v671, 1.442695
    %v673 = vpow.pop %v672
    %v674 = vadd.f32 %v673, 1.0
    %v675 = vrcp.pop %v674
    %v676 = vmul.f32 1.0, %v675
    %v677 = vxor.u32 %v668, 2147483648
    %v678 = vmul.f32 %v677, 1.442695
    %v679 = vpow.pop %v678
    %v680 = vadd.f32 %v679, 1.0
    %v681 = vrcp.pop %v680
    %v682 = vmul.f32 1.0, %v681
    %v683 = vtanh.pop %v669
    %v684 = vxor.u32 %v670, 2147483648
    %v685 = vmul.f32 %v684, 1.442695
    %v686 = vpow.pop %v685
    %v687 = vadd.f32 %v686, 1.0
    %v688 = vrcp.pop %v687
    %v689 = vmul.f32 1.0, %v688
    %v690 = vmul.f32 %v682, %v520
    %v691 = vmul.f32 %v676, %v683
    %v692 = vadd.f32 %v690, %v691
    %v693 = vtanh.pop %v692
    %v694 = vmul.f32 %v689, %v693
    %695 = vmatprep.subr.mxu0 %v169
    %696 = vmatpush1.msra.mxu0 %v168
    %697 = vmatprep.subr.mxu0 %v173
    %698 = vmatpush1.msra.mxu0 %v172
    %699 = vmatprep.subr.mxu0 %v177
    %700 = vmatpush1.msra.mxu0 %v176
    %701 = vmatprep.subr.mxu0 %v181
    %702 = vmatpush1.msra.mxu0 %v180
    %703 = vmatprep.subr.mxu0 %v185
    %704 = vmatpush1.msra.mxu0 %v184
    %705 = vmatprep.subr.mxu0 %v189
    %706 = vmatpush1.msra.mxu0 %v188
    %707 = vmatprep.subr.mxu0 %v193
    %708 = vmatpush1.msra.mxu0 %v192
    %709 = vmatprep.subr.mxu0 %v197
    %710 = vmatpush1.msra.mxu0 %v196
    %711 = vmatprep.subr.mxu0 %v201
    %712 = vmatpush1.msra.mxu0 %v200
    %713 = vmatprep.subr.mxu0 %v205
    %714 = vmatpush1.msra.mxu0 %v204
    %715 = vmatprep.subr.mxu0 %v209
    %716 = vmatpush1.msra.mxu0 %v208
    %717 = vmatprep.subr.mxu0 %v213
    %718 = vmatpush1.msra.mxu0 %v212
    %719 = vmatprep.subr.mxu0 %v217
    %720 = vmatpush1.msra.mxu0 %v216
    %721 = vmatprep.subr.mxu0 %v221
    %722 = vmatpush1.msra.mxu0 %v220
    %723 = vmatprep.subr.mxu0 %v225
    %724 = vmatpush1.msra.mxu0 %v224
    %725 = vmatprep.subr.mxu0 %v229
    %726 = vmatpush1.msra.mxu0 %v228
    %727 = vmatprep.subr.mxu0 %v233
    %728 = vmatpush1.msra.mxu0 %v232
    %729 = vmatprep.subr.mxu0 %v237
    %730 = vmatpush1.msra.mxu0 %v236
    %731 = vmatprep.subr.mxu0 %v241
    %732 = vmatpush1.msra.mxu0 %v240
    %733 = vmatprep.subr.mxu0 %v245
    %734 = vmatpush1.msra.mxu0 %v244
    %735 = vmatprep.subr.mxu0 %v249
    %736 = vmatpush1.msra.mxu0 %v248
    %737 = vmatprep.subr.mxu0 %v253
    %738 = vmatpush1.msra.mxu0 %v252
    %739 = vmatprep.subr.mxu0 %v257
    %740 = vmatpush1.msra.mxu0 %v256
    %741 = vmatprep.subr.mxu0 %v261
    %742 = vmatpush1.msra.mxu0 %v260
    %743 = vmatprep.subr.mxu0 %v265
    %744 = vmatpush1.msra.mxu0 %v264
    %745 = vmatprep.subr.mxu0 %v269
    %746 = vmatpush1.msra.mxu0 %v268
    %747 = vmatprep.subr.mxu0 %v273
    %748 = vmatpush1.msra.mxu0 %v272
    %749 = vmatprep.subr.mxu0 %v277
    %750 = vmatpush1.msra.mxu0 %v276
    %751 = vmatprep.subr.mxu0 %v281
    %752 = vmatpush1.msra.mxu0 %v280
    %753 = vmatprep.subr.mxu0 %v285
    %754 = vmatpush1.msra.mxu0 %v284
    %755 = vmatprep.subr.mxu0 %v289
    %756 = vmatpush1.msra.mxu0 %v288
    %757 = vmatprep.subr.mxu0 %v293
    %758 = vmatpush1.msra.mxu0 %v292
    %759 = vmatprep.mubr.f32.mxu0 %v522
    %760 = vmatmul.mubr.f32.gmra.mrb[0].mxu0 %v694
    %v761 = vpop.f32.mrb[0].mxu0
    %v762 = vadd.f32 %v301, %v761
    %v763 = vpop.f32.mrb[0].mxu0
    %v764 = vadd.f32 %v305, %v763
    %765 = vdwg.mxu0
    %766 = vmatprep.subr.mxu0 %v171
    %767 = vmatpush1.msra.mxu0 %v170
    %768 = vmatprep.subr.mxu0 %v175
    %769 = vmatpush1.msra.mxu0 %v174
    %770 = vmatprep.subr.mxu0 %v179
    %771 = vmatpush1.msra.mxu0 %v178
    %772 = vmatprep.subr.mxu0 %v183
    %773 = vmatpush1.msra.mxu0 %v182
    %774 = vmatprep.subr.mxu0 %v187
    %775 = vmatpush1.msra.mxu0 %v186
    %776 = vmatprep.subr.mxu0 %v191
    %777 = vmatpush1.msra.mxu0 %v190
    %778 = vmatprep.subr.mxu0 %v195
    %779 = vmatpush1.msra.mxu0 %v194
    %780 = vmatprep.subr.mxu0 %v199
    %781 = vmatpush1.msra.mxu0 %v198
    %782 = vmatprep.subr.mxu0 %v203
    %783 = vmatpush1.msra.mxu0 %v202
    %784 = vmatprep.subr.mxu0 %v207
    %785 = vmatpush1.msra.mxu0 %v206
    %786 = vmatprep.subr.mxu0 %v211
    %787 = vmatpush1.msra.mxu0 %v210
    %788 = vmatprep.subr.mxu0 %v215
    %789 = vmatpush1.msra.mxu0 %v214
    %790 = vmatprep.subr.mxu0 %v219
    %791 = vmatpush1.msra.mxu0 %v218
    %792 = vmatprep.subr.mxu0 %v223
    %793 = vmatpush1.msra.mxu0 %v222
    %794 = vmatprep.subr.mxu0 %v227
    %795 = vmatpush1.msra.mxu0 %v226
    %796 = vmatprep.subr.mxu0 %v231
    %797 = vmatpush1.msra.mxu0 %v230
    %798 = vmatprep.subr.mxu0 %v235
    %799 = vmatpush1.msra.mxu0 %v234
    %800 = vmatprep.subr.mxu0 %v239
    %801 = vmatpush1.msra.mxu0 %v238
    %802 = vmatprep.subr.mxu0 %v243
    %803 = vmatpush1.msra.mxu0 %v242
    %804 = vmatprep.subr.mxu0 %v247
    %805 = vmatpush1.msra.mxu0 %v246
    %806 = vmatprep.subr.mxu0 %v251
    %807 = vmatpush1.msra.mxu0 %v250
    %808 = vmatprep.subr.mxu0 %v255
    %809 = vmatpush1.msra.mxu0 %v254
    %810 = vmatprep.subr.mxu0 %v259
    %811 = vmatpush1.msra.mxu0 %v258
    %812 = vmatprep.subr.mxu0 %v263
    %813 = vmatpush1.msra.mxu0 %v262
    %814 = vmatprep.subr.mxu0 %v267
    %815 = vmatpush1.msra.mxu0 %v266
    %816 = vmatprep.subr.mxu0 %v271
    %817 = vmatpush1.msra.mxu0 %v270
    %818 = vmatprep.subr.mxu0 %v275
    %819 = vmatpush1.msra.mxu0 %v274
    %820 = vmatprep.subr.mxu0 %v279
    %821 = vmatpush1.msra.mxu0 %v278
    %822 = vmatprep.subr.mxu0 %v283
    %823 = vmatpush1.msra.mxu0 %v282
    %824 = vmatprep.subr.mxu0 %v287
    %825 = vmatpush1.msra.mxu0 %v286
    %826 = vmatprep.subr.mxu0 %v291
    %827 = vmatpush1.msra.mxu0 %v290
    %828 = vmatprep.subr.mxu0 %v295
    %829 = vmatpush1.msra.mxu0 %v294
    %830 = vmatprep.mubr.f32.mxu0 %v522
    %831 = vmatmul.mubr.f32.gmra.mrb[0].mxu0 %v694
    %v832 = vpop.f32.mrb[0].mxu0
    %v833 = vadd.f32 %v309, %v832
    %v834 = vpop.f32.mrb[0].mxu0
    %v835 = vadd.f32 %v313, %v834
    %836 = vdwg.mxu0
    %v837 = vxor.u32 %v762, 2147483648
    %v838 = vmul.f32 %v837, 1.442695
    %v839 = vpow.pop %v838
    %v840 = vadd.f32 %v839, 1.0
    %v841 = vrcp.pop %v840
    %v842 = vmul.f32 1.0, %v841
    %v843 = vxor.u32 %v764, 2147483648
    %v844 = vmul.f32 %v843, 1.442695
    %v845 = vpow.pop %v844
    %v846 = vadd.f32 %v845, 1.0
    %v847 = vrcp.pop %v846
    %v848 = vmul.f32 1.0, %v847
    %v849 = vtanh.pop %v833
    %v850 = vxor.u32 %v835, 2147483648
    %v851 = vmul.f32 %v850, 1.442695
    %v852 = vpow.pop %v851
    %v853 = vadd.f32 %v852, 1.0
    %v854 = vrcp.pop %v853
    %v855 = vmul.f32 1.0, %v854
    %v856 = vmul.f32 %v848, %v524
    %v857 = vmul.f32 %v842, %v849
    %v858 = vadd.f32 %v856, %v857
    %v859 = vtanh.pop %v858
    %v860 = vmul.f32 %v855, %v859
    %861 = vmatprep.subr.mxu0 %v105
    %862 = vmatpush1.msra.mxu0 %v104
    %863 = vmatprep.subr.mxu0 %v109
    %864 = vmatpush1.msra.mxu0 %v108
    %865 = vmatprep.subr.mxu0 %v113
    %866 = vmatpush1.msra.mxu0 %v112
    %867 = vmatprep.subr.mxu0 %v117
    %868 = vmatpush1.msra.mxu0 %v116
    %869 = vmatprep.subr.mxu0 %v121
    %870 = vmatpush1.msra.mxu0 %v120
    %871 = vmatprep.subr.mxu0 %v125
    %872 = vmatpush1.msra.mxu0 %v124
    %873 = vmatprep.subr.mxu0 %v129
    %874 = vmatpush1.msra.mxu0 %v128
    %875 = vmatprep.subr.mxu0 %v133
    %876 = vmatpush1.msra.mxu0 %v132
    %877 = vmatprep.subr.mxu0 %v137
    %878 = vmatpush1.msra.mxu0 %v136
    %879 = vmatprep.subr.mxu0 %v141
    %880 = vmatpush1.msra.mxu0 %v140
    %881 = vmatprep.subr.mxu0 %v145
    %882 = vmatpush1.msra.mxu0 %v144
    %883 = vmatprep.subr.mxu0 %v149
    %884 = vmatpush1.msra.mxu0 %v148
    %885 = vmatprep.subr.mxu0 %v153
    %886 = vmatpush1.msra.mxu0 %v152
    %887 = vmatprep.subr.mxu0 %v157
    %888 = vmatpush1.msra.mxu0 %v156
    %889 = vmatprep.subr.mxu0 %v161
    %890 = vmatpush1.msra.mxu0 %v160
    %891 = vmatprep.subr.mxu0 %v165
    %892 = vmatpush1.msra.mxu0 %v164
    %893 = vmatprep.subr.mxu0 0.0
    %894 = vmatpush1.msra.mxu0 0.0
    %895 = vmatprep.subr.mxu0 0.0
    %896 = vmatpush1.msra.mxu0 0.0
    %897 = vmatprep.subr.mxu0 0.0
    %898 = vmatpush1.msra.mxu0 0.0
    %899 = vmatprep.subr.mxu0 0.0
    %900 = vmatpush1.msra.mxu0 0.0
    %901 = vmatprep.subr.mxu0 0.0
    %902 = vmatpush1.msra.mxu0 0.0
    %903 = vmatprep.subr.mxu0 0.0
    %904 = vmatpush1.msra.mxu0 0.0
    %905 = vmatprep.subr.mxu0 0.0
    %906 = vmatpush1.msra.mxu0 0.0
    %907 = vmatprep.subr.mxu0 0.0
    %908 = vmatpush1.msra.mxu0 0.0
    %909 = vmatprep.subr.mxu0 0.0
    %910 = vmatpush1.msra.mxu0 0.0
    %911 = vmatprep.subr.mxu0 0.0
    %912 = vmatpush1.msra.mxu0 0.0
    %913 = vmatprep.subr.mxu0 0.0
    %914 = vmatpush1.msra.mxu0 0.0
    %915 = vmatprep.subr.mxu0 0.0
    %916 = vmatpush1.msra.mxu0 0.0
    %917 = vmatprep.subr.mxu0 0.0
    %918 = vmatpush1.msra.mxu0 0.0
    %919 = vmatprep.subr.mxu0 0.0
    %920 = vmatpush1.msra.mxu0 0.0
    %921 = vmatprep.subr.mxu0 0.0
    %922 = vmatpush1.msra.mxu0 0.0
    %923 = vmatprep.subr.mxu0 0.0
    %924 = vmatpush1.msra.mxu0 0.0
    %925 = vmatprep.mubr.f32.mxu0 0.0
    %926 = vmatmul.mubr.f32.gmra.mrb[0].mxu0 %v694
    %v927 = vpop.f32.mrb[0].mxu0
    %v928 = vadd.f32 0.0, %v927
    %v929 = vpop.f32.mrb[0].mxu0
    %v930 = vadd.f32 0.0, %v929
    %931 = vdwg.mxu0
    %932 = vmatprep.subr.mxu0 %v107
    %933 = vmatpush1.msra.mxu0 %v106
    %934 = vmatprep.subr.mxu0 %v111
    %935 = vmatpush1.msra.mxu0 %v110
    %936 = vmatprep.subr.mxu0 %v115
    %937 = vmatpush1.msra.mxu0 %v114
    %938 = vmatprep.subr.mxu0 %v119
    %939 = vmatpush1.msra.mxu0 %v118
    %940 = vmatprep.subr.mxu0 %v123
    %941 = vmatpush1.msra.mxu0 %v122
    %942 = vmatprep.subr.mxu0 %v127
    %943 = vmatpush1.msra.mxu0 %v126
    %944 = vmatprep.subr.mxu0 %v131
    %945 = vmatpush1.msra.mxu0 %v130
    %946 = vmatprep.subr.mxu0 %v135
    %947 = vmatpush1.msra.mxu0 %v134
    %948 = vmatprep.subr.mxu0 %v139
    %949 = vmatpush1.msra.mxu0 %v138
    %950 = vmatprep.subr.mxu0 %v143
    %951 = vmatpush1.msra.mxu0 %v142
    %952 = vmatprep.subr.mxu0 %v147
    %953 = vmatpush1.msra.mxu0 %v146
    %954 = vmatprep.subr.mxu0 %v151
    %955 = vmatpush1.msra.mxu0 %v150
    %956 = vmatprep.subr.mxu0 %v155
    %957 = vmatpush1.msra.mxu0 %v154
    %958 = vmatprep.subr.mxu0 %v159
    %959 = vmatpush1.msra.mxu0 %v158
    %960 = vmatprep.subr.mxu0 %v163
    %961 = vmatpush1.msra.mxu0 %v162
    %962 = vmatprep.subr.mxu0 %v167
    %963 = vmatpush1.msra.mxu0 %v166
    %964 = vmatprep.subr.mxu0 0.0
    %965 = vmatpush1.msra.mxu0 0.0
    %966 = vmatprep.subr.mxu0 0.0
    %967 = vmatpush1.msra.mxu0 0.0
    %968 = vmatprep.subr.mxu0 0.0
    %969 = vmatpush1.msra.mxu0 0.0
    %970 = vmatprep.subr.mxu0 0.0
    %971 = vmatpush1.msra.mxu0 0.0
    %972 = vmatprep.subr.mxu0 0.0
    %973 = vmatpush1.msra.mxu0 0.0
    %974 = vmatprep.subr.mxu0 0.0
    %975 = vmatpush1.msra.mxu0 0.0
    %976 = vmatprep.subr.mxu0 0.0
    %977 = vmatpush1.msra.mxu0 0.0
    %978 = vmatprep.subr.mxu0 0.0
    %979 = vmatpush1.msra.mxu0 0.0
    %980 = vmatprep.subr.mxu0 0.0
    %981 = vmatpush1.msra.mxu0 0.0
    %982 = vmatprep.subr.mxu0 0.0
    %983 = vmatpush1.msra.mxu0 0.0
    %984 = vmatprep.subr.mxu0 0.0
    %985 = vmatpush1.msra.mxu0 0.0
    %986 = vmatprep.subr.mxu0 0.0
    %987 = vmatpush1.msra.mxu0 0.0
    %988 = vmatprep.subr.mxu0 0.0
    %989 = vmatpush1.msra.mxu0 0.0
    %990 = vmatprep.subr.mxu0 0.0
    %991 = vmatpush1.msra.mxu0 0.0
    %992 = vmatprep.subr.mxu0 0.0
    %993 = vmatpush1.msra.mxu0 0.0
    %994 = vmatprep.subr.mxu0 0.0
    %995 = vmatpush1.msra.mxu0 0.0
    %996 = vmatprep.mubr.f32.mxu0 0.0
    %997 = vmatmul.mubr.f32.gmra.mrb[0].mxu0 %v694
    %v998 = vpop.f32.mrb[0].mxu0
    %v999 = vadd.f32 0.0, %v998
    %v1000 = vpop.f32.mrb[0].mxu0
    %v1001 = vadd.f32 0.0, %v1000
    %1002 = vdwg.mxu0
    %v1007 = vrot.slane %v928, 6
    %v1008 = vrot.slane %v930, 6
    %v1009 = vrot.slane %v999, 6
    %v1010 = vrot.slane %v1001, 6
    %v1015 = vadd.f32 %v432, %v1007
    %v1016 = vadd.f32 %v434, %v1008
    %v1017 = vadd.f32 %v509, %v1009
    %v1018 = vadd.f32 %v511, %v1010
    %v1019 = vxor.u32 %v1015, 2147483648
    %v1020 = vmul.f32 %v1019, 1.442695
    %v1021 = vpow.pop %v1020
    %v1022 = vadd.f32 %v1021, 1.0
    %v1023 = vrcp.pop %v1022
    %v1024 = vmul.f32 1.0, %v1023
    %v1025 = vxor.u32 %v1016, 2147483648
    %v1026 = vmul.f32 %v1025, 1.442695
    %v1027 = vpow.pop %v1026
    %v1028 = vadd.f32 %v1027, 1.0
    %v1029 = vrcp.pop %v1028
    %v1030 = vmul.f32 1.0, %v1029
    %v1031 = vtanh.pop %v1017
    %v1032 = vxor.u32 %v1018, 2147483648
    %v1033 = vmul.f32 %v1032, 1.442695
    %v1034 = vpow.pop %v1033
    %v1035 = vadd.f32 %v1034, 1.0
    %v1036 = vrcp.pop %v1035
    %v1037 = vmul.f32 1.0, %v1036
    %v1039 = vrot.slane %v692, 6
    %v1041 = vmul.f32 %v1030, %v1039
    %v1042 = vmul.f32 %v1024, %v1031
    %v1043 = vadd.f32 %v1041, %v1042
    %v1044 = vtanh.pop %v1043
    %v1045 = vmul.f32 %v1037, %v1044
    %v1047 = vrot.slane %v860, 6
    %v1049 = vrot.slane %v1045, 2
    %v1050 = vrot.slane %v1047, 2
    %1053 = vmatprep.subr.mxu0 %v169
    %1054 = vmatpush1.msra.mxu0 %v168
    %1055 = vmatprep.subr.mxu0 %v173
    %1056 = vmatpush1.msra.mxu0 %v172
    %1057 = vmatprep.subr.mxu0 %v177
    %1058 = vmatpush1.msra.mxu0 %v176
    %1059 = vmatprep.subr.mxu0 %v181
    %1060 = vmatpush1.msra.mxu0 %v180
    %1061 = vmatprep.subr.mxu0 %v185
    %1062 = vmatpush1.msra.mxu0 %v184
    %1063 = vmatprep.subr.mxu0 %v189
    %1064 = vmatpush1.msra.mxu0 %v188
    %1065 = vmatprep.subr.mxu0 %v193
    %1066 = vmatpush1.msra.mxu0 %v192
    %1067 = vmatprep.subr.mxu0 %v197
    %1068 = vmatpush1.msra.mxu0 %v196
    %1069 = vmatprep.subr.mxu0 %v201
    %1070 = vmatpush1.msra.mxu0 %v200
    %1071 = vmatprep.subr.mxu0 %v205
    %1072 = vmatpush1.msra.mxu0 %v204
    %1073 = vmatprep.subr.mxu0 %v209
    %1074 = vmatpush1.msra.mxu0 %v208
    %1075 = vmatprep.subr.mxu0 %v213
    %1076 = vmatpush1.msra.mxu0 %v212
    %1077 = vmatprep.subr.mxu0 %v217
    %1078 = vmatpush1.msra.mxu0 %v216
    %1079 = vmatprep.subr.mxu0 %v221
    %1080 = vmatpush1.msra.mxu0 %v220
    %1081 = vmatprep.subr.mxu0 %v225
    %1082 = vmatpush1.msra.mxu0 %v224
    %1083 = vmatprep.subr.mxu0 %v229
    %1084 = vmatpush1.msra.mxu0 %v228
    %1085 = vmatprep.subr.mxu0 %v233
    %1086 = vmatpush1.msra.mxu0 %v232
    %1087 = vmatprep.subr.mxu0 %v237
    %1088 = vmatpush1.msra.mxu0 %v236
    %1089 = vmatprep.subr.mxu0 %v241
    %1090 = vmatpush1.msra.mxu0 %v240
    %1091 = vmatprep.subr.mxu0 %v245
    %1092 = vmatpush1.msra.mxu0 %v244
    %1093 = vmatprep.subr.mxu0 %v249
    %1094 = vmatpush1.msra.mxu0 %v248
    %1095 = vmatprep.subr.mxu0 %v253
    %1096 = vmatpush1.msra.mxu0 %v252
    %1097 = vmatprep.subr.mxu0 %v257
    %1098 = vmatpush1.msra.mxu0 %v256
    %1099 = vmatprep.subr.mxu0 %v261
    %1100 = vmatpush1.msra.mxu0 %v260
    %1101 = vmatprep.subr.mxu0 %v265
    %1102 = vmatpush1.msra.mxu0 %v264
    %1103 = vmatprep.subr.mxu0 %v269
    %1104 = vmatpush1.msra.mxu0 %v268
    %1105 = vmatprep.subr.mxu0 %v273
    %1106 = vmatpush1.msra.mxu0 %v272
    %1107 = vmatprep.subr.mxu0 %v277
    %1108 = vmatpush1.msra.mxu0 %v276
    %1109 = vmatprep.subr.mxu0 %v281
    %1110 = vmatpush1.msra.mxu0 %v280
    %1111 = vmatprep.subr.mxu0 %v285
    %1112 = vmatpush1.msra.mxu0 %v284
    %1113 = vmatprep.subr.mxu0 %v289
    %1114 = vmatpush1.msra.mxu0 %v288
    %1115 = vmatprep.subr.mxu0 %v293
    %1116 = vmatpush1.msra.mxu0 %v292
    %1117 = vmatprep.mubr.f32.mxu0 %v1050
    %1118 = vmatmul.mubr.f32.gmra.mrb[0].mxu0 %v1049
    %v1119 = vpop.f32.mrb[0].mxu0
    %v1120 = vadd.f32 %v301, %v1119
    %v1121 = vpop.f32.mrb[0].mxu0
    %v1122 = vadd.f32 %v305, %v1121
    %1123 = vdwg.mxu0
    %1124 = vmatprep.subr.mxu0 %v171
    %1125 = vmatpush1.msra.mxu0 %v170
    %1126 = vmatprep.subr.mxu0 %v175
    %1127 = vmatpush1.msra.mxu0 %v174
    %1128 = vmatprep.subr.mxu0 %v179
    %1129 = vmatpush1.msra.mxu0 %v178
    %1130 = vmatprep.subr.mxu0 %v183
    %1131 = vmatpush1.msra.mxu0 %v182
    %1132 = vmatprep.subr.mxu0 %v187
    %1133 = vmatpush1.msra.mxu0 %v186
    %1134 = vmatprep.subr.mxu0 %v191
    %1135 = vmatpush1.msra.mxu0 %v190
    %1136 = vmatprep.subr.mxu0 %v195
    %1137 = vmatpush1.msra.mxu0 %v194
    %1138 = vmatprep.subr.mxu0 %v199
    %1139 = vmatpush1.msra.mxu0 %v198
    %1140 = vmatprep.subr.mxu0 %v203
    %1141 = vmatpush1.msra.mxu0 %v202
    %1142 = vmatprep.subr.mxu0 %v207
    %1143 = vmatpush1.msra.mxu0 %v206
    %1144 = vmatprep.subr.mxu0 %v211
    %1145 = vmatpush1.msra.mxu0 %v210
    %1146 = vmatprep.subr.mxu0 %v215
    %1147 = vmatpush1.msra.mxu0 %v214
    %1148 = vmatprep.subr.mxu0 %v219
    %1149 = vmatpush1.msra.mxu0 %v218
    %1150 = vmatprep.subr.mxu0 %v223
    %1151 = vmatpush1.msra.mxu0 %v222
    %1152 = vmatprep.subr.mxu0 %v227
    %1153 = vmatpush1.msra.mxu0 %v226
    %1154 = vmatprep.subr.mxu0 %v231
    %1155 = vmatpush1.msra.mxu0 %v230
    %1156 = vmatprep.subr.mxu0 %v235
    %1157 = vmatpush1.msra.mxu0 %v234
    %1158 = vmatprep.subr.mxu0 %v239
    %1159 = vmatpush1.msra.mxu0 %v238
    %1160 = vmatprep.subr.mxu0 %v243
    %1161 = vmatpush1.msra.mxu0 %v242
    %1162 = vmatprep.subr.mxu0 %v247
    %1163 = vmatpush1.msra.mxu0 %v246
    %1164 = vmatprep.subr.mxu0 %v251
    %1165 = vmatpush1.msra.mxu0 %v250
    %1166 = vmatprep.subr.mxu0 %v255
    %1167 = vmatpush1.msra.mxu0 %v254
    %1168 = vmatprep.subr.mxu0 %v259
    %1169 = vmatpush1.msra.mxu0 %v258
    %1170 = vmatprep.subr.mxu0 %v263
    %1171 = vmatpush1.msra.mxu0 %v262
    %1172 = vmatprep.subr.mxu0 %v267
    %1173 = vmatpush1.msra.mxu0 %v266
    %1174 = vmatprep.subr.mxu0 %v271
    %1175 = vmatpush1.msra.mxu0 %v270
    %1176 = vmatprep.subr.mxu0 %v275
    %1177 = vmatpush1.msra.mxu0 %v274
    %1178 = vmatprep.subr.mxu0 %v279
    %1179 = vmatpush1.msra.mxu0 %v278
    %1180 = vmatprep.subr.mxu0 %v283
    %1181 = vmatpush1.msra.mxu0 %v282
    %1182 = vmatprep.subr.mxu0 %v287
    %1183 = vmatpush1.msra.mxu0 %v286
    %1184 = vmatprep.subr.mxu0 %v291
    %1185 = vmatpush1.msra.mxu0 %v290
    %1186 = vmatprep.subr.mxu0 %v295
    %1187 = vmatpush1.msra.mxu0 %v294
    %1188 = vmatprep.mubr.f32.mxu0 %v1050
    %1189 = vmatmul.mubr.f32.gmra.mrb[0].mxu0 %v1049
    %v1190 = vpop.f32.mrb[0].mxu0
    %v1191 = vadd.f32 %v309, %v1190
    %v1192 = vpop.f32.mrb[0].mxu0
    %v1193 = vadd.f32 %v313, %v1192
    %1194 = vdwg.mxu0
    %v1195 = vxor.u32 %v1120, 2147483648
    %v1196 = vmul.f32 %v1195, 1.442695
    %v1197 = vpow.pop %v1196
    %v1198 = vadd.f32 %v1197, 1.0
    %v1199 = vrcp.pop %v1198
    %v1200 = vmul.f32 1.0, %v1199
    %v1201 = vxor.u32 %v1122, 2147483648
    %v1202 = vmul.f32 %v1201, 1.442695
    %v1203 = vpow.pop %v1202
    %v1204 = vadd.f32 %v1203, 1.0
    %v1205 = vrcp.pop %v1204
    %v1206 = vmul.f32 1.0, %v1205
    %v1207 = vtanh.pop %v1191
    %v1208 = vxor.u32 %v1193, 2147483648
    %v1209 = vmul.f32 %v1208, 1.442695
    %v1210 = vpow.pop %v1209
    %v1211 = vadd.f32 %v1210, 1.0
    %v1212 = vrcp.pop %v1211
    %v1213 = vmul.f32 1.0, %v1212
    %v1214 = vmul.f32 %v1206, %v858
    %v1215 = vmul.f32 %v1200, %v1207
    %v1216 = vadd.f32 %v1214, %v1215
    %v1217 = vtanh.pop %v1216
    %v1218 = vmul.f32 %v1213, %v1217
    %1219 = vmatprep.subr.mxu0 %v105
    %1220 = vmatpush1.msra.mxu0 %v104
    %1221 = vmatprep.subr.mxu0 %v109
    %1222 = vmatpush1.msra.mxu0 %v108
    %1223 = vmatprep.subr.mxu0 %v113
    %1224 = vmatpush1.msra.mxu0 %v112
    %1225 = vmatprep.subr.mxu0 %v117
    %1226 = vmatpush1.msra.mxu0 %v116
    %1227 = vmatprep.subr.mxu0 %v121
    %1228 = vmatpush1.msra.mxu0 %v120
    %1229 = vmatprep.subr.mxu0 %v125
    %1230 = vmatpush1.msra.mxu0 %v124
    %1231 = vmatprep.subr.mxu0 %v129
    %1232 = vmatpush1.msra.mxu0 %v128
    %1233 = vmatprep.subr.mxu0 %v133
    %1234 = vmatpush1.msra.mxu0 %v132
    %1235 = vmatprep.subr.mxu0 %v137
    %1236 = vmatpush1.msra.mxu0 %v136
    %1237 = vmatprep.subr.mxu0 %v141
    %1238 = vmatpush1.msra.mxu0 %v140
    %1239 = vmatprep.subr.mxu0 %v145
    %1240 = vmatpush1.msra.mxu0 %v144
    %1241 = vmatprep.subr.mxu0 %v149
    %1242 = vmatpush1.msra.mxu0 %v148
    %1243 = vmatprep.subr.mxu0 %v153
    %1244 = vmatpush1.msra.mxu0 %v152
    %1245 = vmatprep.subr.mxu0 %v157
    %1246 = vmatpush1.msra.mxu0 %v156
    %1247 = vmatprep.subr.mxu0 %v161
    %1248 = vmatpush1.msra.mxu0 %v160
    %1249 = vmatprep.subr.mxu0 %v165
    %1250 = vmatpush1.msra.mxu0 %v164
    %1251 = vmatprep.subr.mxu0 0.0
    %1252 = vmatpush1.msra.mxu0 0.0
    %1253 = vmatprep.subr.mxu0 0.0
    %1254 = vmatpush1.msra.mxu0 0.0
    %1255 = vmatprep.subr.mxu0 0.0
    %1256 = vmatpush1.msra.mxu0 0.0
    %1257 = vmatprep.subr.mxu0 0.0
    %1258 = vmatpush1.msra.mxu0 0.0
    %1259 = vmatprep.subr.mxu0 0.0
    %1260 = vmatpush1.msra.mxu0 0.0
    %1261 = vmatprep.subr.mxu0 0.0
    %1262 = vmatpush1.msra.mxu0 0.0
    %1263 = vmatprep.subr.mxu0 0.0
    %1264 = vmatpush1.msra.mxu0 0.0
    %1265 = vmatprep.subr.mxu0 0.0
    %1266 = vmatpush1.msra.mxu0 0.0
    %1267 = vmatprep.subr.mxu0 0.0
    %1268 = vmatpush1.msra.mxu0 0.0
    %1269 = vmatprep.subr.mxu0 0.0
    %1270 = vmatpush1.msra.mxu0 0.0
    %1271 = vmatprep.subr.mxu0 0.0
    %1272 = vmatpush1.msra.mxu0 0.0
    %1273 = vmatprep.subr.mxu0 0.0
    %1274 = vmatpush1.msra.mxu0 0.0
    %1275 = vmatprep.subr.mxu0 0.0
    %1276 = vmatpush1.msra.mxu0 0.0
    %1277 = vmatprep.subr.mxu0 0.0
    %1278 = vmatpush1.msra.mxu0 0.0
    %1279 = vmatprep.subr.mxu0 0.0
    %1280 = vmatpush1.msra.mxu0 0.0
    %1281 = vmatprep.subr.mxu0 0.0
    %1282 = vmatpush1.msra.mxu0 0.0
    %1283 = vmatprep.mubr.f32.mxu0 0.0
    %1284 = vmatmul.mubr.f32.gmra.mrb[0].mxu0 %v1049
    %v1285 = vpop.f32.mrb[0].mxu0
    %v1286 = vadd.f32 0.0, %v1285
    %v1287 = vpop.f32.mrb[0].mxu0
    %v1288 = vadd.f32 0.0, %v1287
    %1289 = vdwg.mxu0
    %1290 = vmatprep.subr.mxu0 %v107
    %1291 = vmatpush1.msra.mxu0 %v106
    %1292 = vmatprep.subr.mxu0 %v111
    %1293 = vmatpush1.msra.mxu0 %v110
    %1294 = vmatprep.subr.mxu0 %v115
    %1295 = vmatpush1.msra.mxu0 %v114
    %1296 = vmatprep.subr.mxu0 %v119
    %1297 = vmatpush1.msra.mxu0 %v118
    %1298 = vmatprep.subr.mxu0 %v123
    %1299 = vmatpush1.msra.mxu0 %v122
    %1300 = vmatprep.subr.mxu0 %v127
    %1301 = vmatpush1.msra.mxu0 %v126
    %1302 = vmatprep.subr.mxu0 %v131
    %1303 = vmatpush1.msra.mxu0 %v130
    %1304 = vmatprep.subr.mxu0 %v135
    %1305 = vmatpush1.msra.mxu0 %v134
    %1306 = vmatprep.subr.mxu0 %v139
    %1307 = vmatpush1.msra.mxu0 %v138
    %1308 = vmatprep.subr.mxu0 %v143
    %1309 = vmatpush1.msra.mxu0 %v142
    %1310 = vmatprep.subr.mxu0 %v147
    %1311 = vmatpush1.msra.mxu0 %v146
    %1312 = vmatprep.subr.mxu0 %v151
    %1313 = vmatpush1.msra.mxu0 %v150
    %1314 = vmatprep.subr.mxu0 %v155
    %1315 = vmatpush1.msra.mxu0 %v154
    %1316 = vmatprep.subr.mxu0 %v159
    %1317 = vmatpush1.msra.mxu0 %v158
    %1318 = vmatprep.subr.mxu0 %v163
    %1319 = vmatpush1.msra.mxu0 %v162
    %1320 = vmatprep.subr.mxu0 %v167
    %1321 = vmatpush1.msra.mxu0 %v166
    %1322 = vmatprep.subr.mxu0 0.0
    %1323 = vmatpush1.msra.mxu0 0.0
    %1324 = vmatprep.subr.mxu0 0.0
    %1325 = vmatpush1.msra.mxu0 0.0
    %1326 = vmatprep.subr.mxu0 0.0
    %1327 = vmatpush1.msra.mxu0 0.0
    %1328 = vmatprep.subr.mxu0 0.0
    %1329 = vmatpush1.msra.mxu0 0.0
    %1330 = vmatprep.subr.mxu0 0.0
    %1331 = vmatpush1.msra.mxu0 0.0
    %1332 = vmatprep.subr.mxu0 0.0
    %1333 = vmatpush1.msra.mxu0 0.0
    %1334 = vmatprep.subr.mxu0 0.0
    %1335 = vmatpush1.msra.mxu0 0.0
    %1336 = vmatprep.subr.mxu0 0.0
    %1337 = vmatpush1.msra.mxu0 0.0
    %1338 = vmatprep.subr.mxu0 0.0
    %1339 = vmatpush1.msra.mxu0 0.0
    %1340 = vmatprep.subr.mxu0 0.0
    %1341 = vmatpush1.msra.mxu0 0.0
    %1342 = vmatprep.subr.mxu0 0.0
    %1343 = vmatpush1.msra.mxu0 0.0
    %1344 = vmatprep.subr.mxu0 0.0
    %1345 = vmatpush1.msra.mxu0 0.0
    %1346 = vmatprep.subr.mxu0 0.0
    %1347 = vmatpush1.msra.mxu0 0.0
    %1348 = vmatprep.subr.mxu0 0.0
    %1349 = vmatpush1.msra.mxu0 0.0
    %1350 = vmatprep.subr.mxu0 0.0
    %1351 = vmatpush1.msra.mxu0 0.0
    %1352 = vmatprep.subr.mxu0 0.0
    %1353 = vmatpush1.msra.mxu0 0.0
    %1354 = vmatprep.mubr.f32.mxu0 0.0
    %1355 = vmatmul.mubr.f32.gmra.mrb[0].mxu0 %v1049
    %v1356 = vpop.f32.mrb[0].mxu0
    %v1357 = vadd.f32 0.0, %v1356
    %v1358 = vpop.f32.mrb[0].mxu0
    %v1359 = vadd.f32 0.0, %v1358
    %1360 = vdwg.mxu0
    %v1365 = vrot.slane %v1286, 4
    %v1366 = vrot.slane %v1288, 4
    %v1367 = vrot.slane %v1357, 4
    %v1368 = vrot.slane %v1359, 4
    %v1373 = vadd.f32 %v432, %v1365
    %v1374 = vadd.f32 %v434, %v1366
    %v1375 = vadd.f32 %v509, %v1367
    %v1376 = vadd.f32 %v511, %v1368
    %v1377 = vxor.u32 %v1373, 2147483648
    %v1378 = vmul.f32 %v1377, 1.442695
    %v1379 = vpow.pop %v1378
    %v1380 = vadd.f32 %v1379, 1.0
    %v1381 = vrcp.pop %v1380
    %v1382 = vmul.f32 1.0, %v1381
    %v1383 = vxor.u32 %v1374, 2147483648
    %v1384 = vmul.f32 %v1383, 1.442695
    %v1385 = vpow.pop %v1384
    %v1386 = vadd.f32 %v1385, 1.0
    %v1387 = vrcp.pop %v1386
    %v1388 = vmul.f32 1.0, %v1387
    %v1389 = vtanh.pop %v1375
    %v1390 = vxor.u32 %v1376, 2147483648
    %v1391 = vmul.f32 %v1390, 1.442695
    %v1392 = vpow.pop %v1391
    %v1393 = vadd.f32 %v1392, 1.0
    %v1394 = vrcp.pop %v1393
    %v1395 = vmul.f32 1.0, %v1394
    %v1397 = vrot.slane %v1043, 6
    %v1399 = vmul.f32 %v1388, %v1397
    %v1400 = vmul.f32 %v1382, %v1389
    %v1401 = vadd.f32 %v1399, %v1400
    %v1402 = vtanh.pop %v1401
    %v1403 = vmul.f32 %v1395, %v1402
    %v1405 = vrot.slane %v1218, 4
    %v1407 = vrot.slane %v1403, 4
    %v1408 = vrot.slane %v1405, 4
    %1411 = vmatprep.subr.mxu0 %v169
    %1412 = vmatpush1.msra.mxu0 %v168
    %1413 = vmatprep.subr.mxu0 %v173
    %1414 = vmatpush1.msra.mxu0 %v172
    %1415 = vmatprep.subr.mxu0 %v177
    %1416 = vmatpush1.msra.mxu0 %v176
    %1417 = vmatprep.subr.mxu0 %v181
    %1418 = vmatpush1.msra.mxu0 %v180
    %1419 = vmatprep.subr.mxu0 %v185
    %1420 = vmatpush1.msra.mxu0 %v184
    %1421 = vmatprep.subr.mxu0 %v189
    %1422 = vmatpush1.msra.mxu0 %v188
    %1423 = vmatprep.subr.mxu0 %v193
    %1424 = vmatpush1.msra.mxu0 %v192
    %1425 = vmatprep.subr.mxu0 %v197
    %1426 = vmatpush1.msra.mxu0 %v196
    %1427 = vmatprep.subr.mxu0 %v201
    %1428 = vmatpush1.msra.mxu0 %v200
    %1429 = vmatprep.subr.mxu0 %v205
    %1430 = vmatpush1.msra.mxu0 %v204
    %1431 = vmatprep.subr.mxu0 %v209
    %1432 = vmatpush1.msra.mxu0 %v208
    %1433 = vmatprep.subr.mxu0 %v213
    %1434 = vmatpush1.msra.mxu0 %v212
    %1435 = vmatprep.subr.mxu0 %v217
    %1436 = vmatpush1.msra.mxu0 %v216
    %1437 = vmatprep.subr.mxu0 %v221
    %1438 = vmatpush1.msra.mxu0 %v220
    %1439 = vmatprep.subr.mxu0 %v225
    %1440 = vmatpush1.msra.mxu0 %v224
    %1441 = vmatprep.subr.mxu0 %v229
    %1442 = vmatpush1.msra.mxu0 %v228
    %1443 = vmatprep.subr.mxu0 %v233
    %1444 = vmatpush1.msra.mxu0 %v232
    %1445 = vmatprep.subr.mxu0 %v237
    %1446 = vmatpush1.msra.mxu0 %v236
    %1447 = vmatprep.subr.mxu0 %v241
    %1448 = vmatpush1.msra.mxu0 %v240
    %1449 = vmatprep.subr.mxu0 %v245
    %1450 = vmatpush1.msra.mxu0 %v244
    %1451 = vmatprep.subr.mxu0 %v249
    %1452 = vmatpush1.msra.mxu0 %v248
    %1453 = vmatprep.subr.mxu0 %v253
    %1454 = vmatpush1.msra.mxu0 %v252
    %1455 = vmatprep.subr.mxu0 %v257
    %1456 = vmatpush1.msra.mxu0 %v256
    %1457 = vmatprep.subr.mxu0 %v261
    %1458 = vmatpush1.msra.mxu0 %v260
    %1459 = vmatprep.subr.mxu0 %v265
    %1460 = vmatpush1.msra.mxu0 %v264
    %1461 = vmatprep.subr.mxu0 %v269
    %1462 = vmatpush1.msra.mxu0 %v268
    %1463 = vmatprep.subr.mxu0 %v273
    %1464 = vmatpush1.msra.mxu0 %v272
    %1465 = vmatprep.subr.mxu0 %v277
    %1466 = vmatpush1.msra.mxu0 %v276
    %1467 = vmatprep.subr.mxu0 %v281
    %1468 = vmatpush1.msra.mxu0 %v280
    %1469 = vmatprep.subr.mxu0 %v285
    %1470 = vmatpush1.msra.mxu0 %v284
    %1471 = vmatprep.subr.mxu0 %v289
    %1472 = vmatpush1.msra.mxu0 %v288
    %1473 = vmatprep.subr.mxu0 %v293
    %1474 = vmatpush1.msra.mxu0 %v292
    %1475 = vmatprep.mubr.f32.mxu0 %v1408
    %1476 = vmatmul.mubr.f32.gmra.mrb[0].mxu0 %v1407
    %v1477 = vpop.f32.mrb[0].mxu0
    %v1478 = vadd.f32 %v301, %v1477
    %v1479 = vpop.f32.mrb[0].mxu0
    %v1480 = vadd.f32 %v305, %v1479
    %1481 = vdwg.mxu0
    %1482 = vmatprep.subr.mxu0 %v171
    %1483 = vmatpush1.msra.mxu0 %v170
    %1484 = vmatprep.subr.mxu0 %v175
    %1485 = vmatpush1.msra.mxu0 %v174
    %1486 = vmatprep.subr.mxu0 %v179
    %1487 = vmatpush1.msra.mxu0 %v178
    %1488 = vmatprep.subr.mxu0 %v183
    %1489 = vmatpush1.msra.mxu0 %v182
    %1490 = vmatprep.subr.mxu0 %v187
    %1491 = vmatpush1.msra.mxu0 %v186
    %1492 = vmatprep.subr.mxu0 %v191
    %1493 = vmatpush1.msra.mxu0 %v190
    %1494 = vmatprep.subr.mxu0 %v195
    %1495 = vmatpush1.msra.mxu0 %v194
    %1496 = vmatprep.subr.mxu0 %v199
    %1497 = vmatpush1.msra.mxu0 %v198
    %1498 = vmatprep.subr.mxu0 %v203
    %1499 = vmatpush1.msra.mxu0 %v202
    %1500 = vmatprep.subr.mxu0 %v207
    %1501 = vmatpush1.msra.mxu0 %v206
    %1502 = vmatprep.subr.mxu0 %v211
    %1503 = vmatpush1.msra.mxu0 %v210
    %1504 = vmatprep.subr.mxu0 %v215
    %1505 = vmatpush1.msra.mxu0 %v214
    %1506 = vmatprep.subr.mxu0 %v219
    %1507 = vmatpush1.msra.mxu0 %v218
    %1508 = vmatprep.subr.mxu0 %v223
    %1509 = vmatpush1.msra.mxu0 %v222
    %1510 = vmatprep.subr.mxu0 %v227
    %1511 = vmatpush1.msra.mxu0 %v226
    %1512 = vmatprep.subr.mxu0 %v231
    %1513 = vmatpush1.msra.mxu0 %v230
    %1514 = vmatprep.subr.mxu0 %v235
    %1515 = vmatpush1.msra.mxu0 %v234
    %1516 = vmatprep.subr.mxu0 %v239
    %1517 = vmatpush1.msra.mxu0 %v238
    %1518 = vmatprep.subr.mxu0 %v243
    %1519 = vmatpush1.msra.mxu0 %v242
    %1520 = vmatprep.subr.mxu0 %v247
    %1521 = vmatpush1.msra.mxu0 %v246
    %1522 = vmatprep.subr.mxu0 %v251
    %1523 = vmatpush1.msra.mxu0 %v250
    %1524 = vmatprep.subr.mxu0 %v255
    %1525 = vmatpush1.msra.mxu0 %v254
    %1526 = vmatprep.subr.mxu0 %v259
    %1527 = vmatpush1.msra.mxu0 %v258
    %1528 = vmatprep.subr.mxu0 %v263
    %1529 = vmatpush1.msra.mxu0 %v262
    %1530 = vmatprep.subr.mxu0 %v267
    %1531 = vmatpush1.msra.mxu0 %v266
    %1532 = vmatprep.subr.mxu0 %v271
    %1533 = vmatpush1.msra.mxu0 %v270
    %1534 = vmatprep.subr.mxu0 %v275
    %1535 = vmatpush1.msra.mxu0 %v274
    %1536 = vmatprep.subr.mxu0 %v279
    %1537 = vmatpush1.msra.mxu0 %v278
    %1538 = vmatprep.subr.mxu0 %v283
    %1539 = vmatpush1.msra.mxu0 %v282
    %1540 = vmatprep.subr.mxu0 %v287
    %1541 = vmatpush1.msra.mxu0 %v286
    %1542 = vmatprep.subr.mxu0 %v291
    %1543 = vmatpush1.msra.mxu0 %v290
    %1544 = vmatprep.subr.mxu0 %v295
    %1545 = vmatpush1.msra.mxu0 %v294
    %1546 = vmatprep.mubr.f32.mxu0 %v1408
    %1547 = vmatmul.mubr.f32.gmra.mrb[0].mxu0 %v1407
    %v1548 = vpop.f32.mrb[0].mxu0
    %v1549 = vadd.f32 %v309, %v1548
    %v1550 = vpop.f32.mrb[0].mxu0
    %v1551 = vadd.f32 %v313, %v1550
    %1552 = vdwg.mxu0
    %v1553 = vxor.u32 %v1478, 2147483648
    %v1554 = vmul.f32 %v1553, 1.442695
    %v1555 = vpow.pop %v1554
    %v1556 = vadd.f32 %v1555, 1.0
    %v1557 = vrcp.pop %v1556
    %v1558 = vmul.f32 1.0, %v1557
    %v1559 = vxor.u32 %v1480, 2147483648
    %v1560 = vmul.f32 %v1559, 1.442695
    %v1561 = vpow.pop %v1560
    %v1562 = vadd.f32 %v1561, 1.0
    %v1563 = vrcp.pop %v1562
    %v1564 = vmul.f32 1.0, %v1563
    %v1565 = vtanh.pop %v1549
    %v1566 = vxor.u32 %v1551, 2147483648
    %v1567 = vmul.f32 %v1566, 1.442695
    %v1568 = vpow.pop %v1567
    %v1569 = vadd.f32 %v1568, 1.0
    %v1570 = vrcp.pop %v1569
    %v1571 = vmul.f32 1.0, %v1570
    %v1572 = vmul.f32 %v1564, %v1216
    %v1573 = vmul.f32 %v1558, %v1565
    %v1574 = vadd.f32 %v1572, %v1573
    %v1575 = vtanh.pop %v1574
    %v1576 = vmul.f32 %v1571, %v1575
    %1577 = vmatprep.subr.mxu0 %v105
    %1578 = vmatpush1.msra.mxu0 %v104
    %1579 = vmatprep.subr.mxu0 %v109
    %1580 = vmatpush1.msra.mxu0 %v108
    %1581 = vmatprep.subr.mxu0 %v113
    %1582 = vmatpush1.msra.mxu0 %v112
    %1583 = vmatprep.subr.mxu0 %v117
    %1584 = vmatpush1.msra.mxu0 %v116
    %1585 = vmatprep.subr.mxu0 %v121
    %1586 = vmatpush1.msra.mxu0 %v120
    %1587 = vmatprep.subr.mxu0 %v125
    %1588 = vmatpush1.msra.mxu0 %v124
    %1589 = vmatprep.subr.mxu0 %v129
    %1590 = vmatpush1.msra.mxu0 %v128
    %1591 = vmatprep.subr.mxu0 %v133
    %1592 = vmatpush1.msra.mxu0 %v132
    %1593 = vmatprep.subr.mxu0 %v137
    %1594 = vmatpush1.msra.mxu0 %v136
    %1595 = vmatprep.subr.mxu0 %v141
    %1596 = vmatpush1.msra.mxu0 %v140
    %1597 = vmatprep.subr.mxu0 %v145
    %1598 = vmatpush1.msra.mxu0 %v144
    %1599 = vmatprep.subr.mxu0 %v149
    %1600 = vmatpush1.msra.mxu0 %v148
    %1601 = vmatprep.subr.mxu0 %v153
    %1602 = vmatpush1.msra.mxu0 %v152
    %1603 = vmatprep.subr.mxu0 %v157
    %1604 = vmatpush1.msra.mxu0 %v156
    %1605 = vmatprep.subr.mxu0 %v161
    %1606 = vmatpush1.msra.mxu0 %v160
    %1607 = vmatprep.subr.mxu0 %v165
    %1608 = vmatpush1.msra.mxu0 %v164
    %1609 = vmatprep.subr.mxu0 0.0
    %1610 = vmatpush1.msra.mxu0 0.0
    %1611 = vmatprep.subr.mxu0 0.0
    %1612 = vmatpush1.msra.mxu0 0.0
    %1613 = vmatprep.subr.mxu0 0.0
    %1614 = vmatpush1.msra.mxu0 0.0
    %1615 = vmatprep.subr.mxu0 0.0
    %1616 = vmatpush1.msra.mxu0 0.0
    %1617 = vmatprep.subr.mxu0 0.0
    %1618 = vmatpush1.msra.mxu0 0.0
    %1619 = vmatprep.subr.mxu0 0.0
    %1620 = vmatpush1.msra.mxu0 0.0
    %1621 = vmatprep.subr.mxu0 0.0
    %1622 = vmatpush1.msra.mxu0 0.0
    %1623 = vmatprep.subr.mxu0 0.0
    %1624 = vmatpush1.msra.mxu0 0.0
    %1625 = vmatprep.subr.mxu0 0.0
    %1626 = vmatpush1.msra.mxu0 0.0
    %1627 = vmatprep.subr.mxu0 0.0
    %1628 = vmatpush1.msra.mxu0 0.0
    %1629 = vmatprep.subr.mxu0 0.0
    %1630 = vmatpush1.msra.mxu0 0.0
    %1631 = vmatprep.subr.mxu0 0.0
    %1632 = vmatpush1.msra.mxu0 0.0
    %1633 = vmatprep.subr.mxu0 0.0
    %1634 = vmatpush1.msra.mxu0 0.0
    %1635 = vmatprep.subr.mxu0 0.0
    %1636 = vmatpush1.msra.mxu0 0.0
    %1637 = vmatprep.subr.mxu0 0.0
    %1638 = vmatpush1.msra.mxu0 0.0
    %1639 = vmatprep.subr.mxu0 0.0
    %1640 = vmatpush1.msra.mxu0 0.0
    %1641 = vmatprep.mubr.f32.mxu0 0.0
    %1642 = vmatmul.mubr.f32.gmra.mrb[0].mxu0 %v1407
    %v1643 = vpop.f32.mrb[0].mxu0
    %v1644 = vadd.f32 0.0, %v1643
    %v1645 = vpop.f32.mrb[0].mxu0
    %v1646 = vadd.f32 0.0, %v1645
    %1647 = vdwg.mxu0
    %1648 = vmatprep.subr.mxu0 %v107
    %1649 = vmatpush1.msra.mxu0 %v106
    %1650 = vmatprep.subr.mxu0 %v111
    %1651 = vmatpush1.msra.mxu0 %v110
    %1652 = vmatprep.subr.mxu0 %v115
    %1653 = vmatpush1.msra.mxu0 %v114
    %1654 = vmatprep.subr.mxu0 %v119
    %1655 = vmatpush1.msra.mxu0 %v118
    %1656 = vmatprep.subr.mxu0 %v123
    %1657 = vmatpush1.msra.mxu0 %v122
    %1658 = vmatprep.subr.mxu0 %v127
    %1659 = vmatpush1.msra.mxu0 %v126
    %1660 = vmatprep.subr.mxu0 %v131
    %1661 = vmatpush1.msra.mxu0 %v130
    %1662 = vmatprep.subr.mxu0 %v135
    %1663 = vmatpush1.msra.mxu0 %v134
    %1664 = vmatprep.subr.mxu0 %v139
    %1665 = vmatpush1.msra.mxu0 %v138
    %1666 = vmatprep.subr.mxu0 %v143
    %1667 = vmatpush1.msra.mxu0 %v142
    %1668 = vmatprep.subr.mxu0 %v147
    %1669 = vmatpush1.msra.mxu0 %v146
    %1670 = vmatprep.subr.mxu0 %v151
    %1671 = vmatpush1.msra.mxu0 %v150
    %1672 = vmatprep.subr.mxu0 %v155
    %1673 = vmatpush1.msra.mxu0 %v154
    %1674 = vmatprep.subr.mxu0 %v159
    %1675 = vmatpush1.msra.mxu0 %v158
    %1676 = vmatprep.subr.mxu0 %v163
    %1677 = vmatpush1.msra.mxu0 %v162
    %1678 = vmatprep.subr.mxu0 %v167
    %1679 = vmatpush1.msra.mxu0 %v166
    %1680 = vmatprep.subr.mxu0 0.0
    %1681 = vmatpush1.msra.mxu0 0.0
    %1682 = vmatprep.subr.mxu0 0.0
    %1683 = vmatpush1.msra.mxu0 0.0
    %1684 = vmatprep.subr.mxu0 0.0
    %1685 = vmatpush1.msra.mxu0 0.0
    %1686 = vmatprep.subr.mxu0 0.0
    %1687 = vmatpush1.msra.mxu0 0.0
    %1688 = vmatprep.subr.mxu0 0.0
    %1689 = vmatpush1.msra.mxu0 0.0
    %1690 = vmatprep.subr.mxu0 0.0
    %1691 = vmatpush1.msra.mxu0 0.0
    %1692 = vmatprep.subr.mxu0 0.0
    %1693 = vmatpush1.msra.mxu0 0.0
    %1694 = vmatprep.subr.mxu0 0.0
    %1695 = vmatpush1.msra.mxu0 0.0
    %1696 = vmatprep.subr.mxu0 0.0
    %1697 = vmatpush1.msra.mxu0 0.0
    %1698 = vmatprep.subr.mxu0 0.0
    %1699 = vmatpush1.msra.mxu0 0.0
    %1700 = vmatprep.subr.mxu0 0.0
    %1701 = vmatpush1.msra.mxu0 0.0
    %1702 = vmatprep.subr.mxu0 0.0
    %1703 = vmatpush1.msra.mxu0 0.0
    %1704 = vmatprep.subr.mxu0 0.0
    %1705 = vmatpush1.msra.mxu0 0.0
    %1706 = vmatprep.subr.mxu0 0.0
    %1707 = vmatpush1.msra.mxu0 0.0
    %1708 = vmatprep.subr.mxu0 0.0
    %1709 = vmatpush1.msra.mxu0 0.0
    %1710 = vmatprep.subr.mxu0 0.0
    %1711 = vmatpush1.msra.mxu0 0.0
    %1712 = vmatprep.mubr.f32.mxu0 0.0
    %1713 = vmatmul.mubr.f32.gmra.mrb[0].mxu0 %v1407
    %v1714 = vpop.f32.mrb[0].mxu0
    %v1715 = vadd.f32 0.0, %v1714
    %v1716 = vpop.f32.mrb[0].mxu0
    %v1717 = vadd.f32 0.0, %v1716
    %1718 = vdwg.mxu0
    %v1723 = vrot.slane %v1644, 2
    %v1724 = vrot.slane %v1646, 2
    %v1725 = vrot.slane %v1715, 2
    %v1726 = vrot.slane %v1717, 2
    %v1731 = vadd.f32 %v432, %v1723
    %v1732 = vadd.f32 %v434, %v1724
    %v1733 = vadd.f32 %v509, %v1725
    %v1734 = vadd.f32 %v511, %v1726
    %v1735 = vxor.u32 %v1731, 2147483648
    %v1736 = vmul.f32 %v1735, 1.442695
    %v1737 = vpow.pop %v1736
    %v1738 = vadd.f32 %v1737, 1.0
    %v1739 = vrcp.pop %v1738
    %v1740 = vmul.f32 1.0, %v1739
    %v1741 = vxor.u32 %v1732, 2147483648
    %v1742 = vmul.f32 %v1741, 1.442695
    %v1743 = vpow.pop %v1742
    %v1744 = vadd.f32 %v1743, 1.0
    %v1745 = vrcp.pop %v1744
    %v1746 = vmul.f32 1.0, %v1745
    %v1747 = vtanh.pop %v1733
    %v1748 = vxor.u32 %v1734, 2147483648
    %v1749 = vmul.f32 %v1748, 1.442695
    %v1750 = vpow.pop %v1749
    %v1751 = vadd.f32 %v1750, 1.0
    %v1752 = vrcp.pop %v1751
    %v1753 = vmul.f32 1.0, %v1752
    %v1755 = vrot.slane %v1401, 6
    %v1757 = vmul.f32 %v1746, %v1755
    %v1758 = vmul.f32 %v1740, %v1747
    %v1759 = vadd.f32 %v1757, %v1758
    %v1760 = vtanh.pop %v1759
    %v1761 = vmul.f32 %v1753, %v1760
    %v1763 = vrot.slane %v1576, 2
    %v1765 = vrot.slane %v1761, 6
    %v1766 = vrot.slane %v1763, 6
    %1769 = vmatprep.subr.mxu0 %v169
    %1770 = vmatpush1.msra.mxu0 %v168
    %1771 = vmatprep.subr.mxu0 %v173
    %1772 = vmatpush1.msra.mxu0 %v172
    %1773 = vmatprep.subr.mxu0 %v177
    %1774 = vmatpush1.msra.mxu0 %v176
    %1775 = vmatprep.subr.mxu0 %v181
    %1776 = vmatpush1.msra.mxu0 %v180
    %1777 = vmatprep.subr.mxu0 %v185
    %1778 = vmatpush1.msra.mxu0 %v184
    %1779 = vmatprep.subr.mxu0 %v189
    %1780 = vmatpush1.msra.mxu0 %v188
    %1781 = vmatprep.subr.mxu0 %v193
    %1782 = vmatpush1.msra.mxu0 %v192
    %1783 = vmatprep.subr.mxu0 %v197
    %1784 = vmatpush1.msra.mxu0 %v196
    %1785 = vmatprep.subr.mxu0 %v201
    %1786 = vmatpush1.msra.mxu0 %v200
    %1787 = vmatprep.subr.mxu0 %v205
    %1788 = vmatpush1.msra.mxu0 %v204
    %1789 = vmatprep.subr.mxu0 %v209
    %1790 = vmatpush1.msra.mxu0 %v208
    %1791 = vmatprep.subr.mxu0 %v213
    %1792 = vmatpush1.msra.mxu0 %v212
    %1793 = vmatprep.subr.mxu0 %v217
    %1794 = vmatpush1.msra.mxu0 %v216
    %1795 = vmatprep.subr.mxu0 %v221
    %1796 = vmatpush1.msra.mxu0 %v220
    %1797 = vmatprep.subr.mxu0 %v225
    %1798 = vmatpush1.msra.mxu0 %v224
    %1799 = vmatprep.subr.mxu0 %v229
    %1800 = vmatpush1.msra.mxu0 %v228
    %1801 = vmatprep.subr.mxu0 %v233
    %1802 = vmatpush1.msra.mxu0 %v232
    %1803 = vmatprep.subr.mxu0 %v237
    %1804 = vmatpush1.msra.mxu0 %v236
    %1805 = vmatprep.subr.mxu0 %v241
    %1806 = vmatpush1.msra.mxu0 %v240
    %1807 = vmatprep.subr.mxu0 %v245
    %1808 = vmatpush1.msra.mxu0 %v244
    %1809 = vmatprep.subr.mxu0 %v249
    %1810 = vmatpush1.msra.mxu0 %v248
    %1811 = vmatprep.subr.mxu0 %v253
    %1812 = vmatpush1.msra.mxu0 %v252
    %1813 = vmatprep.subr.mxu0 %v257
    %1814 = vmatpush1.msra.mxu0 %v256
    %1815 = vmatprep.subr.mxu0 %v261
    %1816 = vmatpush1.msra.mxu0 %v260
    %1817 = vmatprep.subr.mxu0 %v265
    %1818 = vmatpush1.msra.mxu0 %v264
    %1819 = vmatprep.subr.mxu0 %v269
    %1820 = vmatpush1.msra.mxu0 %v268
    %1821 = vmatprep.subr.mxu0 %v273
    %1822 = vmatpush1.msra.mxu0 %v272
    %1823 = vmatprep.subr.mxu0 %v277
    %1824 = vmatpush1.msra.mxu0 %v276
    %1825 = vmatprep.subr.mxu0 %v281
    %1826 = vmatpush1.msra.mxu0 %v280
    %1827 = vmatprep.subr.mxu0 %v285
    %1828 = vmatpush1.msra.mxu0 %v284
    %1829 = vmatprep.subr.mxu0 %v289
    %1830 = vmatpush1.msra.mxu0 %v288
    %1831 = vmatprep.subr.mxu0 %v293
    %1832 = vmatpush1.msra.mxu0 %v292
    %1833 = vmatprep.mubr.f32.mxu0 %v1766
    %1834 = vmatmul.mubr.f32.gmra.mrb[0].mxu0 %v1765
    %v1835 = vpop.f32.mrb[0].mxu0
    %v1836 = vadd.f32 %v301, %v1835
    %v1837 = vpop.f32.mrb[0].mxu0
    %v1838 = vadd.f32 %v305, %v1837
    %1839 = vdwg.mxu0
    %1840 = vmatprep.subr.mxu0 %v171
    %1841 = vmatpush1.msra.mxu0 %v170
    %1842 = vmatprep.subr.mxu0 %v175
    %1843 = vmatpush1.msra.mxu0 %v174
    %1844 = vmatprep.subr.mxu0 %v179
    %1845 = vmatpush1.msra.mxu0 %v178
    %1846 = vmatprep.subr.mxu0 %v183
    %1847 = vmatpush1.msra.mxu0 %v182
    %1848 = vmatprep.subr.mxu0 %v187
    %1849 = vmatpush1.msra.mxu0 %v186
    %1850 = vmatprep.subr.mxu0 %v191
    %1851 = vmatpush1.msra.mxu0 %v190
    %1852 = vmatprep.subr.mxu0 %v195
    %1853 = vmatpush1.msra.mxu0 %v194
    %1854 = vmatprep.subr.mxu0 %v199
    %1855 = vmatpush1.msra.mxu0 %v198
    %1856 = vmatprep.subr.mxu0 %v203
    %1857 = vmatpush1.msra.mxu0 %v202
    %1858 = vmatprep.subr.mxu0 %v207
    %1859 = vmatpush1.msra.mxu0 %v206
    %1860 = vmatprep.subr.mxu0 %v211
    %1861 = vmatpush1.msra.mxu0 %v210
    %1862 = vmatprep.subr.mxu0 %v215
    %1863 = vmatpush1.msra.mxu0 %v214
    %1864 = vmatprep.subr.mxu0 %v219
    %1865 = vmatpush1.msra.mxu0 %v218
    %1866 = vmatprep.subr.mxu0 %v223
    %1867 = vmatpush1.msra.mxu0 %v222
    %1868 = vmatprep.subr.mxu0 %v227
    %1869 = vmatpush1.msra.mxu0 %v226
    %1870 = vmatprep.subr.mxu0 %v231
    %1871 = vmatpush1.msra.mxu0 %v230
    %1872 = vmatprep.subr.mxu0 %v235
    %1873 = vmatpush1.msra.mxu0 %v234
    %1874 = vmatprep.subr.mxu0 %v239
    %1875 = vmatpush1.msra.mxu0 %v238
    %1876 = vmatprep.subr.mxu0 %v243
    %1877 = vmatpush1.msra.mxu0 %v242
    %1878 = vmatprep.subr.mxu0 %v247
    %1879 = vmatpush1.msra.mxu0 %v246
    %1880 = vmatprep.subr.mxu0 %v251
    %1881 = vmatpush1.msra.mxu0 %v250
    %1882 = vmatprep.subr.mxu0 %v255
    %1883 = vmatpush1.msra.mxu0 %v254
    %1884 = vmatprep.subr.mxu0 %v259
    %1885 = vmatpush1.msra.mxu0 %v258
    %1886 = vmatprep.subr.mxu0 %v263
    %1887 = vmatpush1.msra.mxu0 %v262
    %1888 = vmatprep.subr.mxu0 %v267
    %1889 = vmatpush1.msra.mxu0 %v266
    %1890 = vmatprep.subr.mxu0 %v271
    %1891 = vmatpush1.msra.mxu0 %v270
    %1892 = vmatprep.subr.mxu0 %v275
    %1893 = vmatpush1.msra.mxu0 %v274
    %1894 = vmatprep.subr.mxu0 %v279
    %1895 = vmatpush1.msra.mxu0 %v278
    %1896 = vmatprep.subr.mxu0 %v283
    %1897 = vmatpush1.msra.mxu0 %v282
    %1898 = vmatprep.subr.mxu0 %v287
    %1899 = vmatpush1.msra.mxu0 %v286
    %1900 = vmatprep.subr.mxu0 %v291
    %1901 = vmatpush1.msra.mxu0 %v290
    %1902 = vmatprep.subr.mxu0 %v295
    %1903 = vmatpush1.msra.mxu0 %v294
    %1904 = vmatprep.mubr.f32.mxu0 %v1766
    %1905 = vmatmul.mubr.f32.gmra.mrb[0].mxu0 %v1765
    %v1906 = vpop.f32.mrb[0].mxu0
    %v1907 = vadd.f32 %v309, %v1906
    %v1908 = vpop.f32.mrb[0].mxu0
    %v1909 = vadd.f32 %v313, %v1908
    %1910 = vdwg.mxu0
    %v1911 = vxor.u32 %v1836, 2147483648
    %v1912 = vmul.f32 %v1911, 1.442695
    %v1913 = vpow.pop %v1912
    %v1914 = vadd.f32 %v1913, 1.0
    %v1915 = vrcp.pop %v1914
    %v1916 = vmul.f32 1.0, %v1915
    %v1917 = vxor.u32 %v1838, 2147483648
    %v1918 = vmul.f32 %v1917, 1.442695
    %v1919 = vpow.pop %v1918
    %v1920 = vadd.f32 %v1919, 1.0
    %v1921 = vrcp.pop %v1920
    %v1922 = vmul.f32 1.0, %v1921
    %v1923 = vtanh.pop %v1907
    %v1924 = vxor.u32 %v1909, 2147483648
    %v1925 = vmul.f32 %v1924, 1.442695
    %v1926 = vpow.pop %v1925
    %v1927 = vadd.f32 %v1926, 1.0
    %v1928 = vrcp.pop %v1927
    %v1929 = vmul.f32 1.0, %v1928
    %v1930 = vmul.f32 %v1922, %v1574
    %v1931 = vmul.f32 %v1916, %v1923
    %v1932 = vadd.f32 %v1930, %v1931
    %v1933 = vtanh.pop %v1932
    %v1934 = vmul.f32 %v1929, %v1933
    %1935 = vmatprep.subr.mxu0 %v105
    %1936 = vmatpush1.msra.mxu0 %v104
    %1937 = vmatprep.subr.mxu0 %v109
    %1938 = vmatpush1.msra.mxu0 %v108
    %1939 = vmatprep.subr.mxu0 %v113
    %1940 = vmatpush1.msra.mxu0 %v112
    %1941 = vmatprep.subr.mxu0 %v117
    %1942 = vmatpush1.msra.mxu0 %v116
    %1943 = vmatprep.subr.mxu0 %v121
    %1944 = vmatpush1.msra.mxu0 %v120
    %1945 = vmatprep.subr.mxu0 %v125
    %1946 = vmatpush1.msra.mxu0 %v124
    %1947 = vmatprep.subr.mxu0 %v129
    %1948 = vmatpush1.msra.mxu0 %v128
    %1949 = vmatprep.subr.mxu0 %v133
    %1950 = vmatpush1.msra.mxu0 %v132
    %1951 = vmatprep.subr.mxu0 %v137
    %1952 = vmatpush1.msra.mxu0 %v136
    %1953 = vmatprep.subr.mxu0 %v141
    %1954 = vmatpush1.msra.mxu0 %v140
    %1955 = vmatprep.subr.mxu0 %v145
    %1956 = vmatpush1.msra.mxu0 %v144
    %1957 = vmatprep.subr.mxu0 %v149
    %1958 = vmatpush1.msra.mxu0 %v148
    %1959 = vmatprep.subr.mxu0 %v153
    %1960 = vmatpush1.msra.mxu0 %v152
    %1961 = vmatprep.subr.mxu0 %v157
    %1962 = vmatpush1.msra.mxu0 %v156
    %1963 = vmatprep.subr.mxu0 %v161
    %1964 = vmatpush1.msra.mxu0 %v160
    %1965 = vmatprep.subr.mxu0 %v165
    %1966 = vmatpush1.msra.mxu0 %v164
    %1967 = vmatprep.subr.mxu0 0.0
    %1968 = vmatpush1.msra.mxu0 0.0
    %1969 = vmatprep.subr.mxu0 0.0
    %1970 = vmatpush1.msra.mxu0 0.0
    %1971 = vmatprep.subr.mxu0 0.0
    %1972 = vmatpush1.msra.mxu0 0.0
    %1973 = vmatprep.subr.mxu0 0.0
    %1974 = vmatpush1.msra.mxu0 0.0
    %1975 = vmatprep.subr.mxu0 0.0
    %1976 = vmatpush1.msra.mxu0 0.0
    %1977 = vmatprep.subr.mxu0 0.0
    %1978 = vmatpush1.msra.mxu0 0.0
    %1979 = vmatprep.subr.mxu0 0.0
    %1980 = vmatpush1.msra.mxu0 0.0
    %1981 = vmatprep.subr.mxu0 0.0
    %1982 = vmatpush1.msra.mxu0 0.0
    %1983 = vmatprep.subr.mxu0 0.0
    %1984 = vmatpush1.msra.mxu0 0.0
    %1985 = vmatprep.subr.mxu0 0.0
    %1986 = vmatpush1.msra.mxu0 0.0
    %1987 = vmatprep.subr.mxu0 0.0
    %1988 = vmatpush1.msra.mxu0 0.0
    %1989 = vmatprep.subr.mxu0 0.0
    %1990 = vmatpush1.msra.mxu0 0.0
    %1991 = vmatprep.subr.mxu0 0.0
    %1992 = vmatpush1.msra.mxu0 0.0
    %1993 = vmatprep.subr.mxu0 0.0
    %1994 = vmatpush1.msra.mxu0 0.0
    %1995 = vmatprep.subr.mxu0 0.0
    %1996 = vmatpush1.msra.mxu0 0.0
    %1997 = vmatprep.subr.mxu0 0.0
    %1998 = vmatpush1.msra.mxu0 0.0
    %1999 = vmatprep.mubr.f32.mxu0 0.0
    %2000 = vmatmul.mubr.f32.gmra.mrb[0].mxu0 %v1765
    %v2001 = vpop.f32.mrb[0].mxu0
    %v2002 = vadd.f32 0.0, %v2001
    %v2003 = vpop.f32.mrb[0].mxu0
    %v2004 = vadd.f32 0.0, %v2003
    %2005 = vdwg.mxu0
    %2006 = vmatprep.subr.mxu0 %v107
    %2007 = vmatpush1.msra.mxu0 %v106
    %2008 = vmatprep.subr.mxu0 %v111
    %2009 = vmatpush1.msra.mxu0 %v110
    %2010 = vmatprep.subr.mxu0 %v115
    %2011 = vmatpush1.msra.mxu0 %v114
    %2012 = vmatprep.subr.mxu0 %v119
    %2013 = vmatpush1.msra.mxu0 %v118
    %2014 = vmatprep.subr.mxu0 %v123
    %2015 = vmatpush1.msra.mxu0 %v122
    %2016 = vmatprep.subr.mxu0 %v127
    %2017 = vmatpush1.msra.mxu0 %v126
    %2018 = vmatprep.subr.mxu0 %v131
    %2019 = vmatpush1.msra.mxu0 %v130
    %2020 = vmatprep.subr.mxu0 %v135
    %2021 = vmatpush1.msra.mxu0 %v134
    %2022 = vmatprep.subr.mxu0 %v139
    %2023 = vmatpush1.msra.mxu0 %v138
    %2024 = vmatprep.subr.mxu0 %v143
    %2025 = vmatpush1.msra.mxu0 %v142
    %2026 = vmatprep.subr.mxu0 %v147
    %2027 = vmatpush1.msra.mxu0 %v146
    %2028 = vmatprep.subr.mxu0 %v151
    %2029 = vmatpush1.msra.mxu0 %v150
    %2030 = vmatprep.subr.mxu0 %v155
    %2031 = vmatpush1.msra.mxu0 %v154
    %2032 = vmatprep.subr.mxu0 %v159
    %2033 = vmatpush1.msra.mxu0 %v158
    %2034 = vmatprep.subr.mxu0 %v163
    %2035 = vmatpush1.msra.mxu0 %v162
    %2036 = vmatprep.subr.mxu0 %v167
    %2037 = vmatpush1.msra.mxu0 %v166
    %2038 = vmatprep.subr.mxu0 0.0
    %2039 = vmatpush1.msra.mxu0 0.0
    %2040 = vmatprep.subr.mxu0 0.0
    %2041 = vmatpush1.msra.mxu0 0.0
    %2042 = vmatprep.subr.mxu0 0.0
    %2043 = vmatpush1.msra.mxu0 0.0
    %2044 = vmatprep.subr.mxu0 0.0
    %2045 = vmatpush1.msra.mxu0 0.0
    %2046 = vmatprep.subr.mxu0 0.0
    %2047 = vmatpush1.msra.mxu0 0.0
    %2048 = vmatprep.subr.mxu0 0.0
    %2049 = vmatpush1.msra.mxu0 0.0
    %2050 = vmatprep.subr.mxu0 0.0
    %2051 = vmatpush1.msra.mxu0 0.0
    %2052 = vmatprep.subr.mxu0 0.0
    %2053 = vmatpush1.msra.mxu0 0.0
    %2054 = vmatprep.subr.mxu0 0.0
    %2055 = vmatpush1.msra.mxu0 0.0
    %2056 = vmatprep.subr.mxu0 0.0
    %2057 = vmatpush1.msra.mxu0 0.0
    %2058 = vmatprep.subr.mxu0 0.0
    %2059 = vmatpush1.msra.mxu0 0.0
    %2060 = vmatprep.subr.mxu0 0.0
    %2061 = vmatpush1.msra.mxu0 0.0
    %2062 = vmatprep.subr.mxu0 0.0
    %2063 = vmatpush1.msra.mxu0 0.0
    %2064 = vmatprep.subr.mxu0 0.0
    %2065 = vmatpush1.msra.mxu0 0.0
    %2066 = vmatprep.subr.mxu0 0.0
    %2067 = vmatpush1.msra.mxu0 0.0
    %2068 = vmatprep.subr.mxu0 0.0
    %2069 = vmatpush1.msra.mxu0 0.0
    %2070 = vmatprep.mubr.f32.mxu0 0.0
    %2071 = vmatmul.mubr.f32.gmra.mrb[0].mxu0 %v1765
    %v2072 = vpop.f32.mrb[0].mxu0
    %v2073 = vadd.f32 0.0, %v2072
    %v2074 = vpop.f32.mrb[0].mxu0
    %v2075 = vadd.f32 0.0, %v2074
    %2076 = vdwg.mxu0
    %v2077 = vadd.f32 %v438, %v2002
    %v2078 = vadd.f32 %v440, %v2004
    %v2079 = vadd.f32 %v515, %v2073
    %v2080 = vadd.f32 %v517, %v2075
    %v2081 = vxor.u32 %v2077, 2147483648
    %v2082 = vmul.f32 %v2081, 1.442695
    %v2083 = vpow.pop %v2082
    %v2084 = vadd.f32 %v2083, 1.0
    %v2085 = vrcp.pop %v2084
    %v2086 = vmul.f32 1.0, %v2085
    %v2087 = vxor.u32 %v2078, 2147483648
    %v2088 = vmul.f32 %v2087, 1.442695
    %v2089 = vpow.pop %v2088
    %v2090 = vadd.f32 %v2089, 1.0
    %v2091 = vrcp.pop %v2090
    %v2092 = vmul.f32 1.0, %v2091
    %v2093 = vtanh.pop %v2079
    %v2094 = vxor.u32 %v2080, 2147483648
    %v2095 = vmul.f32 %v2094, 1.442695
    %v2096 = vpow.pop %v2095
    %v2097 = vadd.f32 %v2096, 1.0
    %v2098 = vrcp.pop %v2097
    %v2099 = vmul.f32 1.0, %v2098
    %v2101 = vrot.slane %v1759, 6
    %v2103 = vmul.f32 %v2092, %v2101
    %v2104 = vmul.f32 %v2086, %v2093
    %v2105 = vadd.f32 %v2103, %v2104
    %v2106 = vtanh.pop %v2105
    %v2107 = vmul.f32 %v2099, %v2106
    %2108 = vmatprep.subr.mxu0 %v169
    %2109 = vmatpush1.msra.mxu0 %v168
    %2110 = vmatprep.subr.mxu0 %v173
    %2111 = vmatpush1.msra.mxu0 %v172
    %2112 = vmatprep.subr.mxu0 %v177
    %2113 = vmatpush1.msra.mxu0 %v176
    %2114 = vmatprep.subr.mxu0 %v181
    %2115 = vmatpush1.msra.mxu0 %v180
    %2116 = vmatprep.subr.mxu0 %v185
    %2117 = vmatpush1.msra.mxu0 %v184
    %2118 = vmatprep.subr.mxu0 %v189
    %2119 = vmatpush1.msra.mxu0 %v188
    %2120 = vmatprep.subr.mxu0 %v193
    %2121 = vmatpush1.msra.mxu0 %v192
    %2122 = vmatprep.subr.mxu0 %v197
    %2123 = vmatpush1.msra.mxu0 %v196
    %2124 = vmatprep.subr.mxu0 %v201
    %2125 = vmatpush1.msra.mxu0 %v200
    %2126 = vmatprep.subr.mxu0 %v205
    %2127 = vmatpush1.msra.mxu0 %v204
    %2128 = vmatprep.subr.mxu0 %v209
    %2129 = vmatpush1.msra.mxu0 %v208
    %2130 = vmatprep.subr.mxu0 %v213
    %2131 = vmatpush1.msra.mxu0 %v212
    %2132 = vmatprep.subr.mxu0 %v217
    %2133 = vmatpush1.msra.mxu0 %v216
    %2134 = vmatprep.subr.mxu0 %v221
    %2135 = vmatpush1.msra.mxu0 %v220
    %2136 = vmatprep.subr.mxu0 %v225
    %2137 = vmatpush1.msra.mxu0 %v224
    %2138 = vmatprep.subr.mxu0 %v229
    %2139 = vmatpush1.msra.mxu0 %v228
    %2140 = vmatprep.subr.mxu0 %v233
    %2141 = vmatpush1.msra.mxu0 %v232
    %2142 = vmatprep.subr.mxu0 %v237
    %2143 = vmatpush1.msra.mxu0 %v236
    %2144 = vmatprep.subr.mxu0 %v241
    %2145 = vmatpush1.msra.mxu0 %v240
    %2146 = vmatprep.subr.mxu0 %v245
    %2147 = vmatpush1.msra.mxu0 %v244
    %2148 = vmatprep.subr.mxu0 %v249
    %2149 = vmatpush1.msra.mxu0 %v248
    %2150 = vmatprep.subr.mxu0 %v253
    %2151 = vmatpush1.msra.mxu0 %v252
    %2152 = vmatprep.subr.mxu0 %v257
    %2153 = vmatpush1.msra.mxu0 %v256
    %2154 = vmatprep.subr.mxu0 %v261
    %2155 = vmatpush1.msra.mxu0 %v260
    %2156 = vmatprep.subr.mxu0 %v265
    %2157 = vmatpush1.msra.mxu0 %v264
    %2158 = vmatprep.subr.mxu0 %v269
    %2159 = vmatpush1.msra.mxu0 %v268
    %2160 = vmatprep.subr.mxu0 %v273
    %2161 = vmatpush1.msra.mxu0 %v272
    %2162 = vmatprep.subr.mxu0 %v277
    %2163 = vmatpush1.msra.mxu0 %v276
    %2164 = vmatprep.subr.mxu0 %v281
    %2165 = vmatpush1.msra.mxu0 %v280
    %2166 = vmatprep.subr.mxu0 %v285
    %2167 = vmatpush1.msra.mxu0 %v284
    %2168 = vmatprep.subr.mxu0 %v289
    %2169 = vmatpush1.msra.mxu0 %v288
    %2170 = vmatprep.subr.mxu0 %v293
    %2171 = vmatpush1.msra.mxu0 %v292
    %2172 = vmatprep.mubr.f32.mxu0 %v1934
    %2173 = vmatmul.mubr.f32.gmra.mrb[0].mxu0 %v2107
    %v2174 = vpop.f32.mrb[0].mxu0
    %v2175 = vadd.f32 %v301, %v2174
    %v2176 = vpop.f32.mrb[0].mxu0
    %v2177 = vadd.f32 %v305, %v2176
    %2178 = vdwg.mxu0
    %2179 = vmatprep.subr.mxu0 %v171
    %2180 = vmatpush1.msra.mxu0 %v170
    %2181 = vmatprep.subr.mxu0 %v175
    %2182 = vmatpush1.msra.mxu0 %v174
    %2183 = vmatprep.subr.mxu0 %v179
    %2184 = vmatpush1.msra.mxu0 %v178
    %2185 = vmatprep.subr.mxu0 %v183
    %2186 = vmatpush1.msra.mxu0 %v182
    %2187 = vmatprep.subr.mxu0 %v187
    %2188 = vmatpush1.msra.mxu0 %v186
    %2189 = vmatprep.subr.mxu0 %v191
    %2190 = vmatpush1.msra.mxu0 %v190
    %2191 = vmatprep.subr.mxu0 %v195
    %2192 = vmatpush1.msra.mxu0 %v194
    %2193 = vmatprep.subr.mxu0 %v199
    %2194 = vmatpush1.msra.mxu0 %v198
    %2195 = vmatprep.subr.mxu0 %v203
    %2196 = vmatpush1.msra.mxu0 %v202
    %2197 = vmatprep.subr.mxu0 %v207
    %2198 = vmatpush1.msra.mxu0 %v206
    %2199 = vmatprep.subr.mxu0 %v211
    %2200 = vmatpush1.msra.mxu0 %v210
    %2201 = vmatprep.subr.mxu0 %v215
    %2202 = vmatpush1.msra.mxu0 %v214
    %2203 = vmatprep.subr.mxu0 %v219
    %2204 = vmatpush1.msra.mxu0 %v218
    %2205 = vmatprep.subr.mxu0 %v223
    %2206 = vmatpush1.msra.mxu0 %v222
    %2207 = vmatprep.subr.mxu0 %v227
    %2208 = vmatpush1.msra.mxu0 %v226
    %2209 = vmatprep.subr.mxu0 %v231
    %2210 = vmatpush1.msra.mxu0 %v230
    %2211 = vmatprep.subr.mxu0 %v235
    %2212 = vmatpush1.msra.mxu0 %v234
    %2213 = vmatprep.subr.mxu0 %v239
    %2214 = vmatpush1.msra.mxu0 %v238
    %2215 = vmatprep.subr.mxu0 %v243
    %2216 = vmatpush1.msra.mxu0 %v242
    %2217 = vmatprep.subr.mxu0 %v247
    %2218 = vmatpush1.msra.mxu0 %v246
    %2219 = vmatprep.subr.mxu0 %v251
    %2220 = vmatpush1.msra.mxu0 %v250
    %2221 = vmatprep.subr.mxu0 %v255
    %2222 = vmatpush1.msra.mxu0 %v254
    %2223 = vmatprep.subr.mxu0 %v259
    %2224 = vmatpush1.msra.mxu0 %v258
    %2225 = vmatprep.subr.mxu0 %v263
    %2226 = vmatpush1.msra.mxu0 %v262
    %2227 = vmatprep.subr.mxu0 %v267
    %2228 = vmatpush1.msra.mxu0 %v266
    %2229 = vmatprep.subr.mxu0 %v271
    %2230 = vmatpush1.msra.mxu0 %v270
    %2231 = vmatprep.subr.mxu0 %v275
    %2232 = vmatpush1.msra.mxu0 %v274
    %2233 = vmatprep.subr.mxu0 %v279
    %2234 = vmatpush1.msra.mxu0 %v278
    %2235 = vmatprep.subr.mxu0 %v283
    %2236 = vmatpush1.msra.mxu0 %v282
    %2237 = vmatprep.subr.mxu0 %v287
    %2238 = vmatpush1.msra.mxu0 %v286
    %2239 = vmatprep.subr.mxu0 %v291
    %2240 = vmatpush1.msra.mxu0 %v290
    %2241 = vmatprep.subr.mxu0 %v295
    %2242 = vmatpush1.msra.mxu0 %v294
    %2243 = vmatprep.mubr.f32.mxu0 %v1934
    %2244 = vmatmul.mubr.f32.gmra.mrb[0].mxu0 %v2107
    %v2245 = vpop.f32.mrb[0].mxu0
    %v2246 = vadd.f32 %v309, %v2245
    %v2247 = vpop.f32.mrb[0].mxu0
    %v2248 = vadd.f32 %v313, %v2247
    %2249 = vdwg.mxu0
    %v2250 = vxor.u32 %v2175, 2147483648
    %v2251 = vmul.f32 %v2250, 1.442695
    %v2252 = vpow.pop %v2251
    %v2253 = vadd.f32 %v2252, 1.0
    %v2254 = vrcp.pop %v2253
    %v2255 = vmul.f32 1.0, %v2254
    %v2256 = vxor.u32 %v2177, 2147483648
    %v2257 = vmul.f32 %v2256, 1.442695
    %v2258 = vpow.pop %v2257
    %v2259 = vadd.f32 %v2258, 1.0
    %v2260 = vrcp.pop %v2259
    %v2261 = vmul.f32 1.0, %v2260
    %v2262 = vtanh.pop %v2246
    %v2263 = vxor.u32 %v2248, 2147483648
    %v2264 = vmul.f32 %v2263, 1.442695
    %v2265 = vpow.pop %v2264
    %v2266 = vadd.f32 %v2265, 1.0
    %v2267 = vrcp.pop %v2266
    %v2268 = vmul.f32 1.0, %v2267
    %v2269 = vmul.f32 %v2261, %v1932
    %v2270 = vmul.f32 %v2255, %v2262
    %v2271 = vadd.f32 %v2269, %v2270
    %v2272 = vtanh.pop %v2271
    %v2273 = vmul.f32 %v2268, %v2272
    %2274 = vmatprep.subr.mxu0 %v105
    %2275 = vmatpush1.msra.mxu0 %v104
    %2276 = vmatprep.subr.mxu0 %v109
    %2277 = vmatpush1.msra.mxu0 %v108
    %2278 = vmatprep.subr.mxu0 %v113
    %2279 = vmatpush1.msra.mxu0 %v112
    %2280 = vmatprep.subr.mxu0 %v117
    %2281 = vmatpush1.msra.mxu0 %v116
    %2282 = vmatprep.subr.mxu0 %v121
    %2283 = vmatpush1.msra.mxu0 %v120
    %2284 = vmatprep.subr.mxu0 %v125
    %2285 = vmatpush1.msra.mxu0 %v124
    %2286 = vmatprep.subr.mxu0 %v129
    %2287 = vmatpush1.msra.mxu0 %v128
    %2288 = vmatprep.subr.mxu0 %v133
    %2289 = vmatpush1.msra.mxu0 %v132
    %2290 = vmatprep.subr.mxu0 %v137
    %2291 = vmatpush1.msra.mxu0 %v136
    %2292 = vmatprep.subr.mxu0 %v141
    %2293 = vmatpush1.msra.mxu0 %v140
    %2294 = vmatprep.subr.mxu0 %v145
    %2295 = vmatpush1.msra.mxu0 %v144
    %2296 = vmatprep.subr.mxu0 %v149
    %2297 = vmatpush1.msra.mxu0 %v148
    %2298 = vmatprep.subr.mxu0 %v153
    %2299 = vmatpush1.msra.mxu0 %v152
    %2300 = vmatprep.subr.mxu0 %v157
    %2301 = vmatpush1.msra.mxu0 %v156
    %2302 = vmatprep.subr.mxu0 %v161
    %2303 = vmatpush1.msra.mxu0 %v160
    %2304 = vmatprep.subr.mxu0 %v165
    %2305 = vmatpush1.msra.mxu0 %v164
    %2306 = vmatprep.subr.mxu0 0.0
    %2307 = vmatpush1.msra.mxu0 0.0
    %2308 = vmatprep.subr.mxu0 0.0
    %2309 = vmatpush1.msra.mxu0 0.0
    %2310 = vmatprep.subr.mxu0 0.0
    %2311 = vmatpush1.msra.mxu0 0.0
    %2312 = vmatprep.subr.mxu0 0.0
    %2313 = vmatpush1.msra.mxu0 0.0
    %2314 = vmatprep.subr.mxu0 0.0
    %2315 = vmatpush1.msra.mxu0 0.0
    %2316 = vmatprep.subr.mxu0 0.0
    %2317 = vmatpush1.msra.mxu0 0.0
    %2318 = vmatprep.subr.mxu0 0.0
    %2319 = vmatpush1.msra.mxu0 0.0
    %2320 = vmatprep.subr.mxu0 0.0
    %2321 = vmatpush1.msra.mxu0 0.0
    %2322 = vmatprep.subr.mxu0 0.0
    %2323 = vmatpush1.msra.mxu0 0.0
    %2324 = vmatprep.subr.mxu0 0.0
    %2325 = vmatpush1.msra.mxu0 0.0
    %2326 = vmatprep.subr.mxu0 0.0
    %2327 = vmatpush1.msra.mxu0 0.0
    %2328 = vmatprep.subr.mxu0 0.0
    %2329 = vmatpush1.msra.mxu0 0.0
    %2330 = vmatprep.subr.mxu0 0.0
    %2331 = vmatpush1.msra.mxu0 0.0
    %2332 = vmatprep.subr.mxu0 0.0
    %2333 = vmatpush1.msra.mxu0 0.0
    %2334 = vmatprep.subr.mxu0 0.0
    %2335 = vmatpush1.msra.mxu0 0.0
    %2336 = vmatprep.subr.mxu0 0.0
    %2337 = vmatpush1.msra.mxu0 0.0
    %2338 = vmatprep.mubr.f32.mxu0 0.0
    %2339 = vmatmul.mubr.f32.gmra.mrb[0].mxu0 %v2107
    %v2340 = vpop.f32.mrb[0].mxu0
    %v2341 = vadd.f32 0.0, %v2340
    %v2342 = vpop.f32.mrb[0].mxu0
    %v2343 = vadd.f32 0.0, %v2342
    %2344 = vdwg.mxu0
    %2345 = vmatprep.subr.mxu0 %v107
    %2346 = vmatpush1.msra.mxu0 %v106
    %2347 = vmatprep.subr.mxu0 %v111
    %2348 = vmatpush1.msra.mxu0 %v110
    %2349 = vmatprep.subr.mxu0 %v115
    %2350 = vmatpush1.msra.mxu0 %v114
    %2351 = vmatprep.subr.mxu0 %v119
    %2352 = vmatpush1.msra.mxu0 %v118
    %2353 = vmatprep.subr.mxu0 %v123
    %2354 = vmatpush1.msra.mxu0 %v122
    %2355 = vmatprep.subr.mxu0 %v127
    %2356 = vmatpush1.msra.mxu0 %v126
    %2357 = vmatprep.subr.mxu0 %v131
    %2358 = vmatpush1.msra.mxu0 %v130
    %2359 = vmatprep.subr.mxu0 %v135
    %2360 = vmatpush1.msra.mxu0 %v134
    %2361 = vmatprep.subr.mxu0 %v139
    %2362 = vmatpush1.msra.mxu0 %v138
    %2363 = vmatprep.subr.mxu0 %v143
    %2364 = vmatpush1.msra.mxu0 %v142
    %2365 = vmatprep.subr.mxu0 %v147
    %2366 = vmatpush1.msra.mxu0 %v146
    %2367 = vmatprep.subr.mxu0 %v151
    %2368 = vmatpush1.msra.mxu0 %v150
    %2369 = vmatprep.subr.mxu0 %v155
    %2370 = vmatpush1.msra.mxu0 %v154
    %2371 = vmatprep.subr.mxu0 %v159
    %2372 = vmatpush1.msra.mxu0 %v158
    %2373 = vmatprep.subr.mxu0 %v163
    %2374 = vmatpush1.msra.mxu0 %v162
    %2375 = vmatprep.subr.mxu0 %v167
    %2376 = vmatpush1.msra.mxu0 %v166
    %2377 = vmatprep.subr.mxu0 0.0
    %2378 = vmatpush1.msra.mxu0 0.0
    %2379 = vmatprep.subr.mxu0 0.0
    %2380 = vmatpush1.msra.mxu0 0.0
    %2381 = vmatprep.subr.mxu0 0.0
    %2382 = vmatpush1.msra.mxu0 0.0
    %2383 = vmatprep.subr.mxu0 0.0
    %2384 = vmatpush1.msra.mxu0 0.0
    %2385 = vmatprep.subr.mxu0 0.0
    %2386 = vmatpush1.msra.mxu0 0.0
    %2387 = vmatprep.subr.mxu0 0.0
    %2388 = vmatpush1.msra.mxu0 0.0
    %2389 = vmatprep.subr.mxu0 0.0
    %2390 = vmatpush1.msra.mxu0 0.0
    %2391 = vmatprep.subr.mxu0 0.0
    %2392 = vmatpush1.msra.mxu0 0.0
    %2393 = vmatprep.subr.mxu0 0.0
    %2394 = vmatpush1.msra.mxu0 0.0
    %2395 = vmatprep.subr.mxu0 0.0
    %2396 = vmatpush1.msra.mxu0 0.0
    %2397 = vmatprep.subr.mxu0 0.0
    %2398 = vmatpush1.msra.mxu0 0.0
    %2399 = vmatprep.subr.mxu0 0.0
    %2400 = vmatpush1.msra.mxu0 0.0
    %2401 = vmatprep.subr.mxu0 0.0
    %2402 = vmatpush1.msra.mxu0 0.0
    %2403 = vmatprep.subr.mxu0 0.0
    %2404 = vmatpush1.msra.mxu0 0.0
    %2405 = vmatprep.subr.mxu0 0.0
    %2406 = vmatpush1.msra.mxu0 0.0
    %2407 = vmatprep.subr.mxu0 0.0
    %2408 = vmatpush1.msra.mxu0 0.0
    %2409 = vmatprep.mubr.f32.mxu0 0.0
    %2410 = vmatmul.mubr.f32.gmra.mrb[0].mxu0 %v2107
    %v2411 = vpop.f32.mrb[0].mxu0
    %v2412 = vadd.f32 0.0, %v2411
    %v2413 = vpop.f32.mrb[0].mxu0
    %v2414 = vadd.f32 0.0, %v2413
    %2415 = vdwg.mxu0
    %v2420 = vrot.slane %v2341, 6
    %v2421 = vrot.slane %v2343, 6
    %v2422 = vrot.slane %v2412, 6
    %v2423 = vrot.slane %v2414, 6
    %v2428 = vadd.f32 %v438, %v2420
    %v2429 = vadd.f32 %v440, %v2421
    %v2430 = vadd.f32 %v515, %v2422
    %v2431 = vadd.f32 %v517, %v2423
    %v2432 = vxor.u32 %v2428, 2147483648
    %v2433 = vmul.f32 %v2432, 1.442695
    %v2434 = vpow.pop %v2433
    %v2435 = vadd.f32 %v2434, 1.0
    %v2436 = vrcp.pop %v2435
    %v2437 = vmul.f32 1.0, %v2436
    %v2438 = vxor.u32 %v2429, 2147483648
    %v2439 = vmul.f32 %v2438, 1.442695
    %v2440 = vpow.pop %v2439
    %v2441 = vadd.f32 %v2440, 1.0
    %v2442 = vrcp.pop %v2441
    %v2443 = vmul.f32 1.0, %v2442
    %v2444 = vtanh.pop %v2430
    %v2445 = vxor.u32 %v2431, 2147483648
    %v2446 = vmul.f32 %v2445, 1.442695
    %v2447 = vpow.pop %v2446
    %v2448 = vadd.f32 %v2447, 1.0
    %v2449 = vrcp.pop %v2448
    %v2450 = vmul.f32 1.0, %v2449
    %v2452 = vrot.slane %v2105, 6
    %v2454 = vmul.f32 %v2443, %v2452
    %v2455 = vmul.f32 %v2437, %v2444
    %v2456 = vadd.f32 %v2454, %v2455
    %v2457 = vtanh.pop %v2456
    %v2458 = vmul.f32 %v2450, %v2457
    %v2460 = vrot.slane %v2273, 6
    %v2462 = vrot.slane %v2458, 2
    %v2463 = vrot.slane %v2460, 2
    %2466 = vmatprep.subr.mxu0 %v169
    %2467 = vmatpush1.msra.mxu0 %v168
    %2468 = vmatprep.subr.mxu0 %v173
    %2469 = vmatpush1.msra.mxu0 %v172
    %2470 = vmatprep.subr.mxu0 %v177
    %2471 = vmatpush1.msra.mxu0 %v176
    %2472 = vmatprep.subr.mxu0 %v181
    %2473 = vmatpush1.msra.mxu0 %v180
    %2474 = vmatprep.subr.mxu0 %v185
    %2475 = vmatpush1.msra.mxu0 %v184
    %2476 = vmatprep.subr.mxu0 %v189
    %2477 = vmatpush1.msra.mxu0 %v188
    %2478 = vmatprep.subr.mxu0 %v193
    %2479 = vmatpush1.msra.mxu0 %v192
    %2480 = vmatprep.subr.mxu0 %v197
    %2481 = vmatpush1.msra.mxu0 %v196
    %2482 = vmatprep.subr.mxu0 %v201
    %2483 = vmatpush1.msra.mxu0 %v200
    %2484 = vmatprep.subr.mxu0 %v205
    %2485 = vmatpush1.msra.mxu0 %v204
    %2486 = vmatprep.subr.mxu0 %v209
    %2487 = vmatpush1.msra.mxu0 %v208
    %2488 = vmatprep.subr.mxu0 %v213
    %2489 = vmatpush1.msra.mxu0 %v212
    %2490 = vmatprep.subr.mxu0 %v217
    %2491 = vmatpush1.msra.mxu0 %v216
    %2492 = vmatprep.subr.mxu0 %v221
    %2493 = vmatpush1.msra.mxu0 %v220
    %2494 = vmatprep.subr.mxu0 %v225
    %2495 = vmatpush1.msra.mxu0 %v224
    %2496 = vmatprep.subr.mxu0 %v229
    %2497 = vmatpush1.msra.mxu0 %v228
    %2498 = vmatprep.subr.mxu0 %v233
    %2499 = vmatpush1.msra.mxu0 %v232
    %2500 = vmatprep.subr.mxu0 %v237
    %2501 = vmatpush1.msra.mxu0 %v236
    %2502 = vmatprep.subr.mxu0 %v241
    %2503 = vmatpush1.msra.mxu0 %v240
    %2504 = vmatprep.subr.mxu0 %v245
    %2505 = vmatpush1.msra.mxu0 %v244
    %2506 = vmatprep.subr.mxu0 %v249
    %2507 = vmatpush1.msra.mxu0 %v248
    %2508 = vmatprep.subr.mxu0 %v253
    %2509 = vmatpush1.msra.mxu0 %v252
    %2510 = vmatprep.subr.mxu0 %v257
    %2511 = vmatpush1.msra.mxu0 %v256
    %2512 = vmatprep.subr.mxu0 %v261
    %2513 = vmatpush1.msra.mxu0 %v260
    %2514 = vmatprep.subr.mxu0 %v265
    %2515 = vmatpush1.msra.mxu0 %v264
    %2516 = vmatprep.subr.mxu0 %v269
    %2517 = vmatpush1.msra.mxu0 %v268
    %2518 = vmatprep.subr.mxu0 %v273
    %2519 = vmatpush1.msra.mxu0 %v272
    %2520 = vmatprep.subr.mxu0 %v277
    %2521 = vmatpush1.msra.mxu0 %v276
    %2522 = vmatprep.subr.mxu0 %v281
    %2523 = vmatpush1.msra.mxu0 %v280
    %2524 = vmatprep.subr.mxu0 %v285
    %2525 = vmatpush1.msra.mxu0 %v284
    %2526 = vmatprep.subr.mxu0 %v289
    %2527 = vmatpush1.msra.mxu0 %v288
    %2528 = vmatprep.subr.mxu0 %v293
    %2529 = vmatpush1.msra.mxu0 %v292
    %2530 = vmatprep.mubr.f32.mxu0 %v2463
    %2531 = vmatmul.mubr.f32.gmra.mrb[0].mxu0 %v2462
    %v2532 = vpop.f32.mrb[0].mxu0
    %v2533 = vadd.f32 %v301, %v2532
    %v2534 = vpop.f32.mrb[0].mxu0
    %v2535 = vadd.f32 %v305, %v2534
    %2536 = vdwg.mxu0
    %2537 = vmatprep.subr.mxu0 %v171
    %2538 = vmatpush1.msra.mxu0 %v170
    %2539 = vmatprep.subr.mxu0 %v175
    %2540 = vmatpush1.msra.mxu0 %v174
    %2541 = vmatprep.subr.mxu0 %v179
    %2542 = vmatpush1.msra.mxu0 %v178
    %2543 = vmatprep.subr.mxu0 %v183
    %2544 = vmatpush1.msra.mxu0 %v182
    %2545 = vmatprep.subr.mxu0 %v187
    %2546 = vmatpush1.msra.mxu0 %v186
    %2547 = vmatprep.subr.mxu0 %v191
    %2548 = vmatpush1.msra.mxu0 %v190
    %2549 = vmatprep.subr.mxu0 %v195
    %2550 = vmatpush1.msra.mxu0 %v194
    %2551 = vmatprep.subr.mxu0 %v199
    %2552 = vmatpush1.msra.mxu0 %v198
    %2553 = vmatprep.subr.mxu0 %v203
    %2554 = vmatpush1.msra.mxu0 %v202
    %2555 = vmatprep.subr.mxu0 %v207
    %2556 = vmatpush1.msra.mxu0 %v206
    %2557 = vmatprep.subr.mxu0 %v211
    %2558 = vmatpush1.msra.mxu0 %v210
    %2559 = vmatprep.subr.mxu0 %v215
    %2560 = vmatpush1.msra.mxu0 %v214
    %2561 = vmatprep.subr.mxu0 %v219
    %2562 = vmatpush1.msra.mxu0 %v218
    %2563 = vmatprep.subr.mxu0 %v223
    %2564 = vmatpush1.msra.mxu0 %v222
    %2565 = vmatprep.subr.mxu0 %v227
    %2566 = vmatpush1.msra.mxu0 %v226
    %2567 = vmatprep.subr.mxu0 %v231
    %2568 = vmatpush1.msra.mxu0 %v230
    %2569 = vmatprep.subr.mxu0 %v235
    %2570 = vmatpush1.msra.mxu0 %v234
    %2571 = vmatprep.subr.mxu0 %v239
    %2572 = vmatpush1.msra.mxu0 %v238
    %2573 = vmatprep.subr.mxu0 %v243
    %2574 = vmatpush1.msra.mxu0 %v242
    %2575 = vmatprep.subr.mxu0 %v247
    %2576 = vmatpush1.msra.mxu0 %v246
    %2577 = vmatprep.subr.mxu0 %v251
    %2578 = vmatpush1.msra.mxu0 %v250
    %2579 = vmatprep.subr.mxu0 %v255
    %2580 = vmatpush1.msra.mxu0 %v254
    %2581 = vmatprep.subr.mxu0 %v259
    %2582 = vmatpush1.msra.mxu0 %v258
    %2583 = vmatprep.subr.mxu0 %v263
    %2584 = vmatpush1.msra.mxu0 %v262
    %2585 = vmatprep.subr.mxu0 %v267
    %2586 = vmatpush1.msra.mxu0 %v266
    %2587 = vmatprep.subr.mxu0 %v271
    %2588 = vmatpush1.msra.mxu0 %v270
    %2589 = vmatprep.subr.mxu0 %v275
    %2590 = vmatpush1.msra.mxu0 %v274
    %2591 = vmatprep.subr.mxu0 %v279
    %2592 = vmatpush1.msra.mxu0 %v278
    %2593 = vmatprep.subr.mxu0 %v283
    %2594 = vmatpush1.msra.mxu0 %v282
    %2595 = vmatprep.subr.mxu0 %v287
    %2596 = vmatpush1.msra.mxu0 %v286
    %2597 = vmatprep.subr.mxu0 %v291
    %2598 = vmatpush1.msra.mxu0 %v290
    %2599 = vmatprep.subr.mxu0 %v295
    %2600 = vmatpush1.msra.mxu0 %v294
    %2601 = vmatprep.mubr.f32.mxu0 %v2463
    %2602 = vmatmul.mubr.f32.gmra.mrb[0].mxu0 %v2462
    %v2603 = vpop.f32.mrb[0].mxu0
    %v2604 = vadd.f32 %v309, %v2603
    %v2605 = vpop.f32.mrb[0].mxu0
    %v2606 = vadd.f32 %v313, %v2605
    %2607 = vdwg.mxu0
    %v2608 = vxor.u32 %v2533, 2147483648
    %v2609 = vmul.f32 %v2608, 1.442695
    %v2610 = vpow.pop %v2609
    %v2611 = vadd.f32 %v2610, 1.0
    %v2612 = vrcp.pop %v2611
    %v2613 = vmul.f32 1.0, %v2612
    %v2614 = vxor.u32 %v2535, 2147483648
    %v2615 = vmul.f32 %v2614, 1.442695
    %v2616 = vpow.pop %v2615
    %v2617 = vadd.f32 %v2616, 1.0
    %v2618 = vrcp.pop %v2617
    %v2619 = vmul.f32 1.0, %v2618
    %v2620 = vtanh.pop %v2604
    %v2621 = vxor.u32 %v2606, 2147483648
    %v2622 = vmul.f32 %v2621, 1.442695
    %v2623 = vpow.pop %v2622
    %v2624 = vadd.f32 %v2623, 1.0
    %v2625 = vrcp.pop %v2624
    %v2626 = vmul.f32 1.0, %v2625
    %v2627 = vmul.f32 %v2619, %v2271
    %v2628 = vmul.f32 %v2613, %v2620
    %v2629 = vadd.f32 %v2627, %v2628
    %v2630 = vtanh.pop %v2629
    %v2631 = vmul.f32 %v2626, %v2630
    %2632 = vmatprep.subr.mxu0 %v105
    %2633 = vmatpush1.msra.mxu0 %v104
    %2634 = vmatprep.subr.mxu0 %v109
    %2635 = vmatpush1.msra.mxu0 %v108
    %2636 = vmatprep.subr.mxu0 %v113
    %2637 = vmatpush1.msra.mxu0 %v112
    %2638 = vmatprep.subr.mxu0 %v117
    %2639 = vmatpush1.msra.mxu0 %v116
    %2640 = vmatprep.subr.mxu0 %v121
    %2641 = vmatpush1.msra.mxu0 %v120
    %2642 = vmatprep.subr.mxu0 %v125
    %2643 = vmatpush1.msra.mxu0 %v124
    %2644 = vmatprep.subr.mxu0 %v129
    %2645 = vmatpush1.msra.mxu0 %v128
    %2646 = vmatprep.subr.mxu0 %v133
    %2647 = vmatpush1.msra.mxu0 %v132
    %2648 = vmatprep.subr.mxu0 %v137
    %2649 = vmatpush1.msra.mxu0 %v136
    %2650 = vmatprep.subr.mxu0 %v141
    %2651 = vmatpush1.msra.mxu0 %v140
    %2652 = vmatprep.subr.mxu0 %v145
    %2653 = vmatpush1.msra.mxu0 %v144
    %2654 = vmatprep.subr.mxu0 %v149
    %2655 = vmatpush1.msra.mxu0 %v148
    %2656 = vmatprep.subr.mxu0 %v153
    %2657 = vmatpush1.msra.mxu0 %v152
    %2658 = vmatprep.subr.mxu0 %v157
    %2659 = vmatpush1.msra.mxu0 %v156
    %2660 = vmatprep.subr.mxu0 %v161
    %2661 = vmatpush1.msra.mxu0 %v160
    %2662 = vmatprep.subr.mxu0 %v165
    %2663 = vmatpush1.msra.mxu0 %v164
    %2664 = vmatprep.subr.mxu0 0.0
    %2665 = vmatpush1.msra.mxu0 0.0
    %2666 = vmatprep.subr.mxu0 0.0
    %2667 = vmatpush1.msra.mxu0 0.0
    %2668 = vmatprep.subr.mxu0 0.0
    %2669 = vmatpush1.msra.mxu0 0.0
    %2670 = vmatprep.subr.mxu0 0.0
    %2671 = vmatpush1.msra.mxu0 0.0
    %2672 = vmatprep.subr.mxu0 0.0
    %2673 = vmatpush1.msra.mxu0 0.0
    %2674 = vmatprep.subr.mxu0 0.0
    %2675 = vmatpush1.msra.mxu0 0.0
    %2676 = vmatprep.subr.mxu0 0.0
    %2677 = vmatpush1.msra.mxu0 0.0
    %2678 = vmatprep.subr.mxu0 0.0
    %2679 = vmatpush1.msra.mxu0 0.0
    %2680 = vmatprep.subr.mxu0 0.0
    %2681 = vmatpush1.msra.mxu0 0.0
    %2682 = vmatprep.subr.mxu0 0.0
    %2683 = vmatpush1.msra.mxu0 0.0
    %2684 = vmatprep.subr.mxu0 0.0
    %2685 = vmatpush1.msra.mxu0 0.0
    %2686 = vmatprep.subr.mxu0 0.0
    %2687 = vmatpush1.msra.mxu0 0.0
    %2688 = vmatprep.subr.mxu0 0.0
    %2689 = vmatpush1.msra.mxu0 0.0
    %2690 = vmatprep.subr.mxu0 0.0
    %2691 = vmatpush1.msra.mxu0 0.0
    %2692 = vmatprep.subr.mxu0 0.0
    %2693 = vmatpush1.msra.mxu0 0.0
    %2694 = vmatprep.subr.mxu0 0.0
    %2695 = vmatpush1.msra.mxu0 0.0
    %2696 = vmatprep.mubr.f32.mxu0 0.0
    %2697 = vmatmul.mubr.f32.gmra.mrb[0].mxu0 %v2462
    %v2698 = vpop.f32.mrb[0].mxu0
    %v2699 = vadd.f32 0.0, %v2698
    %v2700 = vpop.f32.mrb[0].mxu0
    %v2701 = vadd.f32 0.0, %v2700
    %2702 = vdwg.mxu0
    %2703 = vmatprep.subr.mxu0 %v107
    %2704 = vmatpush1.msra.mxu0 %v106
    %2705 = vmatprep.subr.mxu0 %v111
    %2706 = vmatpush1.msra.mxu0 %v110
    %2707 = vmatprep.subr.mxu0 %v115
    %2708 = vmatpush1.msra.mxu0 %v114
    %2709 = vmatprep.subr.mxu0 %v119
    %2710 = vmatpush1.msra.mxu0 %v118
    %2711 = vmatprep.subr.mxu0 %v123
    %2712 = vmatpush1.msra.mxu0 %v122
    %2713 = vmatprep.subr.mxu0 %v127
    %2714 = vmatpush1.msra.mxu0 %v126
    %2715 = vmatprep.subr.mxu0 %v131
    %2716 = vmatpush1.msra.mxu0 %v130
    %2717 = vmatprep.subr.mxu0 %v135
    %2718 = vmatpush1.msra.mxu0 %v134
    %2719 = vmatprep.subr.mxu0 %v139
    %2720 = vmatpush1.msra.mxu0 %v138
    %2721 = vmatprep.subr.mxu0 %v143
    %2722 = vmatpush1.msra.mxu0 %v142
    %2723 = vmatprep.subr.mxu0 %v147
    %2724 = vmatpush1.msra.mxu0 %v146
    %2725 = vmatprep.subr.mxu0 %v151
    %2726 = vmatpush1.msra.mxu0 %v150
    %2727 = vmatprep.subr.mxu0 %v155
    %2728 = vmatpush1.msra.mxu0 %v154
    %2729 = vmatprep.subr.mxu0 %v159
    %2730 = vmatpush1.msra.mxu0 %v158
    %2731 = vmatprep.subr.mxu0 %v163
    %2732 = vmatpush1.msra.mxu0 %v162
    %2733 = vmatprep.subr.mxu0 %v167
    %2734 = vmatpush1.msra.mxu0 %v166
    %2735 = vmatprep.subr.mxu0 0.0
    %2736 = vmatpush1.msra.mxu0 0.0
    %2737 = vmatprep.subr.mxu0 0.0
    %2738 = vmatpush1.msra.mxu0 0.0
    %2739 = vmatprep.subr.mxu0 0.0
    %2740 = vmatpush1.msra.mxu0 0.0
    %2741 = vmatprep.subr.mxu0 0.0
    %2742 = vmatpush1.msra.mxu0 0.0
    %2743 = vmatprep.subr.mxu0 0.0
    %2744 = vmatpush1.msra.mxu0 0.0
    %2745 = vmatprep.subr.mxu0 0.0
    %2746 = vmatpush1.msra.mxu0 0.0
    %2747 = vmatprep.subr.mxu0 0.0
    %2748 = vmatpush1.msra.mxu0 0.0
    %2749 = vmatprep.subr.mxu0 0.0
    %2750 = vmatpush1.msra.mxu0 0.0
    %2751 = vmatprep.subr.mxu0 0.0
    %2752 = vmatpush1.msra.mxu0 0.0
    %2753 = vmatprep.subr.mxu0 0.0
    %2754 = vmatpush1.msra.mxu0 0.0
    %2755 = vmatprep.subr.mxu0 0.0
    %2756 = vmatpush1.msra.mxu0 0.0
    %2757 = vmatprep.subr.mxu0 0.0
    %2758 = vmatpush1.msra.mxu0 0.0
    %2759 = vmatprep.subr.mxu0 0.0
    %2760 = vmatpush1.msra.mxu0 0.0
    %2761 = vmatprep.subr.mxu0 0.0
    %2762 = vmatpush1.msra.mxu0 0.0
    %2763 = vmatprep.subr.mxu0 0.0
    %2764 = vmatpush1.msra.mxu0 0.0
    %2765 = vmatprep.subr.mxu0 0.0
    %2766 = vmatpush1.msra.mxu0 0.0
    %2767 = vmatprep.mubr.f32.mxu0 0.0
    %2768 = vmatmul.mubr.f32.gmra.mrb[0].mxu0 %v2462
    %v2769 = vpop.f32.mrb[0].mxu0
    %v2770 = vadd.f32 0.0, %v2769
    %v2771 = vpop.f32.mrb[0].mxu0
    %v2772 = vadd.f32 0.0, %v2771
    %2773 = vdwg.mxu0
    %v2778 = vrot.slane %v2699, 4
    %v2779 = vrot.slane %v2701, 4
    %v2780 = vrot.slane %v2770, 4
    %v2781 = vrot.slane %v2772, 4
    %v2786 = vadd.f32 %v438, %v2778
    %v2787 = vadd.f32 %v440, %v2779
    %v2788 = vadd.f32 %v515, %v2780
    %v2789 = vadd.f32 %v517, %v2781
    %v2790 = vxor.u32 %v2786, 2147483648
    %v2791 = vmul.f32 %v2790, 1.442695
    %v2792 = vpow.pop %v2791
    %v2793 = vadd.f32 %v2792, 1.0
    %v2794 = vrcp.pop %v2793
    %v2795 = vmul.f32 1.0, %v2794
    %v2796 = vxor.u32 %v2787, 2147483648
    %v2797 = vmul.f32 %v2796, 1.442695
    %v2798 = vpow.pop %v2797
    %v2799 = vadd.f32 %v2798, 1.0
    %v2800 = vrcp.pop %v2799
    %v2801 = vmul.f32 1.0, %v2800
    %v2802 = vtanh.pop %v2788
    %v2803 = vxor.u32 %v2789, 2147483648
    %v2804 = vmul.f32 %v2803, 1.442695
    %v2805 = vpow.pop %v2804
    %v2806 = vadd.f32 %v2805, 1.0
    %v2807 = vrcp.pop %v2806
    %v2808 = vmul.f32 1.0, %v2807
    %v2810 = vrot.slane %v2456, 6
    %v2812 = vmul.f32 %v2801, %v2810
    %v2813 = vmul.f32 %v2795, %v2802
    %v2814 = vadd.f32 %v2812, %v2813
    %v2815 = vtanh.pop %v2814
    %v2816 = vmul.f32 %v2808, %v2815
    %v2818 = vrot.slane %v2631, 4
    %v2820 = vrot.slane %v2816, 4
    %v2821 = vrot.slane %v2818, 4
    %2824 = vmatprep.subr.mxu0 %v169
    %2825 = vmatpush1.msra.mxu0 %v168
    %2826 = vmatprep.subr.mxu0 %v173
    %2827 = vmatpush1.msra.mxu0 %v172
    %2828 = vmatprep.subr.mxu0 %v177
    %2829 = vmatpush1.msra.mxu0 %v176
    %2830 = vmatprep.subr.mxu0 %v181
    %2831 = vmatpush1.msra.mxu0 %v180
    %2832 = vmatprep.subr.mxu0 %v185
    %2833 = vmatpush1.msra.mxu0 %v184
    %2834 = vmatprep.subr.mxu0 %v189
    %2835 = vmatpush1.msra.mxu0 %v188
    %2836 = vmatprep.subr.mxu0 %v193
    %2837 = vmatpush1.msra.mxu0 %v192
    %2838 = vmatprep.subr.mxu0 %v197
    %2839 = vmatpush1.msra.mxu0 %v196
    %2840 = vmatprep.subr.mxu0 %v201
    %2841 = vmatpush1.msra.mxu0 %v200
    %2842 = vmatprep.subr.mxu0 %v205
    %2843 = vmatpush1.msra.mxu0 %v204
    %2844 = vmatprep.subr.mxu0 %v209
    %2845 = vmatpush1.msra.mxu0 %v208
    %2846 = vmatprep.subr.mxu0 %v213
    %2847 = vmatpush1.msra.mxu0 %v212
    %2848 = vmatprep.subr.mxu0 %v217
    %2849 = vmatpush1.msra.mxu0 %v216
    %2850 = vmatprep.subr.mxu0 %v221
    %2851 = vmatpush1.msra.mxu0 %v220
    %2852 = vmatprep.subr.mxu0 %v225
    %2853 = vmatpush1.msra.mxu0 %v224
    %2854 = vmatprep.subr.mxu0 %v229
    %2855 = vmatpush1.msra.mxu0 %v228
    %2856 = vmatprep.subr.mxu0 %v233
    %2857 = vmatpush1.msra.mxu0 %v232
    %2858 = vmatprep.subr.mxu0 %v237
    %2859 = vmatpush1.msra.mxu0 %v236
    %2860 = vmatprep.subr.mxu0 %v241
    %2861 = vmatpush1.msra.mxu0 %v240
    %2862 = vmatprep.subr.mxu0 %v245
    %2863 = vmatpush1.msra.mxu0 %v244
    %2864 = vmatprep.subr.mxu0 %v249
    %2865 = vmatpush1.msra.mxu0 %v248
    %2866 = vmatprep.subr.mxu0 %v253
    %2867 = vmatpush1.msra.mxu0 %v252
    %2868 = vmatprep.subr.mxu0 %v257
    %2869 = vmatpush1.msra.mxu0 %v256
    %2870 = vmatprep.subr.mxu0 %v261
    %2871 = vmatpush1.msra.mxu0 %v260
    %2872 = vmatprep.subr.mxu0 %v265
    %2873 = vmatpush1.msra.mxu0 %v264
    %2874 = vmatprep.subr.mxu0 %v269
    %2875 = vmatpush1.msra.mxu0 %v268
    %2876 = vmatprep.subr.mxu0 %v273
    %2877 = vmatpush1.msra.mxu0 %v272
    %2878 = vmatprep.subr.mxu0 %v277
    %2879 = vmatpush1.msra.mxu0 %v276
    %2880 = vmatprep.subr.mxu0 %v281
    %2881 = vmatpush1.msra.mxu0 %v280
    %2882 = vmatprep.subr.mxu0 %v285
    %2883 = vmatpush1.msra.mxu0 %v284
    %2884 = vmatprep.subr.mxu0 %v289
    %2885 = vmatpush1.msra.mxu0 %v288
    %2886 = vmatprep.subr.mxu0 %v293
    %2887 = vmatpush1.msra.mxu0 %v292
    %2888 = vmatprep.mubr.f32.mxu0 %v2821
    %2889 = vmatmul.mubr.f32.gmra.mrb[0].mxu0 %v2820
    %v2890 = vpop.f32.mrb[0].mxu0
    %v2891 = vadd.f32 %v301, %v2890
    %v2892 = vpop.f32.mrb[0].mxu0
    %v2893 = vadd.f32 %v305, %v2892
    %2894 = vdwg.mxu0
    %2895 = vmatprep.subr.mxu0 %v171
    %2896 = vmatpush1.msra.mxu0 %v170
    %2897 = vmatprep.subr.mxu0 %v175
    %2898 = vmatpush1.msra.mxu0 %v174
    %2899 = vmatprep.subr.mxu0 %v179
    %2900 = vmatpush1.msra.mxu0 %v178
    %2901 = vmatprep.subr.mxu0 %v183
    %2902 = vmatpush1.msra.mxu0 %v182
    %2903 = vmatprep.subr.mxu0 %v187
    %2904 = vmatpush1.msra.mxu0 %v186
    %2905 = vmatprep.subr.mxu0 %v191
    %2906 = vmatpush1.msra.mxu0 %v190
    %2907 = vmatprep.subr.mxu0 %v195
    %2908 = vmatpush1.msra.mxu0 %v194
    %2909 = vmatprep.subr.mxu0 %v199
    %2910 = vmatpush1.msra.mxu0 %v198
    %2911 = vmatprep.subr.mxu0 %v203
    %2912 = vmatpush1.msra.mxu0 %v202
    %2913 = vmatprep.subr.mxu0 %v207
    %2914 = vmatpush1.msra.mxu0 %v206
    %2915 = vmatprep.subr.mxu0 %v211
    %2916 = vmatpush1.msra.mxu0 %v210
    %2917 = vmatprep.subr.mxu0 %v215
    %2918 = vmatpush1.msra.mxu0 %v214
    %2919 = vmatprep.subr.mxu0 %v219
    %2920 = vmatpush1.msra.mxu0 %v218
    %2921 = vmatprep.subr.mxu0 %v223
    %2922 = vmatpush1.msra.mxu0 %v222
    %2923 = vmatprep.subr.mxu0 %v227
    %2924 = vmatpush1.msra.mxu0 %v226
    %2925 = vmatprep.subr.mxu0 %v231
    %2926 = vmatpush1.msra.mxu0 %v230
    %2927 = vmatprep.subr.mxu0 %v235
    %2928 = vmatpush1.msra.mxu0 %v234
    %2929 = vmatprep.subr.mxu0 %v239
    %2930 = vmatpush1.msra.mxu0 %v238
    %2931 = vmatprep.subr.mxu0 %v243
    %2932 = vmatpush1.msra.mxu0 %v242
    %2933 = vmatprep.subr.mxu0 %v247
    %2934 = vmatpush1.msra.mxu0 %v246
    %2935 = vmatprep.subr.mxu0 %v251
    %2936 = vmatpush1.msra.mxu0 %v250
    %2937 = vmatprep.subr.mxu0 %v255
    %2938 = vmatpush1.msra.mxu0 %v254
    %2939 = vmatprep.subr.mxu0 %v259
    %2940 = vmatpush1.msra.mxu0 %v258
    %2941 = vmatprep.subr.mxu0 %v263
    %2942 = vmatpush1.msra.mxu0 %v262
    %2943 = vmatprep.subr.mxu0 %v267
    %2944 = vmatpush1.msra.mxu0 %v266
    %2945 = vmatprep.subr.mxu0 %v271
    %2946 = vmatpush1.msra.mxu0 %v270
    %2947 = vmatprep.subr.mxu0 %v275
    %2948 = vmatpush1.msra.mxu0 %v274
    %2949 = vmatprep.subr.mxu0 %v279
    %2950 = vmatpush1.msra.mxu0 %v278
    %2951 = vmatprep.subr.mxu0 %v283
    %2952 = vmatpush1.msra.mxu0 %v282
    %2953 = vmatprep.subr.mxu0 %v287
    %2954 = vmatpush1.msra.mxu0 %v286
    %2955 = vmatprep.subr.mxu0 %v291
    %2956 = vmatpush1.msra.mxu0 %v290
    %2957 = vmatprep.subr.mxu0 %v295
    %2958 = vmatpush1.msra.mxu0 %v294
    %2959 = vmatprep.mubr.f32.mxu0 %v2821
    %2960 = vmatmul.mubr.f32.gmra.mrb[0].mxu0 %v2820
    %v2961 = vpop.f32.mrb[0].mxu0
    %v2962 = vadd.f32 %v309, %v2961
    %v2963 = vpop.f32.mrb[0].mxu0
    %v2964 = vadd.f32 %v313, %v2963
    %2965 = vdwg.mxu0
    %v2966 = vxor.u32 %v2891, 2147483648
    %v2967 = vmul.f32 %v2966, 1.442695
    %v2968 = vpow.pop %v2967
    %v2969 = vadd.f32 %v2968, 1.0
    %v2970 = vrcp.pop %v2969
    %v2971 = vmul.f32 1.0, %v2970
    %v2972 = vxor.u32 %v2893, 2147483648
    %v2973 = vmul.f32 %v2972, 1.442695
    %v2974 = vpow.pop %v2973
    %v2975 = vadd.f32 %v2974, 1.0
    %v2976 = vrcp.pop %v2975
    %v2977 = vmul.f32 1.0, %v2976
    %v2978 = vtanh.pop %v2962
    %v2979 = vxor.u32 %v2964, 2147483648
    %v2980 = vmul.f32 %v2979, 1.442695
    %v2981 = vpow.pop %v2980
    %v2982 = vadd.f32 %v2981, 1.0
    %v2983 = vrcp.pop %v2982
    %v2984 = vmul.f32 1.0, %v2983
    %v2985 = vmul.f32 %v2977, %v2629
    %v2986 = vmul.f32 %v2971, %v2978
    %v2987 = vadd.f32 %v2985, %v2986
    %v2988 = vtanh.pop %v2987
    %v2989 = vmul.f32 %v2984, %v2988
    %2990 = vmatprep.subr.mxu0 %v105
    %2991 = vmatpush1.msra.mxu0 %v104
    %2992 = vmatprep.subr.mxu0 %v109
    %2993 = vmatpush1.msra.mxu0 %v108
    %2994 = vmatprep.subr.mxu0 %v113
    %2995 = vmatpush1.msra.mxu0 %v112
    %2996 = vmatprep.subr.mxu0 %v117
    %2997 = vmatpush1.msra.mxu0 %v116
    %2998 = vmatprep.subr.mxu0 %v121
    %2999 = vmatpush1.msra.mxu0 %v120
    %3000 = vmatprep.subr.mxu0 %v125
    %3001 = vmatpush1.msra.mxu0 %v124
    %3002 = vmatprep.subr.mxu0 %v129
    %3003 = vmatpush1.msra.mxu0 %v128
    %3004 = vmatprep.subr.mxu0 %v133
    %3005 = vmatpush1.msra.mxu0 %v132
    %3006 = vmatprep.subr.mxu0 %v137
    %3007 = vmatpush1.msra.mxu0 %v136
    %3008 = vmatprep.subr.mxu0 %v141
    %3009 = vmatpush1.msra.mxu0 %v140
    %3010 = vmatprep.subr.mxu0 %v145
    %3011 = vmatpush1.msra.mxu0 %v144
    %3012 = vmatprep.subr.mxu0 %v149
    %3013 = vmatpush1.msra.mxu0 %v148
    %3014 = vmatprep.subr.mxu0 %v153
    %3015 = vmatpush1.msra.mxu0 %v152
    %3016 = vmatprep.subr.mxu0 %v157
    %3017 = vmatpush1.msra.mxu0 %v156
    %3018 = vmatprep.subr.mxu0 %v161
    %3019 = vmatpush1.msra.mxu0 %v160
    %3020 = vmatprep.subr.mxu0 %v165
    %3021 = vmatpush1.msra.mxu0 %v164
    %3022 = vmatprep.subr.mxu0 0.0
    %3023 = vmatpush1.msra.mxu0 0.0
    %3024 = vmatprep.subr.mxu0 0.0
    %3025 = vmatpush1.msra.mxu0 0.0
    %3026 = vmatprep.subr.mxu0 0.0
    %3027 = vmatpush1.msra.mxu0 0.0
    %3028 = vmatprep.subr.mxu0 0.0
    %3029 = vmatpush1.msra.mxu0 0.0
    %3030 = vmatprep.subr.mxu0 0.0
    %3031 = vmatpush1.msra.mxu0 0.0
    %3032 = vmatprep.subr.mxu0 0.0
    %3033 = vmatpush1.msra.mxu0 0.0
    %3034 = vmatprep.subr.mxu0 0.0
    %3035 = vmatpush1.msra.mxu0 0.0
    %3036 = vmatprep.subr.mxu0 0.0
    %3037 = vmatpush1.msra.mxu0 0.0
    %3038 = vmatprep.subr.mxu0 0.0
    %3039 = vmatpush1.msra.mxu0 0.0
    %3040 = vmatprep.subr.mxu0 0.0
    %3041 = vmatpush1.msra.mxu0 0.0
    %3042 = vmatprep.subr.mxu0 0.0
    %3043 = vmatpush1.msra.mxu0 0.0
    %3044 = vmatprep.subr.mxu0 0.0
    %3045 = vmatpush1.msra.mxu0 0.0
    %3046 = vmatprep.subr.mxu0 0.0
    %3047 = vmatpush1.msra.mxu0 0.0
    %3048 = vmatprep.subr.mxu0 0.0
    %3049 = vmatpush1.msra.mxu0 0.0
    %3050 = vmatprep.subr.mxu0 0.0
    %3051 = vmatpush1.msra.mxu0 0.0
    %3052 = vmatprep.subr.mxu0 0.0
    %3053 = vmatpush1.msra.mxu0 0.0
    %3054 = vmatprep.mubr.f32.mxu0 0.0
    %3055 = vmatmul.mubr.f32.gmra.mrb[0].mxu0 %v2820
    %v3056 = vpop.f32.mrb[0].mxu0
    %v3057 = vadd.f32 0.0, %v3056
    %v3058 = vpop.f32.mrb[0].mxu0
    %v3059 = vadd.f32 0.0, %v3058
    %3060 = vdwg.mxu0
    %3061 = vmatprep.subr.mxu0 %v107
    %3062 = vmatpush1.msra.mxu0 %v106
    %3063 = vmatprep.subr.mxu0 %v111
    %3064 = vmatpush1.msra.mxu0 %v110
    %3065 = vmatprep.subr.mxu0 %v115
    %3066 = vmatpush1.msra.mxu0 %v114
    %3067 = vmatprep.subr.mxu0 %v119
    %3068 = vmatpush1.msra.mxu0 %v118
    %3069 = vmatprep.subr.mxu0 %v123
    %3070 = vmatpush1.msra.mxu0 %v122
    %3071 = vmatprep.subr.mxu0 %v127
    %3072 = vmatpush1.msra.mxu0 %v126
    %3073 = vmatprep.subr.mxu0 %v131
    %3074 = vmatpush1.msra.mxu0 %v130
    %3075 = vmatprep.subr.mxu0 %v135
    %3076 = vmatpush1.msra.mxu0 %v134
    %3077 = vmatprep.subr.mxu0 %v139
    %3078 = vmatpush1.msra.mxu0 %v138
    %3079 = vmatprep.subr.mxu0 %v143
    %3080 = vmatpush1.msra.mxu0 %v142
    %3081 = vmatprep.subr.mxu0 %v147
    %3082 = vmatpush1.msra.mxu0 %v146
    %3083 = vmatprep.subr.mxu0 %v151
    %3084 = vmatpush1.msra.mxu0 %v150
    %3085 = vmatprep.subr.mxu0 %v155
    %3086 = vmatpush1.msra.mxu0 %v154
    %3087 = vmatprep.subr.mxu0 %v159
    %3088 = vmatpush1.msra.mxu0 %v158
    %3089 = vmatprep.subr.mxu0 %v163
    %3090 = vmatpush1.msra.mxu0 %v162
    %3091 = vmatprep.subr.mxu0 %v167
    %3092 = vmatpush1.msra.mxu0 %v166
    %3093 = vmatprep.subr.mxu0 0.0
    %3094 = vmatpush1.msra.mxu0 0.0
    %3095 = vmatprep.subr.mxu0 0.0
    %3096 = vmatpush1.msra.mxu0 0.0
    %3097 = vmatprep.subr.mxu0 0.0
    %3098 = vmatpush1.msra.mxu0 0.0
    %3099 = vmatprep.subr.mxu0 0.0
    %3100 = vmatpush1.msra.mxu0 0.0
    %3101 = vmatprep.subr.mxu0 0.0
    %3102 = vmatpush1.msra.mxu0 0.0
    %3103 = vmatprep.subr.mxu0 0.0
    %3104 = vmatpush1.msra.mxu0 0.0
    %3105 = vmatprep.subr.mxu0 0.0
    %3106 = vmatpush1.msra.mxu0 0.0
    %3107 = vmatprep.subr.mxu0 0.0
    %3108 = vmatpush1.msra.mxu0 0.0
    %3109 = vmatprep.subr.mxu0 0.0
    %3110 = vmatpush1.msra.mxu0 0.0
    %3111 = vmatprep.subr.mxu0 0.0
    %3112 = vmatpush1.msra.mxu0 0.0
    %3113 = vmatprep.subr.mxu0 0.0
    %3114 = vmatpush1.msra.mxu0 0.0
    %3115 = vmatprep.subr.mxu0 0.0
    %3116 = vmatpush1.msra.mxu0 0.0
    %3117 = vmatprep.subr.mxu0 0.0
    %3118 = vmatpush1.msra.mxu0 0.0
    %3119 = vmatprep.subr.mxu0 0.0
    %3120 = vmatpush1.msra.mxu0 0.0
    %3121 = vmatprep.subr.mxu0 0.0
    %3122 = vmatpush1.msra.mxu0 0.0
    %3123 = vmatprep.subr.mxu0 0.0
    %3124 = vmatpush1.msra.mxu0 0.0
    %3125 = vmatprep.mubr.f32.mxu0 0.0
    %3126 = vmatmul.mubr.f32.gmra.mrb[0].mxu0 %v2820
    %v3127 = vpop.f32.mrb[0].mxu0
    %v3128 = vadd.f32 0.0, %v3127
    %v3129 = vpop.f32.mrb[0].mxu0
    %v3130 = vadd.f32 0.0, %v3129
    %3131 = vdwg.mxu0
    %v3136 = vrot.slane %v3057, 2
    %v3137 = vrot.slane %v3059, 2
    %v3138 = vrot.slane %v3128, 2
    %v3139 = vrot.slane %v3130, 2
    %v3144 = vadd.f32 %v438, %v3136
    %v3145 = vadd.f32 %v440, %v3137
    %v3146 = vadd.f32 %v515, %v3138
    %v3147 = vadd.f32 %v517, %v3139
    %v3148 = vxor.u32 %v3144, 2147483648
    %v3149 = vmul.f32 %v3148, 1.442695
    %v3150 = vpow.pop %v3149
    %v3151 = vadd.f32 %v3150, 1.0
    %v3152 = vrcp.pop %v3151
    %v3153 = vmul.f32 1.0, %v3152
    %v3154 = vxor.u32 %v3145, 2147483648
    %v3155 = vmul.f32 %v3154, 1.442695
    %v3156 = vpow.pop %v3155
    %v3157 = vadd.f32 %v3156, 1.0
    %v3158 = vrcp.pop %v3157
    %v3159 = vmul.f32 1.0, %v3158
    %v3160 = vtanh.pop %v3146
    %v3161 = vxor.u32 %v3147, 2147483648
    %v3162 = vmul.f32 %v3161, 1.442695
    %v3163 = vpow.pop %v3162
    %v3164 = vadd.f32 %v3163, 1.0
    %v3165 = vrcp.pop %v3164
    %v3166 = vmul.f32 1.0, %v3165
    %v3168 = vrot.slane %v2814, 6
    %v3170 = vmul.f32 %v3159, %v3168
    %v3171 = vmul.f32 %v3153, %v3160
    %v3172 = vadd.f32 %v3170, %v3171
    %v3173 = vtanh.pop %v3172
    %v3174 = vmul.f32 %v3166, %v3173
    %v3176 = vrot.slane %v2989, 2
    %v3178 = vrot.slane %v3174, 6
    %v3179 = vrot.slane %v3176, 6
    %3182 = vmatprep.subr.mxu0 %v169
    %3183 = vmatpush1.msra.mxu0 %v168
    %3184 = vmatprep.subr.mxu0 %v173
    %3185 = vmatpush1.msra.mxu0 %v172
    %3186 = vmatprep.subr.mxu0 %v177
    %3187 = vmatpush1.msra.mxu0 %v176
    %3188 = vmatprep.subr.mxu0 %v181
    %3189 = vmatpush1.msra.mxu0 %v180
    %3190 = vmatprep.subr.mxu0 %v185
    %3191 = vmatpush1.msra.mxu0 %v184
    %3192 = vmatprep.subr.mxu0 %v189
    %3193 = vmatpush1.msra.mxu0 %v188
    %3194 = vmatprep.subr.mxu0 %v193
    %3195 = vmatpush1.msra.mxu0 %v192
    %3196 = vmatprep.subr.mxu0 %v197
    %3197 = vmatpush1.msra.mxu0 %v196
    %3198 = vmatprep.subr.mxu0 %v201
    %3199 = vmatpush1.msra.mxu0 %v200
    %3200 = vmatprep.subr.mxu0 %v205
    %3201 = vmatpush1.msra.mxu0 %v204
    %3202 = vmatprep.subr.mxu0 %v209
    %3203 = vmatpush1.msra.mxu0 %v208
    %3204 = vmatprep.subr.mxu0 %v213
    %3205 = vmatpush1.msra.mxu0 %v212
    %3206 = vmatprep.subr.mxu0 %v217
    %3207 = vmatpush1.msra.mxu0 %v216
    %3208 = vmatprep.subr.mxu0 %v221
    %3209 = vmatpush1.msra.mxu0 %v220
    %3210 = vmatprep.subr.mxu0 %v225
    %3211 = vmatpush1.msra.mxu0 %v224
    %3212 = vmatprep.subr.mxu0 %v229
    %3213 = vmatpush1.msra.mxu0 %v228
    %3214 = vmatprep.subr.mxu0 %v233
    %3215 = vmatpush1.msra.mxu0 %v232
    %3216 = vmatprep.subr.mxu0 %v237
    %3217 = vmatpush1.msra.mxu0 %v236
    %3218 = vmatprep.subr.mxu0 %v241
    %3219 = vmatpush1.msra.mxu0 %v240
    %3220 = vmatprep.subr.mxu0 %v245
    %3221 = vmatpush1.msra.mxu0 %v244
    %3222 = vmatprep.subr.mxu0 %v249
    %3223 = vmatpush1.msra.mxu0 %v248
    %3224 = vmatprep.subr.mxu0 %v253
    %3225 = vmatpush1.msra.mxu0 %v252
    %3226 = vmatprep.subr.mxu0 %v257
    %3227 = vmatpush1.msra.mxu0 %v256
    %3228 = vmatprep.subr.mxu0 %v261
    %3229 = vmatpush1.msra.mxu0 %v260
    %3230 = vmatprep.subr.mxu0 %v265
    %3231 = vmatpush1.msra.mxu0 %v264
    %3232 = vmatprep.subr.mxu0 %v269
    %3233 = vmatpush1.msra.mxu0 %v268
    %3234 = vmatprep.subr.mxu0 %v273
    %3235 = vmatpush1.msra.mxu0 %v272
    %3236 = vmatprep.subr.mxu0 %v277
    %3237 = vmatpush1.msra.mxu0 %v276
    %3238 = vmatprep.subr.mxu0 %v281
    %3239 = vmatpush1.msra.mxu0 %v280
    %3240 = vmatprep.subr.mxu0 %v285
    %3241 = vmatpush1.msra.mxu0 %v284
    %3242 = vmatprep.subr.mxu0 %v289
    %3243 = vmatpush1.msra.mxu0 %v288
    %3244 = vmatprep.subr.mxu0 %v293
    %3245 = vmatpush1.msra.mxu0 %v292
    %3246 = vmatprep.mubr.f32.mxu0 %v3179
    %3247 = vmatmul.mubr.f32.gmra.mrb[0].mxu0 %v3178
    %v3248 = vpop.f32.mrb[0].mxu0
    %v3249 = vadd.f32 %v301, %v3248
    %v3250 = vpop.f32.mrb[0].mxu0
    %v3251 = vadd.f32 %v305, %v3250
    %3252 = vdwg.mxu0
    %3253 = vmatprep.subr.mxu0 %v171
    %3254 = vmatpush1.msra.mxu0 %v170
    %3255 = vmatprep.subr.mxu0 %v175
    %3256 = vmatpush1.msra.mxu0 %v174
    %3257 = vmatprep.subr.mxu0 %v179
    %3258 = vmatpush1.msra.mxu0 %v178
    %3259 = vmatprep.subr.mxu0 %v183
    %3260 = vmatpush1.msra.mxu0 %v182
    %3261 = vmatprep.subr.mxu0 %v187
    %3262 = vmatpush1.msra.mxu0 %v186
    %3263 = vmatprep.subr.mxu0 %v191
    %3264 = vmatpush1.msra.mxu0 %v190
    %3265 = vmatprep.subr.mxu0 %v195
    %3266 = vmatpush1.msra.mxu0 %v194
    %3267 = vmatprep.subr.mxu0 %v199
    %3268 = vmatpush1.msra.mxu0 %v198
    %3269 = vmatprep.subr.mxu0 %v203
    %3270 = vmatpush1.msra.mxu0 %v202
    %3271 = vmatprep.subr.mxu0 %v207
    %3272 = vmatpush1.msra.mxu0 %v206
    %3273 = vmatprep.subr.mxu0 %v211
    %3274 = vmatpush1.msra.mxu0 %v210
    %3275 = vmatprep.subr.mxu0 %v215
    %3276 = vmatpush1.msra.mxu0 %v214
    %3277 = vmatprep.subr.mxu0 %v219
    %3278 = vmatpush1.msra.mxu0 %v218
    %3279 = vmatprep.subr.mxu0 %v223
    %3280 = vmatpush1.msra.mxu0 %v222
    %3281 = vmatprep.subr.mxu0 %v227
    %3282 = vmatpush1.msra.mxu0 %v226
    %3283 = vmatprep.subr.mxu0 %v231
    %3284 = vmatpush1.msra.mxu0 %v230
    %3285 = vmatprep.subr.mxu0 %v235
    %3286 = vmatpush1.msra.mxu0 %v234
    %3287 = vmatprep.subr.mxu0 %v239
    %3288 = vmatpush1.msra.mxu0 %v238
    %3289 = vmatprep.subr.mxu0 %v243
    %3290 = vmatpush1.msra.mxu0 %v242
    %3291 = vmatprep.subr.mxu0 %v247
    %3292 = vmatpush1.msra.mxu0 %v246
    %3293 = vmatprep.subr.mxu0 %v251
    %3294 = vmatpush1.msra.mxu0 %v250
    %3295 = vmatprep.subr.mxu0 %v255
    %3296 = vmatpush1.msra.mxu0 %v254
    %3297 = vmatprep.subr.mxu0 %v259
    %3298 = vmatpush1.msra.mxu0 %v258
    %3299 = vmatprep.subr.mxu0 %v263
    %3300 = vmatpush1.msra.mxu0 %v262
    %3301 = vmatprep.subr.mxu0 %v267
    %3302 = vmatpush1.msra.mxu0 %v266
    %3303 = vmatprep.subr.mxu0 %v271
    %3304 = vmatpush1.msra.mxu0 %v270
    %3305 = vmatprep.subr.mxu0 %v275
    %3306 = vmatpush1.msra.mxu0 %v274
    %3307 = vmatprep.subr.mxu0 %v279
    %3308 = vmatpush1.msra.mxu0 %v278
    %3309 = vmatprep.subr.mxu0 %v283
    %3310 = vmatpush1.msra.mxu0 %v282
    %3311 = vmatprep.subr.mxu0 %v287
    %3312 = vmatpush1.msra.mxu0 %v286
    %3313 = vmatprep.subr.mxu0 %v291
    %3314 = vmatpush1.msra.mxu0 %v290
    %3315 = vmatprep.subr.mxu0 %v295
    %3316 = vmatpush1.msra.mxu0 %v294
    %3317 = vmatprep.mubr.f32.mxu0 %v3179
    %3318 = vmatmul.mubr.f32.gmra.mrb[0].mxu0 %v3178
    %v3319 = vpop.f32.mrb[0].mxu0
    %v3320 = vadd.f32 %v309, %v3319
    %v3321 = vpop.f32.mrb[0].mxu0
    %v3322 = vadd.f32 %v313, %v3321
    %3323 = vdwg.mxu0
    %v3324 = vxor.u32 %v3249, 2147483648
    %v3325 = vmul.f32 %v3324, 1.442695
    %v3326 = vpow.pop %v3325
    %v3327 = vadd.f32 %v3326, 1.0
    %v3328 = vrcp.pop %v3327
    %v3329 = vmul.f32 1.0, %v3328
    %v3330 = vxor.u32 %v3251, 2147483648
    %v3331 = vmul.f32 %v3330, 1.442695
    %v3332 = vpow.pop %v3331
    %v3333 = vadd.f32 %v3332, 1.0
    %v3334 = vrcp.pop %v3333
    %v3335 = vmul.f32 1.0, %v3334
    %v3336 = vtanh.pop %v3320
    %v3337 = vxor.u32 %v3322, 2147483648
    %v3338 = vmul.f32 %v3337, 1.442695
    %v3339 = vpow.pop %v3338
    %v3340 = vadd.f32 %v3339, 1.0
    %v3341 = vrcp.pop %v3340
    %v3342 = vmul.f32 1.0, %v3341
    %v3343 = vmul.f32 %v3335, %v2987
    %v3344 = vmul.f32 %v3329, %v3336
    %v3345 = vadd.f32 %v3343, %v3344
    %v3346 = vtanh.pop %v3345
    %v3347 = vmul.f32 %v3342, %v3346
    %v3348 = vld [vmem:[#allocation10] sm:$0xff]
    %v3349 = vld [vmem:[#allocation10 + $0x8] sm:$0xff]
    %v3350 = vld [vmem:[#allocation10 + $0x10] sm:$0xff]
    %v3351 = vld [vmem:[#allocation10 + $0x18] sm:$0xff]
    %v3352 = vld [vmem:[#allocation10 + $0x20] sm:$0xff]
    %v3353 = vld [vmem:[#allocation10 + $0x28] sm:$0xff]
    %v3354 = vld [vmem:[#allocation10 + $0x30] sm:$0xff]
    %v3355 = vld [vmem:[#allocation10 + $0x38] sm:$0xff]
    %v3356 = vld [vmem:[#allocation10 + $0x40] sm:$0xff]
    %v3357 = vld [vmem:[#allocation10 + $0x48] sm:$0xff]
    %v3358 = vld [vmem:[#allocation10 + $0x50] sm:$0xff]
    %v3359 = vld [vmem:[#allocation10 + $0x58] sm:$0xff]
    %v3360 = vld [vmem:[#allocation10 + $0x60] sm:$0xff]
    %v3361 = vld [vmem:[#allocation10 + $0x68] sm:$0xff]
    %v3362 = vld [vmem:[#allocation10 + $0x70] sm:$0xff]
    %v3363 = vld [vmem:[#allocation10 + $0x78] sm:$0xff]
    %v3364 = vld [vmem:[%s7] sm:$0x1]
    %v3366 = vlaneseq
    %v3367 = vshrl.u32 %v3366, 7
    %v3368 = vsub.s32 0, %v3367
    %v3369 = vrot.slane %v3364, %v3368
    %3371 = vmatprep.subr.mxu0 0.0
    %3372 = vmatpush1.msra.mxu0 %v3348
    %3373 = vmatprep.subr.mxu0 0.0
    %3374 = vmatpush1.msra.mxu0 %v3349
    %3375 = vmatprep.subr.mxu0 0.0
    %3376 = vmatpush1.msra.mxu0 %v3350
    %3377 = vmatprep.subr.mxu0 0.0
    %3378 = vmatpush1.msra.mxu0 %v3351
    %3379 = vmatprep.subr.mxu0 0.0
    %3380 = vmatpush1.msra.mxu0 %v3352
    %3381 = vmatprep.subr.mxu0 0.0
    %3382 = vmatpush1.msra.mxu0 %v3353
    %3383 = vmatprep.subr.mxu0 0.0
    %3384 = vmatpush1.msra.mxu0 %v3354
    %3385 = vmatprep.subr.mxu0 0.0
    %3386 = vmatpush1.msra.mxu0 %v3355
    %3387 = vmatprep.subr.mxu0 0.0
    %3388 = vmatpush1.msra.mxu0 %v3356
    %3389 = vmatprep.subr.mxu0 0.0
    %3390 = vmatpush1.msra.mxu0 %v3357
    %3391 = vmatprep.subr.mxu0 0.0
    %3392 = vmatpush1.msra.mxu0 %v3358
    %3393 = vmatprep.subr.mxu0 0.0
    %3394 = vmatpush1.msra.mxu0 %v3359
    %3395 = vmatprep.subr.mxu0 0.0
    %3396 = vmatpush1.msra.mxu0 %v3360
    %3397 = vmatprep.subr.mxu0 0.0
    %3398 = vmatpush1.msra.mxu0 %v3361
    %3399 = vmatprep.subr.mxu0 0.0
    %3400 = vmatpush1.msra.mxu0 %v3362
    %3401 = vmatprep.subr.mxu0 0.0
    %3402 = vmatpush1.msra.mxu0 %v3363
    %3403 = vmatprep.subr.mxu0 0.0
    %3404 = vmatpush1.msra.mxu0 0.0
    %3405 = vmatprep.subr.mxu0 0.0
    %3406 = vmatpush1.msra.mxu0 0.0
    %3407 = vmatprep.subr.mxu0 0.0
    %3408 = vmatpush1.msra.mxu0 0.0
    %3409 = vmatprep.subr.mxu0 0.0
    %3410 = vmatpush1.msra.mxu0 0.0
    %3411 = vmatprep.subr.mxu0 0.0
    %3412 = vmatpush1.msra.mxu0 0.0
    %3413 = vmatprep.subr.mxu0 0.0
    %3414 = vmatpush1.msra.mxu0 0.0
    %3415 = vmatprep.subr.mxu0 0.0
    %3416 = vmatpush1.msra.mxu0 0.0
    %3417 = vmatprep.subr.mxu0 0.0
    %3418 = vmatpush1.msra.mxu0 0.0
    %3419 = vmatprep.subr.mxu0 0.0
    %3420 = vmatpush1.msra.mxu0 0.0
    %3421 = vmatprep.subr.mxu0 0.0
    %3422 = vmatpush1.msra.mxu0 0.0
    %3423 = vmatprep.subr.mxu0 0.0
    %3424 = vmatpush1.msra.mxu0 0.0
    %3425 = vmatprep.subr.mxu0 0.0
    %3426 = vmatpush1.msra.mxu0 0.0
    %3427 = vmatprep.subr.mxu0 0.0
    %3428 = vmatpush1.msra.mxu0 0.0
    %3429 = vmatprep.subr.mxu0 0.0
    %3430 = vmatpush1.msra.mxu0 0.0
    %3431 = vmatprep.subr.mxu0 0.0
    %3432 = vmatpush1.msra.mxu0 0.0
    %3433 = vmatprep.subr.mxu0 0.0
    %3434 = vmatpush1.msra.mxu0 0.0
    %3435 = vmatprep.mubr.f32.mxu0 0.0
    %3436 = vmatmul.mubr.f32.gmra.mrb[0].mxu0 %v3347
    %v3437 = vpop.f32.mrb[0].mxu0
    %v3438 = vadd.f32 %v3369, %v3437
    %v3439 = vpop.f32.mrb[0].mxu0
    %3440 = vdwg.mxu0
    %3441 = vst [vmem:[#allocation11] sm:$0x3] %v3438
    // Predicated region
    $region62: #{tpu_custom_call.1} parent=1 // pred_check
      _
    $region63: #{tpu_custom_call.1} parent=1 // pred_check_branch
      %3443 = sbr.rel (0) target = $region65
    $region64: #{tpu_custom_call.1} parent=1 // pred_region
      %s3445 = ssub.s32 32, 32
      %3446 = vsyncadd [#allocation4], %s3445
      %s3448 = sshll.u32 [#allocation11], 4
      %s3449 = int_to_ptr.vmem [resolvable:$true] %s3448
      %3451 = dma.vmem_to_hbm [thread:$0]  %s3449, 32, %s10, [#allocation4]
    $region65: #{tpu_custom_call.1} parent=1 // pred_fallthru
      _
    // Predicated region
    $region66: #{tpu_custom_call.1} parent=1 // pred_check
      _
    $region67: #{tpu_custom_call.1} parent=1 // pred_check_branch
      %3453 = sbr.rel (0) target = $region69
    $region68: #{tpu_custom_call.1} parent=1 // pred_region
      %3454 = dma.done [#allocation4], 32
    $region69: #{tpu_custom_call.1} parent=1 // pred_fallthru
      _
    %3455 = vsyncpa [#allocation3], 1
    %3456 = vsyncpa [#allocation6], 1
    %3457 = vsyncpa [#allocation9], 1
    %3458 = vsyncpa [#allocation4], 1

</llo_original>
